<compile_context>
chip_gen: v7x
topology: tpu7x:2x2x1
jax: 0.10.0
libtpu: 0.0.40
codegen_flags: <defaults>
</compile_context>

<pallas_src>
import functools
import math

import jax
import jax.numpy as jnp
from jax import lax
from jax.experimental import pallas as pl
from jax.experimental.pallas import tpu as pltpu

_EPS = 1e-6
_MASK_NEG = -1e9


def _vmem_limit_bytes():
    # Generation-aware scoped VMEM limit: 128 MiB/core on v5e/v6e, 64 MiB/core on v7x.
    try:
        cap = int(pltpu.get_tpu_info().vmem_capacity_bytes)
    except Exception:
        cap = 64 * 1024 * 1024
    return max(32 * 1024 * 1024, (cap * 3) // 4)


_VMEM_LIMIT = _vmem_limit_bytes()


def _cparams(*sem):
    return pltpu.CompilerParams(dimension_semantics=sem,
                                vmem_limit_bytes=_VMEM_LIMIT)


def _rep_spec(shape):
    """Replicated (grid-invariant) operand spec."""
    zeros = (0,) * len(shape)
    return pl.BlockSpec(shape, lambda *_: zeros)


# ----------------------------------------------------------------------------
# In-kernel helpers (register values, f32 statistics, bf16 MXU operands)
# ----------------------------------------------------------------------------
def _ln(x, g, b):
    mu = jnp.mean(x, axis=-1, keepdims=True)
    var = jnp.mean((x - mu) ** 2, axis=-1, keepdims=True)
    return (x - mu) * lax.rsqrt(var + _EPS) * g + b


def _mm(a, w):
    """bf16 operands, f32 accumulation on the MXU."""
    return jnp.dot(a.astype(jnp.bfloat16), w.astype(jnp.bfloat16),
                   preferred_element_type=jnp.float32)


def _mha(q, k, v, mask, heads):
    """Multi-head attention on a flattened (rows, D) batch-tile.

    `mask` is a (rows, rows) block-diagonal additive mask (0 inside an image,
    -1e9 across images) so a single big score matmul can be used per head.
    Per-head outputs are lane-concatenated so the caller does one full-K
    output projection."""
    rows, D = q.shape
    dh = D // heads
    scale = 1.0 / math.sqrt(dh)
    outs = []
    for h in range(heads):
        sl = slice(h * dh, (h + 1) * dh)
        s = lax.dot_general(q[:, sl].astype(jnp.bfloat16),
                            k[:, sl].astype(jnp.bfloat16),
                            (((1,), (1,)), ((), ())),
                            preferred_element_type=jnp.float32) * scale + mask
        m = jnp.max(s, axis=-1, keepdims=True)
        e = jnp.exp(s - m)
        p = e * pl.reciprocal(jnp.sum(e, axis=-1, keepdims=True), approx=True)
        outs.append(_mm(p, v[:, sl]))                    # (rows, dh)
    return jnp.concatenate(outs, axis=-1)                # (rows, D)


# ----------------------------------------------------------------------------
# Pallas kernels
# ----------------------------------------------------------------------------
def _backbone_kernel(patches_ref, pw_ref, pb_ref, cls_ref, pos_ref, mask_ref,
                     ln1_g, ln1_b, qkv_w, qkv_b, proj_w, proj_b,
                     ln2_g, ln2_b, fc1_w, fc1_b, fc2_w, fc2_b,
                     lnf_g, lnf_b, o_ref, tok_ref, *, heads, tokens_per_img, bblk):
    """Whole ViT backbone for one batch tile.  grid = (batch_tiles, depth);
    the token slab lives in VMEM scratch across the depth axis."""
    d = pl.program_id(1)
    T = tokens_per_img
    Np = T - 1
    D = tok_ref.shape[-1]

    # --- depth step 0: patch embed + cls + positional embedding -------------
    @pl.when(d == 0)
    def _():
        pe = _mm(patches_ref[0], pw_ref[...]) + pb_ref[...]        # (bblk*Np, D) f32
        cls_row = cls_ref[...] + pos_ref[0:1, :]                   # (1, D)
        pieces = []
        for b in range(bblk):
            pieces.append(cls_row)
            pieces.append(pe[b * Np:(b + 1) * Np, :] + pos_ref[1:, :])
        tok_ref[...] = jnp.concatenate(pieces, axis=0)             # (bblk*T, D)

    # --- one pre-LN transformer block (block weights streamed along axis 1) -
    x = tok_ref[...]                                               # (rows, D) f32
    h = _ln(x, ln1_g[0], ln1_b[0])
    qkv = _mm(h, qkv_w[0]) + qkv_b[0]                              # (rows, 3D)
    q, k, v = qkv[:, :D], qkv[:, D:2 * D], qkv[:, 2 * D:]
    attn = _mha(q, k, v, mask_ref[...], heads)                     # (rows, D)
    x = x + _mm(attn, proj_w[0]) + proj_b[0]

    h = _ln(x, ln2_g[0], ln2_b[0])
    # TODO(synk): PyTorch nn.GELU defaults to exact erf; tanh approximation used here.
    h = jax.nn.gelu(_mm(h, fc1_w[0]) + fc1_b[0], approximate=True)
    x = x + _mm(h, fc2_w[0]) + fc2_b[0]
    tok_ref[...] = x

    # --- last depth step: fused final LayerNorm straight into the output ----
    @pl.when(d == pl.num_programs(1) - 1)
    def _():
        o_ref[0] = _ln(x, lnf_g[...], lnf_b[...]).astype(o_ref.dtype)


def _head_kernel(x_ref, w1, b1, w2, b2, w3, b3, wl, bl, o_ref, h_ref):
    """DINO-style MLP head.  Bottleneck + L2 computed once (grid step 0) into VMEM
    scratch; the wide last layer is streamed in lane-dense output tiles."""
    @pl.when(pl.program_id(0) == 0)
    def _():
        x = x_ref[...].astype(jnp.float32)
        h = jax.nn.gelu(_mm(x, w1[...]) + b1[...], approximate=True)
        h = jax.nn.gelu(_mm(h, w2[...]) + b2[...], approximate=True)
        h = _mm(h, w3[...]) + b3[...]
        inv = lax.rsqrt(jnp.maximum(jnp.sum(h * h, axis=-1, keepdims=True), 1e-24))
        h_ref[...] = h * inv
    o_ref[...] = (_mm(h_ref[...], wl[...]) + bl[...]).astype(o_ref.dtype)


def _transhead_kernel(x_ref, mask_ref, lnq_g, lnq_b, lnk_g, lnk_b,
                      q_w, q_b, kv_w, kv_b, o_w, o_b, out_ref, *, heads):
    """Attention trans-head on a flattened (rows, D) batch tile (query == tokens)."""
    x = x_ref[0].astype(jnp.float32)                               # (rows, D)
    D = x.shape[-1]
    hq = _ln(x, lnq_g[...], lnq_b[...])
    hk = _ln(x, lnk_g[...], lnk_b[...])
    q = _mm(hq, q_w[...]) + q_b[...]                               # (rows, D)
    kv = _mm(hk, kv_w[...]) + kv_b[...]                            # (rows, 2D)
    k, v = kv[:, :D], kv[:, D:]
    attn = _mha(q, k, v, mask_ref[...], heads)                     # (rows, D)
    out_ref[0] = (_mm(attn, o_w[...]) + o_b[...]).astype(out_ref.dtype)


# ----------------------------------------------------------------------------
# Parameter initialisation (deterministic, synthetic; weights bf16, bias/LN f32)
# ----------------------------------------------------------------------------
def _dense(key, fan_in, fan_out):
    w = (jax.random.normal(key, (fan_in, fan_out), jnp.float32) * 0.02).astype(jnp.bfloat16)
    b = jnp.zeros((fan_out,), jnp.float32)
    return w, b


def init_backbone(key, *, C, P, D, depth, heads, n_patches, mlp_ratio=4):
    keys = jax.random.split(key, 3 + depth)
    Dh = mlp_ratio * D
    p = {"heads": heads, "patch": P, "depth": depth}
    pw, pb = _dense(keys[0], C * P * P, D)
    p["patch_w"], p["patch_b"] = pw, pb.reshape(1, D)
    p["cls"] = jax.random.normal(keys[1], (1, D), jnp.float32) * 0.02
    p["pos"] = jax.random.normal(keys[2], (n_patches + 1, D), jnp.float32) * 0.02

    blk_keys = [jax.random.split(keys[3 + i], 4) for i in range(depth)]
    # Per-block weights stacked along a leading depth axis (streamed in-kernel).
    p["ln1_g"] = jnp.ones((depth, 1, D), jnp.float32)
    p["ln1_b"] = jnp.zeros((depth, 1, D), jnp.float32)
    p["ln2_g"] = jnp.ones((depth, 1, D), jnp.float32)
    p["ln2_b"] = jnp.zeros((depth, 1, D), jnp.float32)
    p["qkv_w"] = jnp.stack([_dense(blk_keys[i][0], D, 3 * D)[0] for i in range(depth)])
    p["qkv_b"] = jnp.zeros((depth, 1, 3 * D), jnp.float32)
    p["proj_w"] = jnp.stack([_dense(blk_keys[i][1], D, D)[0] for i in range(depth)])
    p["proj_b"] = jnp.zeros((depth, 1, D), jnp.float32)
    p["fc1_w"] = jnp.stack([_dense(blk_keys[i][2], D, Dh)[0] for i in range(depth)])
    p["fc1_b"] = jnp.zeros((depth, 1, Dh), jnp.float32)
    p["fc2_w"] = jnp.stack([_dense(blk_keys[i][3], Dh, D)[0] for i in range(depth)])
    p["fc2_b"] = jnp.zeros((depth, 1, D), jnp.float32)
    p["lnf_g"] = jnp.ones((1, D), jnp.float32)
    p["lnf_b"] = jnp.zeros((1, D), jnp.float32)
    return p


def init_head(key, *, D, hidden, bottleneck, out_dim):
    ks = jax.random.split(key, 4)
    p = {}
    w, b = _dense(ks[0], D, hidden); p["fc1_w"], p["fc1_b"] = w, b.reshape(1, hidden)
    w, b = _dense(ks[1], hidden, hidden); p["fc2_w"], p["fc2_b"] = w, b.reshape(1, hidden)
    w, b = _dense(ks[2], hidden, bottleneck); p["fc3_w"], p["fc3_b"] = w, b.reshape(1, bottleneck)
    p["last_w"], _ = _dense(ks[3], bottleneck, out_dim)
    p["last_b"] = jnp.zeros((1, out_dim), jnp.float32)   # DINO last layer has no bias
    return p


def init_transhead(key, *, D, heads):
    ks = jax.random.split(key, 4)
    p = {"heads": heads,
         "lnq_g": jnp.ones((1, D), jnp.float32), "lnq_b": jnp.zeros((1, D), jnp.float32),
         "lnk_g": jnp.ones((1, D), jnp.float32), "lnk_b": jnp.zeros((1, D), jnp.float32)}
    w, b = _dense(ks[0], D, D); p["q_w"], p["q_b"] = w, b.reshape(1, D)
    k_w, k_b = _dense(ks[1], D, D)
    v_w, v_b = _dense(ks[2], D, D)
    # k/v concatenated once at init (no per-forward XLA concat / HBM copy)
    p["kv_w"] = jnp.concatenate([k_w, v_w], axis=1)                 # (D, 2D) bf16
    p["kv_b"] = jnp.concatenate([k_b, v_b], axis=0).reshape(1, 2 * D)
    w, b = _dense(ks[3], D, D); p["o_w"], p["o_b"] = w, b.reshape(1, D)
    return p


# ----------------------------------------------------------------------------
# Tiling helpers
# ----------------------------------------------------------------------------
def _pick_bblk(batch, rows_per_item, target_rows=256):
    """Batch-tile size: fill the MXU M dimension (>= target rows) when possible;
    otherwise split into an even number of grid steps so both v7x TensorCores work."""
    for d in range(1, batch + 1):
        if batch % d == 0 and d * rows_per_item >= target_rows:
            return d
    return batch // 2 if (batch % 2 == 0 and batch > 1) else batch


def _blockdiag_mask(n_items, rows_per_item):
    """(rows, rows) additive mask: 0 within an image, -1e9 across images."""
    ids = jnp.repeat(jnp.arange(n_items, dtype=jnp.int32), rows_per_item)
    same = ids[:, None] == ids[None, :]
    return jnp.where(same, 0.0, _MASK_NEG).astype(jnp.float32)


def _out_tile(n, max_tile=2048):
    """Largest lane-aligned divisor of n up to max_tile (falls back to n)."""
    top = min(n, max_tile)
    for cand in range(top - top % 128, 0, -128):
        if n % cand == 0:
            return cand
    return n


# ----------------------------------------------------------------------------
# Sub-module forwards
# ----------------------------------------------------------------------------
def backbone_forward(p, x):
    """x: (B, C, H, W) NCHW -> all tokens (B, 1+Np, D) f32, fully fused backbone."""
    B, C, H, W = x.shape
    P, heads, depth = p["patch"], p["heads"], p["depth"]
    nph, npw = H // P, W // P
    Np = nph * npw
    T = Np + 1
    D = p["patch_w"].shape[1]
    Dh = p["fc1_w"].shape[2]
    CPP = C * P * P

    bblk = _pick_bblk(B, T)
    nb = B // bblk
    rows = bblk * T

    # Patch extraction once, in bf16 (matches Conv2d(kernel=stride=P) layout).
    # TODO(synk): at real image sizes fold this gather into the embed DMA via index_map.
    xb = x.astype(jnp.bfloat16)
    patches = xb.reshape(B, C, nph, P, npw, P).transpose(0, 2, 4, 1, 3, 5)
    patches = patches.reshape(nb, bblk * Np, CPP)

    mask = _blockdiag_mask(bblk, T)

    dspec = lambda shp: pl.BlockSpec((1,) + shp, lambda b, d: (d, 0, 0))  # depth-streamed

    tokens = pl.pallas_call(
        functools.partial(_backbone_kernel, heads=heads, tokens_per_img=T, bblk=bblk),
        out_shape=jax.ShapeDtypeStruct((nb, rows, D), jnp.float32),
        grid=(nb, depth),
        in_specs=[
            pl.BlockSpec((1, bblk * Np, CPP), lambda b, d: (b, 0, 0)),   # patches
            _rep_spec((CPP, D)), _rep_spec((1, D)),                      # patch_w / patch_b
            _rep_spec((1, D)), _rep_spec((T, D)),                        # cls / pos
            _rep_spec((rows, rows)),                                     # block-diag mask
            dspec((1, D)), dspec((1, D)),                                # ln1 g/b
            dspec((D, 3 * D)), dspec((1, 3 * D)),                        # qkv w/b
            dspec((D, D)), dspec((1, D)),                                # proj w/b
            dspec((1, D)), dspec((1, D)),                                # ln2 g/b
            dspec((D, Dh)), dspec((1, Dh)),                              # fc1 w/b
            dspec((Dh, D)), dspec((1, D)),                               # fc2 w/b
            _rep_spec((1, D)), _rep_spec((1, D)),                        # final LN g/b
        ],
        out_specs=pl.BlockSpec((1, rows, D), lambda b, d: (b, 0, 0)),
        scratch_shapes=[pltpu.VMEM((rows, D), jnp.float32)],             # resident tokens
        compiler_params=_cparams("parallel", "arbitrary"),
    )(patches, p["patch_w"], p["patch_b"], p["cls"], p["pos"], mask,
      p["ln1_g"], p["ln1_b"], p["qkv_w"], p["qkv_b"], p["proj_w"], p["proj_b"],
      p["ln2_g"], p["ln2_b"], p["fc1_w"], p["fc1_b"], p["fc2_w"], p["fc2_b"],
      p["lnf_g"], p["lnf_b"])

    return tokens.reshape(B, T, D)


def head_forward(p, cls_token):
    """cls_token: (B, D) -> (B, out_dim); MLP+L2 once, last layer tiled over out dim."""
    B, D = cls_token.shape
    Hd = p["fc1_w"].shape[1]
    Bt = p["fc3_w"].shape[1]
    Od = p["last_w"].shape[1]
    tile = _out_tile(Od)
    return pl.pallas_call(
        _head_kernel,
        out_shape=jax.ShapeDtypeStruct((B, Od), jnp.float32),
        grid=(Od // tile,),
        in_specs=[
            _rep_spec((B, D)),
            _rep_spec((D, Hd)), _rep_spec((1, Hd)),
            _rep_spec((Hd, Hd)), _rep_spec((1, Hd)),
            _rep_spec((Hd, Bt)), _rep_spec((1, Bt)),
            pl.BlockSpec((Bt, tile), lambda j: (0, j)),
            pl.BlockSpec((1, tile), lambda j: (0, j)),
        ],
        out_specs=pl.BlockSpec((B, tile), lambda j: (0, j)),
        scratch_shapes=[pltpu.VMEM((B, Bt), jnp.float32)],
        compiler_params=_cparams("arbitrary"),
    )(cls_token, p["fc1_w"], p["fc1_b"], p["fc2_w"], p["fc2_b"],
      p["fc3_w"], p["fc3_b"], p["last_w"], p["last_b"])


def transhead_forward(p, tokens):
    """tokens: (B, Np, D) -> (B, Np, D); LN + q/kv proj + MHA + out-proj, batch-tiled."""
    B, Np, D = tokens.shape
    heads = p["heads"]
    bblk = _pick_bblk(B, Np)
    nb = B // bblk
    rows = bblk * Np
    x = tokens.reshape(nb, rows, D)
    mask = _blockdiag_mask(bblk, Np)
    out = pl.pallas_call(
        functools.partial(_transhead_kernel, heads=heads),
        out_shape=jax.ShapeDtypeStruct((nb, rows, D), jnp.float32),
        grid=(nb,),
        in_specs=[
            pl.BlockSpec((1, rows, D), lambda b: (b, 0, 0)),
            _rep_spec((rows, rows)),
            _rep_spec((1, D)), _rep_spec((1, D)),
            _rep_spec((1, D)), _rep_spec((1, D)),
            _rep_spec((D, D)), _rep_spec((1, D)),
            _rep_spec((D, 2 * D)), _rep_spec((1, 2 * D)),
            _rep_spec((D, D)), _rep_spec((1, D)),
        ],
        out_specs=pl.BlockSpec((1, rows, D), lambda b: (b, 0, 0)),
        compiler_params=_cparams("parallel"),
    )(x, mask, p["lnq_g"], p["lnq_b"], p["lnk_g"], p["lnk_b"],
      p["q_w"], p["q_b"], p["kv_w"], p["kv_b"], p["o_w"], p["o_b"])
    return out.reshape(B, Np, D)


# ----------------------------------------------------------------------------
# ViTStudentWrapper.forward
# ----------------------------------------------------------------------------
def vit_student_forward(params, x):
    """x: list of NCHW crops. Mirrors ViTStudentWrapper.forward."""
    xcat = jnp.concatenate(list(x), axis=0)                          # torch.cat(x[:])
    tokens = backbone_forward(params["backbone"], xcat)              # (B, 1+Np, D)
    cls_token = tokens[:, 0]                                         # (B, D)
    pth_token = tokens[:, 1:]                                        # (B, Np, D)
    return (head_forward(params["head"], cls_token),
            transhead_forward(params["transhead"], pth_token),
            cls_token)


# ----------------------------------------------------------------------------
# Demo
# ----------------------------------------------------------------------------
if __name__ == "__main__":
    key = jax.random.PRNGKey(0)
    k_bb, k_hd, k_th, k_x1, k_x2 = jax.random.split(key, 5)

    # small, ViT-consistent, lane-friendly shapes
    B, C, H, W, P = 2, 3, 16, 16, 8          # two crops of batch 2
    D, HEADS, DEPTH = 128, 4, 2
    NP = (H // P) * (W // P)                 # 4 patches -> 5 tokens
    HEAD_HIDDEN, HEAD_BOTTLENECK, HEAD_OUT = 256, 128, 256

    params = {
        "backbone": init_backbone(k_bb, C=C, P=P, D=D, depth=DEPTH,
                                  heads=HEADS, n_patches=NP),
        "head": init_head(k_hd, D=D, hidden=HEAD_HIDDEN,
                          bottleneck=HEAD_BOTTLENECK, out_dim=HEAD_OUT),
        "transhead": init_transhead(k_th, D=D, heads=HEADS),
    }

    x1 = jax.random.normal(k_x1, (B, C, H, W), jnp.float32)
    x2 = jax.random.normal(k_x2, (B, C, H, W), jnp.float32)
    total_b = 2 * B                                                  # after torch.cat

    head_out, trans_out, cls_out = vit_student_forward(params, [x1, x2])
    jax.block_until_ready(head_out)
    jax.block_until_ready(trans_out)
    jax.block_until_ready(cls_out)

    assert head_out.shape == (total_b, HEAD_OUT)
    assert trans_out.shape == (total_b, NP, D)
    assert cls_out.shape == (total_b, D)
    print("KERNEL_OK")
</pallas_src>

<mosaic_0001>
module attributes {stable_mosaic.version = 11 : i64} {
  func.func @_backbone_kernel(%arg0: i32, %arg1: i32, %arg2: memref<1x8x192xbf16, #tpu.memory_space<vmem>>, %arg3: memref<192x128xbf16, #tpu.memory_space<vmem>>, %arg4: memref<1x128xf32, #tpu.memory_space<vmem>>, %arg5: memref<1x128xf32, #tpu.memory_space<vmem>>, %arg6: memref<5x128xf32, #tpu.memory_space<vmem>>, %arg7: memref<10x10xf32, #tpu.memory_space<vmem>>, %arg8: memref<1x1x128xf32, #tpu.memory_space<vmem>>, %arg9: memref<1x1x128xf32, #tpu.memory_space<vmem>>, %arg10: memref<1x128x384xbf16, #tpu.memory_space<vmem>>, %arg11: memref<1x1x384xf32, #tpu.memory_space<vmem>>, %arg12: memref<1x128x128xbf16, #tpu.memory_space<vmem>>, %arg13: memref<1x1x128xf32, #tpu.memory_space<vmem>>, %arg14: memref<1x1x128xf32, #tpu.memory_space<vmem>>, %arg15: memref<1x1x128xf32, #tpu.memory_space<vmem>>, %arg16: memref<1x128x512xbf16, #tpu.memory_space<vmem>>, %arg17: memref<1x1x512xf32, #tpu.memory_space<vmem>>, %arg18: memref<1x512x128xbf16, #tpu.memory_space<vmem>>, %arg19: memref<1x1x128xf32, #tpu.memory_space<vmem>>, %arg20: memref<1x128xf32, #tpu.memory_space<vmem>>, %arg21: memref<1x128xf32, #tpu.memory_space<vmem>>, %arg22: memref<1x10x128xf32, #tpu.memory_space<vmem>>, %arg23: memref<10x128xf32, #tpu.memory_space<vmem>>) attributes {dimension_semantics = [#tpu.dimension_semantics<parallel>, #tpu.dimension_semantics<arbitrary>], iteration_bounds = array<i64: 2, 2>, scalar_prefetch = 0 : i64, scratch_operands = 1 : i64, tpu.core_type = #tpu.core_type<tc>, window_params = [{transform_indices = @transform_0, window_bounds = array<i64: 1, 8, 192>}, {pipeline_mode = #tpu.pipeline_mode<synchronous>, transform_indices = @transform_1, window_bounds = array<i64: 192, 128>}, {pipeline_mode = #tpu.pipeline_mode<synchronous>, transform_indices = @transform_2, window_bounds = array<i64: 1, 128>}, {pipeline_mode = #tpu.pipeline_mode<synchronous>, transform_indices = @transform_3, window_bounds = array<i64: 1, 128>}, {pipeline_mode = #tpu.pipeline_mode<synchronous>, transform_indices = @transform_4, window_bounds = array<i64: 5, 128>}, {pipeline_mode = #tpu.pipeline_mode<synchronous>, transform_indices = @transform_5, window_bounds = array<i64: 10, 10>}, {transform_indices = @transform_6, window_bounds = array<i64: 1, 1, 128>}, {transform_indices = @transform_7, window_bounds = array<i64: 1, 1, 128>}, {transform_indices = @transform_8, window_bounds = array<i64: 1, 128, 384>}, {transform_indices = @transform_9, window_bounds = array<i64: 1, 1, 384>}, {transform_indices = @transform_10, window_bounds = array<i64: 1, 128, 128>}, {transform_indices = @transform_11, window_bounds = array<i64: 1, 1, 128>}, {transform_indices = @transform_12, window_bounds = array<i64: 1, 1, 128>}, {transform_indices = @transform_13, window_bounds = array<i64: 1, 1, 128>}, {transform_indices = @transform_14, window_bounds = array<i64: 1, 128, 512>}, {transform_indices = @transform_15, window_bounds = array<i64: 1, 1, 512>}, {transform_indices = @transform_16, window_bounds = array<i64: 1, 512, 128>}, {transform_indices = @transform_17, window_bounds = array<i64: 1, 1, 128>}, {pipeline_mode = #tpu.pipeline_mode<synchronous>, transform_indices = @transform_18, window_bounds = array<i64: 1, 128>}, {pipeline_mode = #tpu.pipeline_mode<synchronous>, transform_indices = @transform_19, window_bounds = array<i64: 1, 128>}, {transform_indices = @transform_20, window_bounds = array<i64: 1, 10, 128>}]} {
    %c0_i32 = arith.constant 0 : i32
    %0 = arith.cmpi eq, %arg1, %c0_i32 : i32
    %1 = arith.extui %0 : i1 to i32
    %c0_i32_0 = arith.constant 0 : i32
    %2 = arith.cmpi ne, %1, %c0_i32_0 : i32
    scf.if %2 {
      %c0_80 = arith.constant 0 : index
      %c0_81 = arith.constant 0 : index
      %c0_82 = arith.constant 0 : index
      %200 = vector.load %arg2[%c0_80, %c0_81, %c0_82] : memref<1x8x192xbf16, #tpu.memory_space<vmem>>, vector<1x8x192xbf16>
      %201 = vector.shape_cast %200 : vector<1x8x192xbf16> to vector<8x192xbf16>
      %c0_83 = arith.constant 0 : index
      %c0_84 = arith.constant 0 : index
      %202 = vector.load %arg3[%c0_83, %c0_84] : memref<192x128xbf16, #tpu.memory_space<vmem>>, vector<192x128xbf16>
      %cst_85 = arith.constant dense<0.000000e+00> : vector<8x128xf32>
      %203 = tpu.matmul %201, %202, %cst_85 {dimension_numbers = #tpu.dot_dimension_numbers<[1], [0], [0], [1], [0, 0, 1, 1], [], []>} : vector<8x192xbf16>, vector<192x128xbf16>, vector<8x128xf32> -> vector<8x128xf32>
      %c0_86 = arith.constant 0 : index
      %c0_87 = arith.constant 0 : index
      %204 = vector.load %arg4[%c0_86, %c0_87] : memref<1x128xf32, #tpu.memory_space<vmem>>, vector<1x128xf32>
      %205 = vector.broadcast %204 : vector<1x128xf32> to vector<8x128xf32>
      %206 = arith.addf %203, %205 : vector<8x128xf32>
      %c0_88 = arith.constant 0 : index
      %c0_89 = arith.constant 0 : index
      %207 = vector.load %arg5[%c0_88, %c0_89] : memref<1x128xf32, #tpu.memory_space<vmem>>, vector<1x128xf32>
      %c0_90 = arith.constant 0 : index
      %c0_91 = arith.constant 0 : index
      %208 = vector.load %arg6[%c0_90, %c0_91] : memref<5x128xf32, #tpu.memory_space<vmem>>, vector<1x128xf32>
      %209 = arith.addf %207, %208 : vector<1x128xf32>
      %210 = vector.extract_strided_slice %206 {offsets = [0, 0], sizes = [4, 128], strides = [1, 1]} : vector<8x128xf32> to vector<4x128xf32>
      %c1 = arith.constant 1 : index
      %c0_92 = arith.constant 0 : index
      %211 = vector.load %arg6[%c1, %c0_92] : memref<5x128xf32, #tpu.memory_space<vmem>>, vector<4x128xf32>
      %212 = arith.addf %210, %211 : vector<4x128xf32>
      %213 = vector.extract_strided_slice %206 {offsets = [4, 0], sizes = [4, 128], strides = [1, 1]} : vector<8x128xf32> to vector<4x128xf32>
      %c1_93 = arith.constant 1 : index
      %c0_94 = arith.constant 0 : index
      %214 = vector.load %arg6[%c1_93, %c0_94] : memref<5x128xf32, #tpu.memory_space<vmem>>, vector<4x128xf32>
      %215 = arith.addf %213, %214 : vector<4x128xf32>
      %216 = tpu.concatenate %209, %212, %209, %215 in 0 : vector<1x128xf32>, vector<4x128xf32>, vector<1x128xf32>, vector<4x128xf32> -> vector<10x128xf32>
      %c0_95 = arith.constant 0 : index
      %c0_96 = arith.constant 0 : index
      %217 = vector.load %arg23[%c0_95, %c0_96] : memref<10x128xf32, #tpu.memory_space<vmem>>, vector<10x128xf32>
      tpu.vector_store %arg23[%c0_95, %c0_96], %216 {strides = array<i32>} : memref<10x128xf32, #tpu.memory_space<vmem>>, vector<10x128xf32>,
    } else {
    }
    %c0 = arith.constant 0 : index
    %c0_1 = arith.constant 0 : index
    %3 = vector.load %arg23[%c0, %c0_1] : memref<10x128xf32, #tpu.memory_space<vmem>>, vector<10x128xf32>
    %c0_2 = arith.constant 0 : index
    %c0_3 = arith.constant 0 : index
    %c0_4 = arith.constant 0 : index
    %4 = vector.load %arg8[%c0_2, %c0_3, %c0_4] : memref<1x1x128xf32, #tpu.memory_space<vmem>>, vector<1x1x128xf32>
    %5 = vector.shape_cast %4 : vector<1x1x128xf32> to vector<1x128xf32>
    %c0_5 = arith.constant 0 : index
    %c0_6 = arith.constant 0 : index
    %c0_7 = arith.constant 0 : index
    %6 = vector.load %arg9[%c0_5, %c0_6, %c0_7] : memref<1x1x128xf32, #tpu.memory_space<vmem>>, vector<1x1x128xf32>
    %7 = vector.shape_cast %6 : vector<1x1x128xf32> to vector<1x128xf32>
    %cst = arith.constant dense<0.000000e+00> : vector<10xf32>
    %8 = vector.multi_reduction <add>, %3, %cst [1] : vector<10x128xf32> to vector<10xf32>
    %9 = vector.shape_cast %8 : vector<10xf32> to vector<10x1xf32>
    %cst_8 = arith.constant 1.280000e+02 : f32
    %10 = vector.broadcast %cst_8 : f32 to vector<10x1xf32>
    %11 = arith.divf %9, %10 : vector<10x1xf32>
    %12 = vector.broadcast %11 : vector<10x1xf32> to vector<10x128xf32>
    %13 = arith.subf %3, %12 : vector<10x128xf32>
    %14 = arith.mulf %13, %13 : vector<10x128xf32>
    %cst_9 = arith.constant dense<0.000000e+00> : vector<10xf32>
    %15 = vector.multi_reduction <add>, %14, %cst_9 [1] : vector<10x128xf32> to vector<10xf32>
    %16 = vector.shape_cast %15 : vector<10xf32> to vector<10x1xf32>
    %cst_10 = arith.constant 1.280000e+02 : f32
    %17 = vector.broadcast %cst_10 : f32 to vector<10x1xf32>
    %18 = arith.divf %16, %17 : vector<10x1xf32>
    %19 = vector.broadcast %11 : vector<10x1xf32> to vector<10x128xf32>
    %20 = arith.subf %3, %19 : vector<10x128xf32>
    %cst_11 = arith.constant 9.99999997E-7 : f32
    %21 = vector.broadcast %cst_11 : f32 to vector<10x1xf32>
    %22 = arith.addf %18, %21 : vector<10x1xf32>
    %23 = math.rsqrt %22 : vector<10x1xf32>
    %24 = vector.broadcast %23 : vector<10x1xf32> to vector<10x128xf32>
    %25 = arith.mulf %20, %24 : vector<10x128xf32>
    %26 = vector.broadcast %5 : vector<1x128xf32> to vector<10x128xf32>
    %27 = arith.mulf %25, %26 : vector<10x128xf32>
    %28 = vector.broadcast %7 : vector<1x128xf32> to vector<10x128xf32>
    %29 = arith.addf %27, %28 : vector<10x128xf32>
    %c0_12 = arith.constant 0 : index
    %c0_13 = arith.constant 0 : index
    %c0_14 = arith.constant 0 : index
    %30 = vector.load %arg10[%c0_12, %c0_13, %c0_14] : memref<1x128x384xbf16, #tpu.memory_space<vmem>>, vector<1x128x384xbf16>
    %31 = vector.shape_cast %30 : vector<1x128x384xbf16> to vector<128x384xbf16>
    %32 = arith.truncf %29 : vector<10x128xf32> to vector<10x128xbf16>
    %cst_15 = arith.constant dense<0.000000e+00> : vector<10x384xf32>
    %33 = tpu.matmul %32, %31, %cst_15 {dimension_numbers = #tpu.dot_dimension_numbers<[1], [0], [0], [1], [0, 0, 1, 1], [], []>} : vector<10x128xbf16>, vector<128x384xbf16>, vector<10x384xf32> -> vector<10x384xf32>
    %c0_16 = arith.constant 0 : index
    %c0_17 = arith.constant 0 : index
    %c0_18 = arith.constant 0 : index
    %34 = vector.load %arg11[%c0_16, %c0_17, %c0_18] : memref<1x1x384xf32, #tpu.memory_space<vmem>>, vector<1x1x384xf32>
    %35 = vector.shape_cast %34 : vector<1x1x384xf32> to vector<1x384xf32>
    %36 = vector.broadcast %35 : vector<1x384xf32> to vector<10x384xf32>
    %37 = arith.addf %33, %36 : vector<10x384xf32>
    %38 = vector.extract_strided_slice %37 {offsets = [0, 0], sizes = [10, 128], strides = [1, 1]} : vector<10x384xf32> to vector<10x128xf32>
    %39 = vector.extract_strided_slice %37 {offsets = [0, 128], sizes = [10, 128], strides = [1, 1]} : vector<10x384xf32> to vector<10x128xf32>
    %40 = vector.extract_strided_slice %37 {offsets = [0, 256], sizes = [10, 128], strides = [1, 1]} : vector<10x384xf32> to vector<10x128xf32>
    %c0_19 = arith.constant 0 : index
    %c0_20 = arith.constant 0 : index
    %41 = vector.load %arg7[%c0_19, %c0_20] : memref<10x10xf32, #tpu.memory_space<vmem>>, vector<10x10xf32>
    %42 = vector.extract_strided_slice %38 {offsets = [0, 0], sizes = [10, 32], strides = [1, 1]} : vector<10x128xf32> to vector<10x32xf32>
    %43 = arith.truncf %42 : vector<10x32xf32> to vector<10x32xbf16>
    %44 = vector.extract_strided_slice %39 {offsets = [0, 0], sizes = [10, 32], strides = [1, 1]} : vector<10x128xf32> to vector<10x32xf32>
    %45 = arith.truncf %44 : vector<10x32xf32> to vector<10x32xbf16>
    %cst_21 = arith.constant dense<0.000000e+00> : vector<10x10xf32>
    %46 = tpu.matmul %43, %45, %cst_21 {dimension_numbers = #tpu.dot_dimension_numbers<[1], [1], [0], [0], [0, 0, 1, 0], [], []>} : vector<10x32xbf16>, vector<10x32xbf16>, vector<10x10xf32> -> vector<10x10xf32>
    %cst_22 = arith.constant 0.176776692 : f32
    %47 = vector.broadcast %cst_22 : f32 to vector<10x10xf32>
    %48 = arith.mulf %46, %47 : vector<10x10xf32>
    %49 = arith.addf %48, %41 : vector<10x10xf32>
    %cst_23 = arith.constant dense<0xFF800000> : vector<10xf32>
    %50 = vector.multi_reduction <maximumf>, %49, %cst_23 [1] : vector<10x10xf32> to vector<10xf32>
    %51 = vector.shape_cast %50 : vector<10xf32> to vector<10x1xf32>
    %52 = vector.broadcast %51 : vector<10x1xf32> to vector<10x10xf32>
    %53 = arith.subf %49, %52 : vector<10x10xf32>
    %54 = math.exp %53 : vector<10x10xf32>
    %cst_24 = arith.constant dense<0.000000e+00> : vector<10xf32>
    %55 = vector.multi_reduction <add>, %54, %cst_24 [1] : vector<10x10xf32> to vector<10xf32>
    %56 = vector.shape_cast %55 : vector<10xf32> to vector<10x1xf32>
    %57 = tpu.reciprocal %56 {approx = true} : vector<10x1xf32> -> vector<10x1xf32>
    %58 = vector.broadcast %57 : vector<10x1xf32> to vector<10x10xf32>
    %59 = arith.mulf %54, %58 : vector<10x10xf32>
    %60 = vector.extract_strided_slice %40 {offsets = [0, 0], sizes = [10, 32], strides = [1, 1]} : vector<10x128xf32> to vector<10x32xf32>
    %61 = arith.truncf %59 : vector<10x10xf32> to vector<10x10xbf16>
    %62 = arith.truncf %60 : vector<10x32xf32> to vector<10x32xbf16>
    %cst_25 = arith.constant dense<0.000000e+00> : vector<10x32xf32>
    %63 = tpu.matmul %61, %62, %cst_25 {dimension_numbers = #tpu.dot_dimension_numbers<[1], [0], [0], [1], [0, 0, 1, 1], [], []>} : vector<10x10xbf16>, vector<10x32xbf16>, vector<10x32xf32> -> vector<10x32xf32>
    %64 = vector.extract_strided_slice %38 {offsets = [0, 32], sizes = [10, 32], strides = [1, 1]} : vector<10x128xf32> to vector<10x32xf32>
    %65 = arith.truncf %64 : vector<10x32xf32> to vector<10x32xbf16>
    %66 = vector.extract_strided_slice %39 {offsets = [0, 32], sizes = [10, 32], strides = [1, 1]} : vector<10x128xf32> to vector<10x32xf32>
    %67 = arith.truncf %66 : vector<10x32xf32> to vector<10x32xbf16>
    %cst_26 = arith.constant dense<0.000000e+00> : vector<10x10xf32>
    %68 = tpu.matmul %65, %67, %cst_26 {dimension_numbers = #tpu.dot_dimension_numbers<[1], [1], [0], [0], [0, 0, 1, 0], [], []>} : vector<10x32xbf16>, vector<10x32xbf16>, vector<10x10xf32> -> vector<10x10xf32>
    %cst_27 = arith.constant 0.176776692 : f32
    %69 = vector.broadcast %cst_27 : f32 to vector<10x10xf32>
    %70 = arith.mulf %68, %69 : vector<10x10xf32>
    %71 = arith.addf %70, %41 : vector<10x10xf32>
    %cst_28 = arith.constant dense<0xFF800000> : vector<10xf32>
    %72 = vector.multi_reduction <maximumf>, %71, %cst_28 [1] : vector<10x10xf32> to vector<10xf32>
    %73 = vector.shape_cast %72 : vector<10xf32> to vector<10x1xf32>
    %74 = vector.broadcast %73 : vector<10x1xf32> to vector<10x10xf32>
    %75 = arith.subf %71, %74 : vector<10x10xf32>
    %76 = math.exp %75 : vector<10x10xf32>
    %cst_29 = arith.constant dense<0.000000e+00> : vector<10xf32>
    %77 = vector.multi_reduction <add>, %76, %cst_29 [1] : vector<10x10xf32> to vector<10xf32>
    %78 = vector.shape_cast %77 : vector<10xf32> to vector<10x1xf32>
    %79 = tpu.reciprocal %78 {approx = true} : vector<10x1xf32> -> vector<10x1xf32>
    %80 = vector.broadcast %79 : vector<10x1xf32> to vector<10x10xf32>
    %81 = arith.mulf %76, %80 : vector<10x10xf32>
    %82 = vector.extract_strided_slice %40 {offsets = [0, 32], sizes = [10, 32], strides = [1, 1]} : vector<10x128xf32> to vector<10x32xf32>
    %83 = arith.truncf %81 : vector<10x10xf32> to vector<10x10xbf16>
    %84 = arith.truncf %82 : vector<10x32xf32> to vector<10x32xbf16>
    %cst_30 = arith.constant dense<0.000000e+00> : vector<10x32xf32>
    %85 = tpu.matmul %83, %84, %cst_30 {dimension_numbers = #tpu.dot_dimension_numbers<[1], [0], [0], [1], [0, 0, 1, 1], [], []>} : vector<10x10xbf16>, vector<10x32xbf16>, vector<10x32xf32> -> vector<10x32xf32>
    %86 = vector.extract_strided_slice %38 {offsets = [0, 64], sizes = [10, 32], strides = [1, 1]} : vector<10x128xf32> to vector<10x32xf32>
    %87 = arith.truncf %86 : vector<10x32xf32> to vector<10x32xbf16>
    %88 = vector.extract_strided_slice %39 {offsets = [0, 64], sizes = [10, 32], strides = [1, 1]} : vector<10x128xf32> to vector<10x32xf32>
    %89 = arith.truncf %88 : vector<10x32xf32> to vector<10x32xbf16>
    %cst_31 = arith.constant dense<0.000000e+00> : vector<10x10xf32>
    %90 = tpu.matmul %87, %89, %cst_31 {dimension_numbers = #tpu.dot_dimension_numbers<[1], [1], [0], [0], [0, 0, 1, 0], [], []>} : vector<10x32xbf16>, vector<10x32xbf16>, vector<10x10xf32> -> vector<10x10xf32>
    %cst_32 = arith.constant 0.176776692 : f32
    %91 = vector.broadcast %cst_32 : f32 to vector<10x10xf32>
    %92 = arith.mulf %90, %91 : vector<10x10xf32>
    %93 = arith.addf %92, %41 : vector<10x10xf32>
    %cst_33 = arith.constant dense<0xFF800000> : vector<10xf32>
    %94 = vector.multi_reduction <maximumf>, %93, %cst_33 [1] : vector<10x10xf32> to vector<10xf32>
    %95 = vector.shape_cast %94 : vector<10xf32> to vector<10x1xf32>
    %96 = vector.broadcast %95 : vector<10x1xf32> to vector<10x10xf32>
    %97 = arith.subf %93, %96 : vector<10x10xf32>
    %98 = math.exp %97 : vector<10x10xf32>
    %cst_34 = arith.constant dense<0.000000e+00> : vector<10xf32>
    %99 = vector.multi_reduction <add>, %98, %cst_34 [1] : vector<10x10xf32> to vector<10xf32>
    %100 = vector.shape_cast %99 : vector<10xf32> to vector<10x1xf32>
    %101 = tpu.reciprocal %100 {approx = true} : vector<10x1xf32> -> vector<10x1xf32>
    %102 = vector.broadcast %101 : vector<10x1xf32> to vector<10x10xf32>
    %103 = arith.mulf %98, %102 : vector<10x10xf32>
    %104 = vector.extract_strided_slice %40 {offsets = [0, 64], sizes = [10, 32], strides = [1, 1]} : vector<10x128xf32> to vector<10x32xf32>
    %105 = arith.truncf %103 : vector<10x10xf32> to vector<10x10xbf16>
    %106 = arith.truncf %104 : vector<10x32xf32> to vector<10x32xbf16>
    %cst_35 = arith.constant dense<0.000000e+00> : vector<10x32xf32>
    %107 = tpu.matmul %105, %106, %cst_35 {dimension_numbers = #tpu.dot_dimension_numbers<[1], [0], [0], [1], [0, 0, 1, 1], [], []>} : vector<10x10xbf16>, vector<10x32xbf16>, vector<10x32xf32> -> vector<10x32xf32>
    %108 = vector.extract_strided_slice %38 {offsets = [0, 96], sizes = [10, 32], strides = [1, 1]} : vector<10x128xf32> to vector<10x32xf32>
    %109 = arith.truncf %108 : vector<10x32xf32> to vector<10x32xbf16>
    %110 = vector.extract_strided_slice %39 {offsets = [0, 96], sizes = [10, 32], strides = [1, 1]} : vector<10x128xf32> to vector<10x32xf32>
    %111 = arith.truncf %110 : vector<10x32xf32> to vector<10x32xbf16>
    %cst_36 = arith.constant dense<0.000000e+00> : vector<10x10xf32>
    %112 = tpu.matmul %109, %111, %cst_36 {dimension_numbers = #tpu.dot_dimension_numbers<[1], [1], [0], [0], [0, 0, 1, 0], [], []>} : vector<10x32xbf16>, vector<10x32xbf16>, vector<10x10xf32> -> vector<10x10xf32>
    %cst_37 = arith.constant 0.176776692 : f32
    %113 = vector.broadcast %cst_37 : f32 to vector<10x10xf32>
    %114 = arith.mulf %112, %113 : vector<10x10xf32>
    %115 = arith.addf %114, %41 : vector<10x10xf32>
    %cst_38 = arith.constant dense<0xFF800000> : vector<10xf32>
    %116 = vector.multi_reduction <maximumf>, %115, %cst_38 [1] : vector<10x10xf32> to vector<10xf32>
    %117 = vector.shape_cast %116 : vector<10xf32> to vector<10x1xf32>
    %118 = vector.broadcast %117 : vector<10x1xf32> to vector<10x10xf32>
    %119 = arith.subf %115, %118 : vector<10x10xf32>
    %120 = math.exp %119 : vector<10x10xf32>
    %cst_39 = arith.constant dense<0.000000e+00> : vector<10xf32>
    %121 = vector.multi_reduction <add>, %120, %cst_39 [1] : vector<10x10xf32> to vector<10xf32>
    %122 = vector.shape_cast %121 : vector<10xf32> to vector<10x1xf32>
    %123 = tpu.reciprocal %122 {approx = true} : vector<10x1xf32> -> vector<10x1xf32>
    %124 = vector.broadcast %123 : vector<10x1xf32> to vector<10x10xf32>
    %125 = arith.mulf %120, %124 : vector<10x10xf32>
    %126 = vector.extract_strided_slice %40 {offsets = [0, 96], sizes = [10, 32], strides = [1, 1]} : vector<10x128xf32> to vector<10x32xf32>
    %127 = arith.truncf %125 : vector<10x10xf32> to vector<10x10xbf16>
    %128 = arith.truncf %126 : vector<10x32xf32> to vector<10x32xbf16>
    %cst_40 = arith.constant dense<0.000000e+00> : vector<10x32xf32>
    %129 = tpu.matmul %127, %128, %cst_40 {dimension_numbers = #tpu.dot_dimension_numbers<[1], [0], [0], [1], [0, 0, 1, 1], [], []>} : vector<10x10xbf16>, vector<10x32xbf16>, vector<10x32xf32> -> vector<10x32xf32>
    %130 = tpu.concatenate %63, %85, %107, %129 in 1 : vector<10x32xf32>, vector<10x32xf32>, vector<10x32xf32>, vector<10x32xf32> -> vector<10x128xf32>
    %c0_41 = arith.constant 0 : index
    %c0_42 = arith.constant 0 : index
    %c0_43 = arith.constant 0 : index
    %131 = vector.load %arg12[%c0_41, %c0_42, %c0_43] : memref<1x128x128xbf16, #tpu.memory_space<vmem>>, vector<1x128x128xbf16>
    %132 = vector.shape_cast %131 : vector<1x128x128xbf16> to vector<128x128xbf16>
    %133 = arith.truncf %130 : vector<10x128xf32> to vector<10x128xbf16>
    %cst_44 = arith.constant dense<0.000000e+00> : vector<10x128xf32>
    %134 = tpu.matmul %133, %132, %cst_44 {dimension_numbers = #tpu.dot_dimension_numbers<[1], [0], [0], [1], [0, 0, 1, 1], [], []>} : vector<10x128xbf16>, vector<128x128xbf16>, vector<10x128xf32> -> vector<10x128xf32>
    %135 = arith.addf %3, %134 : vector<10x128xf32>
    %c0_45 = arith.constant 0 : index
    %c0_46 = arith.constant 0 : index
    %c0_47 = arith.constant 0 : index
    %136 = vector.load %arg13[%c0_45, %c0_46, %c0_47] : memref<1x1x128xf32, #tpu.memory_space<vmem>>, vector<1x1x128xf32>
    %137 = vector.shape_cast %136 : vector<1x1x128xf32> to vector<1x128xf32>
    %138 = vector.broadcast %137 : vector<1x128xf32> to vector<10x128xf32>
    %139 = arith.addf %135, %138 : vector<10x128xf32>
    %c0_48 = arith.constant 0 : index
    %c0_49 = arith.constant 0 : index
    %c0_50 = arith.constant 0 : index
    %140 = vector.load %arg14[%c0_48, %c0_49, %c0_50] : memref<1x1x128xf32, #tpu.memory_space<vmem>>, vector<1x1x128xf32>
    %141 = vector.shape_cast %140 : vector<1x1x128xf32> to vector<1x128xf32>
    %c0_51 = arith.constant 0 : index
    %c0_52 = arith.constant 0 : index
    %c0_53 = arith.constant 0 : index
    %142 = vector.load %arg15[%c0_51, %c0_52, %c0_53] : memref<1x1x128xf32, #tpu.memory_space<vmem>>, vector<1x1x128xf32>
    %143 = vector.shape_cast %142 : vector<1x1x128xf32> to vector<1x128xf32>
    %cst_54 = arith.constant dense<0.000000e+00> : vector<10xf32>
    %144 = vector.multi_reduction <add>, %139, %cst_54 [1] : vector<10x128xf32> to vector<10xf32>
    %145 = vector.shape_cast %144 : vector<10xf32> to vector<10x1xf32>
    %cst_55 = arith.constant 1.280000e+02 : f32
    %146 = vector.broadcast %cst_55 : f32 to vector<10x1xf32>
    %147 = arith.divf %145, %146 : vector<10x1xf32>
    %148 = vector.broadcast %147 : vector<10x1xf32> to vector<10x128xf32>
    %149 = arith.subf %139, %148 : vector<10x128xf32>
    %150 = arith.mulf %149, %149 : vector<10x128xf32>
    %cst_56 = arith.constant dense<0.000000e+00> : vector<10xf32>
    %151 = vector.multi_reduction <add>, %150, %cst_56 [1] : vector<10x128xf32> to vector<10xf32>
    %152 = vector.shape_cast %151 : vector<10xf32> to vector<10x1xf32>
    %cst_57 = arith.constant 1.280000e+02 : f32
    %153 = vector.broadcast %cst_57 : f32 to vector<10x1xf32>
    %154 = arith.divf %152, %153 : vector<10x1xf32>
    %155 = vector.broadcast %147 : vector<10x1xf32> to vector<10x128xf32>
    %156 = arith.subf %139, %155 : vector<10x128xf32>
    %cst_58 = arith.constant 9.99999997E-7 : f32
    %157 = vector.broadcast %cst_58 : f32 to vector<10x1xf32>
    %158 = arith.addf %154, %157 : vector<10x1xf32>
    %159 = math.rsqrt %158 : vector<10x1xf32>
    %160 = vector.broadcast %159 : vector<10x1xf32> to vector<10x128xf32>
    %161 = arith.mulf %156, %160 : vector<10x128xf32>
    %162 = vector.broadcast %141 : vector<1x128xf32> to vector<10x128xf32>
    %163 = arith.mulf %161, %162 : vector<10x128xf32>
    %164 = vector.broadcast %143 : vector<1x128xf32> to vector<10x128xf32>
    %165 = arith.addf %163, %164 : vector<10x128xf32>
    %c0_59 = arith.constant 0 : index
    %c0_60 = arith.constant 0 : index
    %c0_61 = arith.constant 0 : index
    %166 = vector.load %arg16[%c0_59, %c0_60, %c0_61] : memref<1x128x512xbf16, #tpu.memory_space<vmem>>, vector<1x128x512xbf16>
    %167 = vector.shape_cast %166 : vector<1x128x512xbf16> to vector<128x512xbf16>
    %168 = arith.truncf %165 : vector<10x128xf32> to vector<10x128xbf16>
    %cst_62 = arith.constant dense<0.000000e+00> : vector<10x512xf32>
    %169 = tpu.matmul %168, %167, %cst_62 {dimension_numbers = #tpu.dot_dimension_numbers<[1], [0], [0], [1], [0, 0, 1, 1], [], []>} : vector<10x128xbf16>, vector<128x512xbf16>, vector<10x512xf32> -> vector<10x512xf32>
    %c0_63 = arith.constant 0 : index
    %c0_64 = arith.constant 0 : index
    %c0_65 = arith.constant 0 : index
    %170 = vector.load %arg17[%c0_63, %c0_64, %c0_65] : memref<1x1x512xf32, #tpu.memory_space<vmem>>, vector<1x1x512xf32>
    %171 = vector.shape_cast %170 : vector<1x1x512xf32> to vector<1x512xf32>
    %172 = vector.broadcast %171 : vector<1x512xf32> to vector<10x512xf32>
    %173 = arith.addf %169, %172 : vector<10x512xf32>
    %174 = arith.mulf %173, %173 : vector<10x512xf32>
    %175 = arith.mulf %173, %174 : vector<10x512xf32>
    %cst_66 = arith.constant 4.471500e-02 : f32
    %176 = vector.broadcast %cst_66 : f32 to vector<10x512xf32>
    %177 = arith.mulf %176, %175 : vector<10x512xf32>
    %178 = arith.addf %173, %177 : vector<10x512xf32>
    %cst_67 = arith.constant 0.797884583 : f32
    %179 = vector.broadcast %cst_67 : f32 to vector<10x512xf32>
    %180 = arith.mulf %179, %178 : vector<10x512xf32>
    %181 = math.tanh %180 : vector<10x512xf32>
    %cst_68 = arith.constant 1.000000e+00 : f32
    %182 = vector.broadcast %cst_68 : f32 to vector<10x512xf32>
    %183 = arith.addf %182, %181 : vector<10x512xf32>
    %cst_69 = arith.constant 5.000000e-01 : f32
    %184 = vector.broadcast %cst_69 : f32 to vector<10x512xf32>
    %185 = arith.mulf %184, %183 : vector<10x512xf32>
    %186 = arith.mulf %173, %185 : vector<10x512xf32>
    %c0_70 = arith.constant 0 : index
    %c0_71 = arith.constant 0 : index
    %c0_72 = arith.constant 0 : index
    %187 = vector.load %arg18[%c0_70, %c0_71, %c0_72] : memref<1x512x128xbf16, #tpu.memory_space<vmem>>, vector<1x512x128xbf16>
    %188 = vector.shape_cast %187 : vector<1x512x128xbf16> to vector<512x128xbf16>
    %189 = arith.truncf %186 : vector<10x512xf32> to vector<10x512xbf16>
    %cst_73 = arith.constant dense<0.000000e+00> : vector<10x128xf32>
    %190 = tpu.matmul %189, %188, %cst_73 {dimension_numbers = #tpu.dot_dimension_numbers<[1], [0], [0], [1], [0, 0, 1, 1], [], []>} : vector<10x512xbf16>, vector<512x128xbf16>, vector<10x128xf32> -> vector<10x128xf32>
    %191 = arith.addf %139, %190 : vector<10x128xf32>
    %c0_74 = arith.constant 0 : index
    %c0_75 = arith.constant 0 : index
    %c0_76 = arith.constant 0 : index
    %192 = vector.load %arg19[%c0_74, %c0_75, %c0_76] : memref<1x1x128xf32, #tpu.memory_space<vmem>>, vector<1x1x128xf32>
    %193 = vector.shape_cast %192 : vector<1x1x128xf32> to vector<1x128xf32>
    %194 = vector.broadcast %193 : vector<1x128xf32> to vector<10x128xf32>
    %195 = arith.addf %191, %194 : vector<10x128xf32>
    %c0_77 = arith.constant 0 : index
    %c0_78 = arith.constant 0 : index
    %196 = vector.load %arg23[%c0_77, %c0_78] : memref<10x128xf32, #tpu.memory_space<vmem>>, vector<10x128xf32>
    tpu.vector_store %arg23[%c0_77, %c0_78], %195 {strides = array<i32>} : memref<10x128xf32, #tpu.memory_space<vmem>>, vector<10x128xf32>,
    %c1_i32 = arith.constant 1 : i32
    %197 = arith.cmpi eq, %arg1, %c1_i32 : i32
    %198 = arith.extui %197 : i1 to i32
    %c0_i32_79 = arith.constant 0 : i32
    %199 = arith.cmpi ne, %198, %c0_i32_79 : i32
    scf.if %199 {
      %c0_80 = arith.constant 0 : index
      %c0_81 = arith.constant 0 : index
      %200 = vector.load %arg20[%c0_80, %c0_81] : memref<1x128xf32, #tpu.memory_space<vmem>>, vector<1x128xf32>
      %c0_82 = arith.constant 0 : index
      %c0_83 = arith.constant 0 : index
      %201 = vector.load %arg21[%c0_82, %c0_83] : memref<1x128xf32, #tpu.memory_space<vmem>>, vector<1x128xf32>
      %cst_84 = arith.constant dense<0.000000e+00> : vector<10xf32>
      %202 = vector.multi_reduction <add>, %195, %cst_84 [1] : vector<10x128xf32> to vector<10xf32>
      %203 = vector.shape_cast %202 : vector<10xf32> to vector<10x1xf32>
      %cst_85 = arith.constant 1.280000e+02 : f32
      %204 = vector.broadcast %cst_85 : f32 to vector<10x1xf32>
      %205 = arith.divf %203, %204 : vector<10x1xf32>
      %206 = vector.broadcast %205 : vector<10x1xf32> to vector<10x128xf32>
      %207 = arith.subf %195, %206 : vector<10x128xf32>
      %208 = arith.mulf %207, %207 : vector<10x128xf32>
      %cst_86 = arith.constant dense<0.000000e+00> : vector<10xf32>
      %209 = vector.multi_reduction <add>, %208, %cst_86 [1] : vector<10x128xf32> to vector<10xf32>
      %210 = vector.shape_cast %209 : vector<10xf32> to vector<10x1xf32>
      %cst_87 = arith.constant 1.280000e+02 : f32
      %211 = vector.broadcast %cst_87 : f32 to vector<10x1xf32>
      %212 = arith.divf %210, %211 : vector<10x1xf32>
      %213 = vector.broadcast %205 : vector<10x1xf32> to vector<10x128xf32>
      %214 = arith.subf %195, %213 : vector<10x128xf32>
      %cst_88 = arith.constant 9.99999997E-7 : f32
      %215 = vector.broadcast %cst_88 : f32 to vector<10x1xf32>
      %216 = arith.addf %212, %215 : vector<10x1xf32>
      %217 = math.rsqrt %216 : vector<10x1xf32>
      %218 = vector.broadcast %217 : vector<10x1xf32> to vector<10x128xf32>
      %219 = arith.mulf %214, %218 : vector<10x128xf32>
      %220 = vector.broadcast %200 : vector<1x128xf32> to vector<10x128xf32>
      %221 = arith.mulf %219, %220 : vector<10x128xf32>
      %222 = vector.broadcast %201 : vector<1x128xf32> to vector<10x128xf32>
      %223 = arith.addf %221, %222 : vector<10x128xf32>
      %c0_89 = arith.constant 0 : index
      %c0_90 = arith.constant 0 : index
      %c0_91 = arith.constant 0 : index
      %224 = vector.load %arg22[%c0_89, %c0_90, %c0_91] : memref<1x10x128xf32, #tpu.memory_space<vmem>>, vector<1x10x128xf32>
      %225 = vector.shape_cast %224 : vector<1x10x128xf32> to vector<10x128xf32>
      %226 = vector.shape_cast %223 : vector<10x128xf32> to vector<1x10x128xf32>
      tpu.vector_store %arg22[%c0_89, %c0_90, %c0_91], %226 {strides = array<i32>} : memref<1x10x128xf32, #tpu.memory_space<vmem>>, vector<1x10x128xf32>,
    } else {
    }
    return
  }
  func.func @transform_0(%arg0: i32, %arg1: i32) -> (i32, i32, i32) {
    %c0_i32 = arith.constant 0 : i32
    %c0_i32_0 = arith.constant 0 : i32
    %c0_i32_1 = arith.constant 0 : i32
    return %arg0, %c0_i32, %c0_i32_0 : i32, i32, i32
  }
  func.func @transform_1(%arg0: i32, %arg1: i32) -> (i32, i32) {
    %c0_i32 = arith.constant 0 : i32
    %c0_i32_0 = arith.constant 0 : i32
    %c0_i32_1 = arith.constant 0 : i32
    return %c0_i32, %c0_i32_0 : i32, i32
  }
  func.func @transform_2(%arg0: i32, %arg1: i32) -> (i32, i32) {
    %c0_i32 = arith.constant 0 : i32
    %c0_i32_0 = arith.constant 0 : i32
    %c0_i32_1 = arith.constant 0 : i32
    return %c0_i32, %c0_i32_0 : i32, i32
  }
  func.func @transform_3(%arg0: i32, %arg1: i32) -> (i32, i32) {
    %c0_i32 = arith.constant 0 : i32
    %c0_i32_0 = arith.constant 0 : i32
    %c0_i32_1 = arith.constant 0 : i32
    return %c0_i32, %c0_i32_0 : i32, i32
  }
  func.func @transform_4(%arg0: i32, %arg1: i32) -> (i32, i32) {
    %c0_i32 = arith.constant 0 : i32
    %c0_i32_0 = arith.constant 0 : i32
    %c0_i32_1 = arith.constant 0 : i32
    return %c0_i32, %c0_i32_0 : i32, i32
  }
  func.func @transform_5(%arg0: i32, %arg1: i32) -> (i32, i32) {
    %c0_i32 = arith.constant 0 : i32
    %c0_i32_0 = arith.constant 0 : i32
    %c0_i32_1 = arith.constant 0 : i32
    return %c0_i32, %c0_i32_0 : i32, i32
  }
  func.func @transform_6(%arg0: i32, %arg1: i32) -> (i32, i32, i32) {
    %c0_i32 = arith.constant 0 : i32
    %c0_i32_0 = arith.constant 0 : i32
    %c0_i32_1 = arith.constant 0 : i32
    return %arg1, %c0_i32, %c0_i32_0 : i32, i32, i32
  }
  func.func @transform_7(%arg0: i32, %arg1: i32) -> (i32, i32, i32) {
    %c0_i32 = arith.constant 0 : i32
    %c0_i32_0 = arith.constant 0 : i32
    %c0_i32_1 = arith.constant 0 : i32
    return %arg1, %c0_i32, %c0_i32_0 : i32, i32, i32
  }
  func.func @transform_8(%arg0: i32, %arg1: i32) -> (i32, i32, i32) {
    %c0_i32 = arith.constant 0 : i32
    %c0_i32_0 = arith.constant 0 : i32
    %c0_i32_1 = arith.constant 0 : i32
    return %arg1, %c0_i32, %c0_i32_0 : i32, i32, i32
  }
  func.func @transform_9(%arg0: i32, %arg1: i32) -> (i32, i32, i32) {
    %c0_i32 = arith.constant 0 : i32
    %c0_i32_0 = arith.constant 0 : i32
    %c0_i32_1 = arith.constant 0 : i32
    return %arg1, %c0_i32, %c0_i32_0 : i32, i32, i32
  }
  func.func @transform_10(%arg0: i32, %arg1: i32) -> (i32, i32, i32) {
    %c0_i32 = arith.constant 0 : i32
    %c0_i32_0 = arith.constant 0 : i32
    %c0_i32_1 = arith.constant 0 : i32
    return %arg1, %c0_i32, %c0_i32_0 : i32, i32, i32
  }
  func.func @transform_11(%arg0: i32, %arg1: i32) -> (i32, i32, i32) {
    %c0_i32 = arith.constant 0 : i32
    %c0_i32_0 = arith.constant 0 : i32
    %c0_i32_1 = arith.constant 0 : i32
    return %arg1, %c0_i32, %c0_i32_0 : i32, i32, i32
  }
  func.func @transform_12(%arg0: i32, %arg1: i32) -> (i32, i32, i32) {
    %c0_i32 = arith.constant 0 : i32
    %c0_i32_0 = arith.constant 0 : i32
    %c0_i32_1 = arith.constant 0 : i32
    return %arg1, %c0_i32, %c0_i32_0 : i32, i32, i32
  }
  func.func @transform_13(%arg0: i32, %arg1: i32) -> (i32, i32, i32) {
    %c0_i32 = arith.constant 0 : i32
    %c0_i32_0 = arith.constant 0 : i32
    %c0_i32_1 = arith.constant 0 : i32
    return %arg1, %c0_i32, %c0_i32_0 : i32, i32, i32
  }
  func.func @transform_14(%arg0: i32, %arg1: i32) -> (i32, i32, i32) {
    %c0_i32 = arith.constant 0 : i32
    %c0_i32_0 = arith.constant 0 : i32
    %c0_i32_1 = arith.constant 0 : i32
    return %arg1, %c0_i32, %c0_i32_0 : i32, i32, i32
  }
  func.func @transform_15(%arg0: i32, %arg1: i32) -> (i32, i32, i32) {
    %c0_i32 = arith.constant 0 : i32
    %c0_i32_0 = arith.constant 0 : i32
    %c0_i32_1 = arith.constant 0 : i32
    return %arg1, %c0_i32, %c0_i32_0 : i32, i32, i32
  }
  func.func @transform_16(%arg0: i32, %arg1: i32) -> (i32, i32, i32) {
    %c0_i32 = arith.constant 0 : i32
    %c0_i32_0 = arith.constant 0 : i32
    %c0_i32_1 = arith.constant 0 : i32
    return %arg1, %c0_i32, %c0_i32_0 : i32, i32, i32
  }
  func.func @transform_17(%arg0: i32, %arg1: i32) -> (i32, i32, i32) {
    %c0_i32 = arith.constant 0 : i32
    %c0_i32_0 = arith.constant 0 : i32
    %c0_i32_1 = arith.constant 0 : i32
    return %arg1, %c0_i32, %c0_i32_0 : i32, i32, i32
  }
  func.func @transform_18(%arg0: i32, %arg1: i32) -> (i32, i32) {
    %c0_i32 = arith.constant 0 : i32
    %c0_i32_0 = arith.constant 0 : i32
    %c0_i32_1 = arith.constant 0 : i32
    return %c0_i32, %c0_i32_0 : i32, i32
  }
  func.func @transform_19(%arg0: i32, %arg1: i32) -> (i32, i32) {
    %c0_i32 = arith.constant 0 : i32
    %c0_i32_0 = arith.constant 0 : i32
    %c0_i32_1 = arith.constant 0 : i32
    return %c0_i32, %c0_i32_0 : i32, i32
  }
  func.func @transform_20(%arg0: i32, %arg1: i32) -> (i32, i32, i32) {
    %c0_i32 = arith.constant 0 : i32
    %c0_i32_0 = arith.constant 0 : i32
    %c0_i32_1 = arith.constant 0 : i32
    return %arg0, %c0_i32, %c0_i32_0 : i32, i32, i32
  }
}

</mosaic_0001>

<llo_original>
// kernel: tpu_custom_call.1
$region0: #{tpu_custom_call.1}
  #allocation0 [shape = 'u32[]', space=smem, size = 0x4, offset = 0x4, fixed_abs, tag = 'smem constant byte address 0x4 - core index']
  #allocation1 [shape = 'u32[144,128]{1,0:T(1,128)}', space=vmem, size = 0x12000, scoped, tag = 'internal scratch']
  #allocation2 [shape = 'f32[10,128]{1,0:T(8,128)}', space=vmem, size = 0x2000, scoped, tag = 'scratch operand']
  %s0 = inlined_call_operand.hbm [shape: bf16[2,8,192], index: 0, kind: input, shape index: {}]
  %s1 = inlined_call_operand.hbm [shape: bf16[192,128], index: 1, kind: input, shape index: {}]
  %s2 = inlined_call_operand.hbm [shape: f32[1,128], index: 2, kind: input, shape index: {}]
  %s3 = inlined_call_operand.hbm [shape: f32[1,128], index: 3, kind: input, shape index: {}]
  %s4 = inlined_call_operand.hbm [shape: f32[5,128], index: 4, kind: input, shape index: {}]
  %s5 = inlined_call_operand.vmem [shape: f32[10,10], index: 5, kind: input, shape index: {}]
  %s6 = inlined_call_operand.hbm [shape: f32[2,1,128], index: 6, kind: input, shape index: {}]
  %s7 = inlined_call_operand.hbm [shape: f32[2,1,128], index: 7, kind: input, shape index: {}]
  %s8 = inlined_call_operand.hbm [shape: bf16[2,128,384], index: 8, kind: input, shape index: {}]
  %s9 = inlined_call_operand.vmem [shape: f32[2,1,384], index: 9, kind: input, shape index: {}]
  %s10 = inlined_call_operand.hbm [shape: bf16[2,128,128], index: 10, kind: input, shape index: {}]
  %s11 = inlined_call_operand.vmem [shape: f32[2,1,128], index: 11, kind: input, shape index: {}]
  %s12 = inlined_call_operand.vmem [shape: f32[2,1,128], index: 12, kind: input, shape index: {}]
  %s13 = inlined_call_operand.vmem [shape: f32[2,1,128], index: 13, kind: input, shape index: {}]
  %s14 = inlined_call_operand.hbm [shape: bf16[2,128,512], index: 14, kind: input, shape index: {}]
  %s15 = inlined_call_operand.vmem [shape: f32[2,1,512], index: 15, kind: input, shape index: {}]
  %s16 = inlined_call_operand.hbm [shape: bf16[2,512,128], index: 16, kind: input, shape index: {}]
  %s17 = inlined_call_operand.vmem [shape: f32[2,1,128], index: 17, kind: input, shape index: {}]
  %s18 = inlined_call_operand.vmem [shape: f32[1,128], index: 18, kind: input, shape index: {}]
  %s19 = inlined_call_operand.vmem [shape: f32[1,128], index: 19, kind: input, shape index: {}]
  %s20 = inlined_call_operand.vmem [shape: f32[2,10,128], index: 20, kind: output, shape index: {}]
  %s21 = sld [smem:[#allocation0]]
  $region165: #{tpu_custom_call.1} parent=0
    _
  %s23 = ssub.s32 1, %s21
  %s24 = scalar_select 0, %s23, %s21
  $region1: #{tpu_custom_call.1} parent=0
    #allocation3 [shape = 'u8[8192]{0}', space=vmem, size = 0x2000, scoped, tag = 'input window, operand 0']
    #allocation4 [shape = 's32[2]{0}', space=sflag, size = 0x8, scoped, tag = 'scoped memory for tpu_custom_call.1']
    #allocation5 [shape = 'u8[49152]{0}', space=vmem, size = 0xc000, scoped, tag = 'input window, operand 1, single buffered']
    #allocation6 [shape = 's32[1]{0}', space=sflag, size = 0x4, scoped, tag = 'scoped memory for tpu_custom_call.1']
    #allocation7 [shape = 'u8[512]{0}', space=vmem, size = 0x400, scoped, tag = 'input window, operand 2, single buffered']
    #allocation8 [shape = 'u8[512]{0}', space=vmem, size = 0x400, scoped, tag = 'input window, operand 3, single buffered']
    #allocation9 [shape = 's32[1]{0}', space=sflag, size = 0x4, scoped, tag = 'scoped memory for tpu_custom_call.1']
    #allocation10 [shape = 'u8[4096]{0}', space=vmem, size = 0x1000, scoped, tag = 'input window, operand 4, single buffered']
    #allocation11 [shape = 'u8[1024]{0}', space=vmem, size = 0x400, scoped, tag = 'input window, operand 6']
    #allocation12 [shape = 's32[2]{0}', space=sflag, size = 0x8, scoped, tag = 'scoped memory for tpu_custom_call.1']
    #allocation13 [shape = 'u8[1024]{0}', space=vmem, size = 0x400, scoped, tag = 'input window, operand 7']
    #allocation14 [shape = 'u8[196608]{0}', space=vmem, size = 0x30000, scoped, tag = 'input window, operand 8']
    #allocation15 [shape = 's32[2]{0}', space=sflag, size = 0x8, scoped, tag = 'scoped memory for tpu_custom_call.1']
    #allocation16 [shape = 'u8[65536]{0}', space=vmem, size = 0x10000, scoped, tag = 'input window, operand 10']
    #allocation17 [shape = 'u8[262144]{0}', space=vmem, size = 0x40000, scoped, tag = 'input window, operand 14']
    #allocation18 [shape = 's32[2]{0}', space=sflag, size = 0x8, scoped, tag = 'scoped memory for tpu_custom_call.1']
    #allocation19 [shape = 'u8[262144]{0}', space=vmem, size = 0x40000, scoped, tag = 'input window, operand 16']
    %25 = vsyncpa [#allocation4], 0
    %s26 = scalar_lea.sflag [#allocation4], 1
    %27 = vsyncpa %s26, 0
    %28 = vsyncpa [#allocation6], 0
    %29 = vsyncpa [#allocation9], 0
    %30 = vsyncpa [#allocation12], 0
    %s31 = scalar_lea.sflag [#allocation12], 1
    %32 = vsyncpa %s31, 0
    %33 = vsyncpa [#allocation15], 0
    %s34 = scalar_lea.sflag [#allocation15], 1
    %35 = vsyncpa %s34, 0
    %36 = vsyncpa [#allocation18], 0
    %s37 = scalar_lea.sflag [#allocation18], 1
    %38 = vsyncpa %s37, 0
    loop: start=0, step=1, limit=6
    $region2: #{tpu_custom_call.1} parent=1 // loop_pre_header
      _
    $region3: #{tpu_custom_call.1} parent=1 // loop_header
      %s40 = sphi 0, %s44
      %p41 = scmp.ge.s32.totalorder %s40, 6
      %s47 = sphi 0, %s59
      %s48 = sphi 0, %s55
      %s49 = sphi 0, %s47
      %s50 = sphi 0, %s48
      %s51 = sphi 0, %s49
      %s52 = sphi 0, %s50
      %s62 = sphi 0, %s64
      %s65 = sphi 0, %s62
      %s66 = sphi 0, %s65
      %s82 = sphi 0, %s66
      %s86 = sphi 0, %s86
      %s88 = sphi 0, %s86
      %s89 = sphi 0, %s88
      %s103 = sphi 0, %s89
      %s107 = sphi 0, %s107
      %s109 = sphi 0, %s107
      %s110 = sphi 0, %s109
      %s124 = sphi 0, %s110
      %s128 = sphi 0, %s128
      %s130 = sphi 0, %s128
      %s131 = sphi 0, %s130
      %s145 = sphi 0, %s131
      %s149 = sphi 0, %s149
      %s151 = sphi 0, %s149
      %s152 = sphi 0, %s151
      %s166 = sphi 0, %s152
      %s170 = sphi 0, %s170
      %s172 = sphi 0, %s170
      %s173 = sphi 0, %s172
      %s187 = sphi 0, %s173
      %s193 = sphi 0, %s195
      %s196 = sphi 0, %s193
      %s197 = sphi 0, %s196
      %s213 = sphi 0, %s197
      %s219 = sphi 0, %s221
      %s222 = sphi 0, %s219
      %s223 = sphi 0, %s222
      %s239 = sphi 0, %s223
      %s245 = sphi 0, %s247
      %s248 = sphi 0, %s245
      %s249 = sphi 0, %s248
      %s265 = sphi 0, %s249
      %s271 = sphi 0, %s273
      %s274 = sphi 0, %s271
      %s275 = sphi 0, %s274
      %s291 = sphi 0, %s275
      %s297 = sphi 0, %s299
      %s300 = sphi 0, %s297
      %s301 = sphi 0, %s300
      %s317 = sphi 0, %s301
      %s323 = sphi 0, %s325
      %s326 = sphi 0, %s323
      %s327 = sphi 0, %s326
      %s343 = sphi 0, %s327
      %s349 = sphi 0, %s351
      %s352 = sphi 0, %s349
      %s353 = sphi 0, %s352
      %s369 = sphi 0, %s353
      %s375 = sphi 0, %s377
      %s378 = sphi 0, %s375
      %s379 = sphi 0, %s378
      %s395 = sphi 0, %s379
      %s401 = sphi 0, %s403
      %s404 = sphi 0, %s401
      %s405 = sphi 0, %s404
      %s421 = sphi 0, %s405
      %s427 = sphi 0, %s429
      %s430 = sphi 0, %s427
      %s431 = sphi 0, %s430
      %s447 = sphi 0, %s431
      %s453 = sphi 0, %s455
      %s456 = sphi 0, %s453
      %s457 = sphi 0, %s456
      %s473 = sphi 0, %s457
      %s479 = sphi 0, %s481
      %s482 = sphi 0, %s479
      %s483 = sphi 0, %s482
      %s499 = sphi 0, %s483
      %s503 = sphi 0, %s503
      %s505 = sphi 0, %s503
      %s506 = sphi 0, %s505
      %s520 = sphi 0, %s506
      %s524 = sphi 0, %s524
      %s526 = sphi 0, %s524
      %s527 = sphi 0, %s526
      %s541 = sphi 0, %s527
      %s547 = sphi 0, %s549
      %s550 = sphi 0, %s547
      %s551 = sphi 0, %s550
      %s567 = sphi 0, %s551
    $region4: #{tpu_custom_call.1} parent=1 // loop_header_branch
      %43 = sbr.rel (%p41) target = $region8
    $region5: #{tpu_custom_call.1} parent=1 // loop_body
      %s45 = ssub.s32 %s40, 1
      %s46 = ssub.s32 %s40, 2
      %s53 = sadd.s32 1, %s48
      %p54 = scmp.ge.s32.totalorder %s53, 2
      %s55 = scalar_select %p54, 0, %s53
      %s56 = sadd.s32 1, %s47
      %s57 = scalar_select %p54, %s56, %s47
      %p58 = scmp.ge.s32.totalorder %s57, 2
      %s59 = scalar_select %p58, 0, %s57
      %s60 = ssub.s32 %s47, %s59
      %p61 = scmp.eq.s32.totalorder %s60, 0
      %s63 = sadd.s32 %s62, 1
      %s64 = scalar_select %p61, %s62, %s63
      %p67 = pneg %p61
      %p68 = scmp.eq.s32.totalorder %s40, 3
      %p69 = por %p67, %p68
      %p70 = scmp.ne.s32.totalorder %s62, %s65
      %p71 = scmp.eq.s32.totalorder %s40, 0
      %p72 = por %p70, %p71
      %p73 = scmp.ne.s32.totalorder %s62, %s65
      %p74 = scmp.eq.s32.totalorder %s45, 3
      %p75 = por %p73, %p74
      %p76 = scmp.ne.s32.totalorder %s65, %s66
      %p77 = scmp.eq.s32.totalorder %s45, 0
      %p78 = por %p76, %p77
      %p79 = scmp.ne.s32.totalorder %s65, %s66
      %p80 = scmp.eq.s32.totalorder %s46, 3
      %p81 = por %p79, %p80
      %p83 = scmp.ne.s32.totalorder %s66, %s82
      %p84 = scmp.eq.s32.totalorder %s46, 0
      %p85 = por %p83, %p84
      %s87 = sadd.s32 %s86, 1
      %p90 = scmp.eq.s32.totalorder %s40, 3
      %p91 = scmp.ne.s32.totalorder %s86, %s88
      %p92 = scmp.eq.s32.totalorder %s40, 0
      %p93 = por %p91, %p92
      %p94 = scmp.ne.s32.totalorder %s86, %s88
      %p95 = scmp.eq.s32.totalorder %s45, 3
      %p96 = por %p94, %p95
      %p97 = scmp.ne.s32.totalorder %s88, %s89
      %p98 = scmp.eq.s32.totalorder %s45, 0
      %p99 = por %p97, %p98
      %p100 = scmp.ne.s32.totalorder %s88, %s89
      %p101 = scmp.eq.s32.totalorder %s46, 3
      %p102 = por %p100, %p101
      %p104 = scmp.ne.s32.totalorder %s89, %s103
      %p105 = scmp.eq.s32.totalorder %s46, 0
      %p106 = por %p104, %p105
      %s108 = sadd.s32 %s107, 1
      %p111 = scmp.eq.s32.totalorder %s40, 3
      %p112 = scmp.ne.s32.totalorder %s107, %s109
      %p113 = scmp.eq.s32.totalorder %s40, 0
      %p114 = por %p112, %p113
      %p115 = scmp.ne.s32.totalorder %s107, %s109
      %p116 = scmp.eq.s32.totalorder %s45, 3
      %p117 = por %p115, %p116
      %p118 = scmp.ne.s32.totalorder %s109, %s110
      %p119 = scmp.eq.s32.totalorder %s45, 0
      %p120 = por %p118, %p119
      %p121 = scmp.ne.s32.totalorder %s109, %s110
      %p122 = scmp.eq.s32.totalorder %s46, 3
      %p123 = por %p121, %p122
      %p125 = scmp.ne.s32.totalorder %s110, %s124
      %p126 = scmp.eq.s32.totalorder %s46, 0
      %p127 = por %p125, %p126
      %s129 = sadd.s32 %s128, 1
      %p132 = scmp.eq.s32.totalorder %s40, 3
      %p133 = scmp.ne.s32.totalorder %s128, %s130
      %p134 = scmp.eq.s32.totalorder %s40, 0
      %p135 = por %p133, %p134
      %p136 = scmp.ne.s32.totalorder %s128, %s130
      %p137 = scmp.eq.s32.totalorder %s45, 3
      %p138 = por %p136, %p137
      %p139 = scmp.ne.s32.totalorder %s130, %s131
      %p140 = scmp.eq.s32.totalorder %s45, 0
      %p141 = por %p139, %p140
      %p142 = scmp.ne.s32.totalorder %s130, %s131
      %p143 = scmp.eq.s32.totalorder %s46, 3
      %p144 = por %p142, %p143
      %p146 = scmp.ne.s32.totalorder %s131, %s145
      %p147 = scmp.eq.s32.totalorder %s46, 0
      %p148 = por %p146, %p147
      %s150 = sadd.s32 %s149, 1
      %p153 = scmp.eq.s32.totalorder %s40, 3
      %p154 = scmp.ne.s32.totalorder %s149, %s151
      %p155 = scmp.eq.s32.totalorder %s40, 0
      %p156 = por %p154, %p155
      %p157 = scmp.ne.s32.totalorder %s149, %s151
      %p158 = scmp.eq.s32.totalorder %s45, 3
      %p159 = por %p157, %p158
      %p160 = scmp.ne.s32.totalorder %s151, %s152
      %p161 = scmp.eq.s32.totalorder %s45, 0
      %p162 = por %p160, %p161
      %p163 = scmp.ne.s32.totalorder %s151, %s152
      %p164 = scmp.eq.s32.totalorder %s46, 3
      %p165 = por %p163, %p164
      %p167 = scmp.ne.s32.totalorder %s152, %s166
      %p168 = scmp.eq.s32.totalorder %s46, 0
      %p169 = por %p167, %p168
      %s171 = sadd.s32 %s170, 1
      %p174 = scmp.eq.s32.totalorder %s40, 3
      %p175 = scmp.ne.s32.totalorder %s170, %s172
      %p176 = scmp.eq.s32.totalorder %s40, 0
      %p177 = por %p175, %p176
      %p178 = scmp.ne.s32.totalorder %s170, %s172
      %p179 = scmp.eq.s32.totalorder %s45, 3
      %p180 = por %p178, %p179
      %p181 = scmp.ne.s32.totalorder %s172, %s173
      %p182 = scmp.eq.s32.totalorder %s45, 0
      %p183 = por %p181, %p182
      %p184 = scmp.ne.s32.totalorder %s172, %s173
      %p185 = scmp.eq.s32.totalorder %s46, 3
      %p186 = por %p184, %p185
      %p188 = scmp.ne.s32.totalorder %s173, %s187
      %p189 = scmp.eq.s32.totalorder %s46, 0
      %p190 = por %p188, %p189
      %s191 = ssub.s32 %s48, %s55
      %p192 = scmp.eq.s32.totalorder %s191, 0
      %s194 = sadd.s32 %s193, 1
      %s195 = scalar_select %p192, %s193, %s194
      %p198 = pneg %p192
      %p199 = scmp.eq.s32.totalorder %s40, 3
      %p200 = por %p198, %p199
      %p201 = scmp.ne.s32.totalorder %s193, %s196
      %p202 = scmp.eq.s32.totalorder %s40, 0
      %p203 = por %p201, %p202
      %p204 = scmp.ne.s32.totalorder %s193, %s196
      %p205 = scmp.eq.s32.totalorder %s45, 3
      %p206 = por %p204, %p205
      %p207 = scmp.ne.s32.totalorder %s196, %s197
      %p208 = scmp.eq.s32.totalorder %s45, 0
      %p209 = por %p207, %p208
      %p210 = scmp.ne.s32.totalorder %s196, %s197
      %p211 = scmp.eq.s32.totalorder %s46, 3
      %p212 = por %p210, %p211
      %p214 = scmp.ne.s32.totalorder %s197, %s213
      %p215 = scmp.eq.s32.totalorder %s46, 0
      %p216 = por %p214, %p215
      %s217 = ssub.s32 %s48, %s55
      %p218 = scmp.eq.s32.totalorder %s217, 0
      %s220 = sadd.s32 %s219, 1
      %s221 = scalar_select %p218, %s219, %s220
      %p224 = pneg %p218
      %p225 = scmp.eq.s32.totalorder %s40, 3
      %p226 = por %p224, %p225
      %p227 = scmp.ne.s32.totalorder %s219, %s222
      %p228 = scmp.eq.s32.totalorder %s40, 0
      %p229 = por %p227, %p228
      %p230 = scmp.ne.s32.totalorder %s219, %s222
      %p231 = scmp.eq.s32.totalorder %s45, 3
      %p232 = por %p230, %p231
      %p233 = scmp.ne.s32.totalorder %s222, %s223
      %p234 = scmp.eq.s32.totalorder %s45, 0
      %p235 = por %p233, %p234
      %p236 = scmp.ne.s32.totalorder %s222, %s223
      %p237 = scmp.eq.s32.totalorder %s46, 3
      %p238 = por %p236, %p237
      %p240 = scmp.ne.s32.totalorder %s223, %s239
      %p241 = scmp.eq.s32.totalorder %s46, 0
      %p242 = por %p240, %p241
      %s243 = ssub.s32 %s48, %s55
      %p244 = scmp.eq.s32.totalorder %s243, 0
      %s246 = sadd.s32 %s245, 1
      %s247 = scalar_select %p244, %s245, %s246
      %p250 = pneg %p244
      %p251 = scmp.eq.s32.totalorder %s40, 3
      %p252 = por %p250, %p251
      %p253 = scmp.ne.s32.totalorder %s245, %s248
      %p254 = scmp.eq.s32.totalorder %s40, 0
      %p255 = por %p253, %p254
      %p256 = scmp.ne.s32.totalorder %s245, %s248
      %p257 = scmp.eq.s32.totalorder %s45, 3
      %p258 = por %p256, %p257
      %p259 = scmp.ne.s32.totalorder %s248, %s249
      %p260 = scmp.eq.s32.totalorder %s45, 0
      %p261 = por %p259, %p260
      %p262 = scmp.ne.s32.totalorder %s248, %s249
      %p263 = scmp.eq.s32.totalorder %s46, 3
      %p264 = por %p262, %p263
      %p266 = scmp.ne.s32.totalorder %s249, %s265
      %p267 = scmp.eq.s32.totalorder %s46, 0
      %p268 = por %p266, %p267
      %s269 = ssub.s32 %s48, %s55
      %p270 = scmp.eq.s32.totalorder %s269, 0
      %s272 = sadd.s32 %s271, 1
      %s273 = scalar_select %p270, %s271, %s272
      %p276 = pneg %p270
      %p277 = scmp.eq.s32.totalorder %s40, 3
      %p278 = por %p276, %p277
      %p279 = scmp.ne.s32.totalorder %s271, %s274
      %p280 = scmp.eq.s32.totalorder %s40, 0
      %p281 = por %p279, %p280
      %p282 = scmp.ne.s32.totalorder %s271, %s274
      %p283 = scmp.eq.s32.totalorder %s45, 3
      %p284 = por %p282, %p283
      %p285 = scmp.ne.s32.totalorder %s274, %s275
      %p286 = scmp.eq.s32.totalorder %s45, 0
      %p287 = por %p285, %p286
      %p288 = scmp.ne.s32.totalorder %s274, %s275
      %p289 = scmp.eq.s32.totalorder %s46, 3
      %p290 = por %p288, %p289
      %p292 = scmp.ne.s32.totalorder %s275, %s291
      %p293 = scmp.eq.s32.totalorder %s46, 0
      %p294 = por %p292, %p293
      %s295 = ssub.s32 %s48, %s55
      %p296 = scmp.eq.s32.totalorder %s295, 0
      %s298 = sadd.s32 %s297, 1
      %s299 = scalar_select %p296, %s297, %s298
      %p302 = pneg %p296
      %p303 = scmp.eq.s32.totalorder %s40, 3
      %p304 = por %p302, %p303
      %p305 = scmp.ne.s32.totalorder %s297, %s300
      %p306 = scmp.eq.s32.totalorder %s40, 0
      %p307 = por %p305, %p306
      %p308 = scmp.ne.s32.totalorder %s297, %s300
      %p309 = scmp.eq.s32.totalorder %s45, 3
      %p310 = por %p308, %p309
      %p311 = scmp.ne.s32.totalorder %s300, %s301
      %p312 = scmp.eq.s32.totalorder %s45, 0
      %p313 = por %p311, %p312
      %p314 = scmp.ne.s32.totalorder %s300, %s301
      %p315 = scmp.eq.s32.totalorder %s46, 3
      %p316 = por %p314, %p315
      %p318 = scmp.ne.s32.totalorder %s301, %s317
      %p319 = scmp.eq.s32.totalorder %s46, 0
      %p320 = por %p318, %p319
      %s321 = ssub.s32 %s48, %s55
      %p322 = scmp.eq.s32.totalorder %s321, 0
      %s324 = sadd.s32 %s323, 1
      %s325 = scalar_select %p322, %s323, %s324
      %p328 = pneg %p322
      %p329 = scmp.eq.s32.totalorder %s40, 3
      %p330 = por %p328, %p329
      %p331 = scmp.ne.s32.totalorder %s323, %s326
      %p332 = scmp.eq.s32.totalorder %s40, 0
      %p333 = por %p331, %p332
      %p334 = scmp.ne.s32.totalorder %s323, %s326
      %p335 = scmp.eq.s32.totalorder %s45, 3
      %p336 = por %p334, %p335
      %p337 = scmp.ne.s32.totalorder %s326, %s327
      %p338 = scmp.eq.s32.totalorder %s45, 0
      %p339 = por %p337, %p338
      %p340 = scmp.ne.s32.totalorder %s326, %s327
      %p341 = scmp.eq.s32.totalorder %s46, 3
      %p342 = por %p340, %p341
      %p344 = scmp.ne.s32.totalorder %s327, %s343
      %p345 = scmp.eq.s32.totalorder %s46, 0
      %p346 = por %p344, %p345
      %s347 = ssub.s32 %s48, %s55
      %p348 = scmp.eq.s32.totalorder %s347, 0
      %s350 = sadd.s32 %s349, 1
      %s351 = scalar_select %p348, %s349, %s350
      %p354 = pneg %p348
      %p355 = scmp.eq.s32.totalorder %s40, 3
      %p356 = por %p354, %p355
      %p357 = scmp.ne.s32.totalorder %s349, %s352
      %p358 = scmp.eq.s32.totalorder %s40, 0
      %p359 = por %p357, %p358
      %p360 = scmp.ne.s32.totalorder %s349, %s352
      %p361 = scmp.eq.s32.totalorder %s45, 3
      %p362 = por %p360, %p361
      %p363 = scmp.ne.s32.totalorder %s352, %s353
      %p364 = scmp.eq.s32.totalorder %s45, 0
      %p365 = por %p363, %p364
      %p366 = scmp.ne.s32.totalorder %s352, %s353
      %p367 = scmp.eq.s32.totalorder %s46, 3
      %p368 = por %p366, %p367
      %p370 = scmp.ne.s32.totalorder %s353, %s369
      %p371 = scmp.eq.s32.totalorder %s46, 0
      %p372 = por %p370, %p371
      %s373 = ssub.s32 %s48, %s55
      %p374 = scmp.eq.s32.totalorder %s373, 0
      %s376 = sadd.s32 %s375, 1
      %s377 = scalar_select %p374, %s375, %s376
      %p380 = pneg %p374
      %p381 = scmp.eq.s32.totalorder %s40, 3
      %p382 = por %p380, %p381
      %p383 = scmp.ne.s32.totalorder %s375, %s378
      %p384 = scmp.eq.s32.totalorder %s40, 0
      %p385 = por %p383, %p384
      %p386 = scmp.ne.s32.totalorder %s375, %s378
      %p387 = scmp.eq.s32.totalorder %s45, 3
      %p388 = por %p386, %p387
      %p389 = scmp.ne.s32.totalorder %s378, %s379
      %p390 = scmp.eq.s32.totalorder %s45, 0
      %p391 = por %p389, %p390
      %p392 = scmp.ne.s32.totalorder %s378, %s379
      %p393 = scmp.eq.s32.totalorder %s46, 3
      %p394 = por %p392, %p393
      %p396 = scmp.ne.s32.totalorder %s379, %s395
      %p397 = scmp.eq.s32.totalorder %s46, 0
      %p398 = por %p396, %p397
      %s399 = ssub.s32 %s48, %s55
      %p400 = scmp.eq.s32.totalorder %s399, 0
      %s402 = sadd.s32 %s401, 1
      %s403 = scalar_select %p400, %s401, %s402
      %p406 = pneg %p400
      %p407 = scmp.eq.s32.totalorder %s40, 3
      %p408 = por %p406, %p407
      %p409 = scmp.ne.s32.totalorder %s401, %s404
      %p410 = scmp.eq.s32.totalorder %s40, 0
      %p411 = por %p409, %p410
      %p412 = scmp.ne.s32.totalorder %s401, %s404
      %p413 = scmp.eq.s32.totalorder %s45, 3
      %p414 = por %p412, %p413
      %p415 = scmp.ne.s32.totalorder %s404, %s405
      %p416 = scmp.eq.s32.totalorder %s45, 0
      %p417 = por %p415, %p416
      %p418 = scmp.ne.s32.totalorder %s404, %s405
      %p419 = scmp.eq.s32.totalorder %s46, 3
      %p420 = por %p418, %p419
      %p422 = scmp.ne.s32.totalorder %s405, %s421
      %p423 = scmp.eq.s32.totalorder %s46, 0
      %p424 = por %p422, %p423
      %s425 = ssub.s32 %s48, %s55
      %p426 = scmp.eq.s32.totalorder %s425, 0
      %s428 = sadd.s32 %s427, 1
      %s429 = scalar_select %p426, %s427, %s428
      %p432 = pneg %p426
      %p433 = scmp.eq.s32.totalorder %s40, 3
      %p434 = por %p432, %p433
      %p435 = scmp.ne.s32.totalorder %s427, %s430
      %p436 = scmp.eq.s32.totalorder %s40, 0
      %p437 = por %p435, %p436
      %p438 = scmp.ne.s32.totalorder %s427, %s430
      %p439 = scmp.eq.s32.totalorder %s45, 3
      %p440 = por %p438, %p439
      %p441 = scmp.ne.s32.totalorder %s430, %s431
      %p442 = scmp.eq.s32.totalorder %s45, 0
      %p443 = por %p441, %p442
      %p444 = scmp.ne.s32.totalorder %s430, %s431
      %p445 = scmp.eq.s32.totalorder %s46, 3
      %p446 = por %p444, %p445
      %p448 = scmp.ne.s32.totalorder %s431, %s447
      %p449 = scmp.eq.s32.totalorder %s46, 0
      %p450 = por %p448, %p449
      %s451 = ssub.s32 %s48, %s55
      %p452 = scmp.eq.s32.totalorder %s451, 0
      %s454 = sadd.s32 %s453, 1
      %s455 = scalar_select %p452, %s453, %s454
      %p458 = pneg %p452
      %p459 = scmp.eq.s32.totalorder %s40, 3
      %p460 = por %p458, %p459
      %p461 = scmp.ne.s32.totalorder %s453, %s456
      %p462 = scmp.eq.s32.totalorder %s40, 0
      %p463 = por %p461, %p462
      %p464 = scmp.ne.s32.totalorder %s453, %s456
      %p465 = scmp.eq.s32.totalorder %s45, 3
      %p466 = por %p464, %p465
      %p467 = scmp.ne.s32.totalorder %s456, %s457
      %p468 = scmp.eq.s32.totalorder %s45, 0
      %p469 = por %p467, %p468
      %p470 = scmp.ne.s32.totalorder %s456, %s457
      %p471 = scmp.eq.s32.totalorder %s46, 3
      %p472 = por %p470, %p471
      %p474 = scmp.ne.s32.totalorder %s457, %s473
      %p475 = scmp.eq.s32.totalorder %s46, 0
      %p476 = por %p474, %p475
      %s477 = ssub.s32 %s48, %s55
      %p478 = scmp.eq.s32.totalorder %s477, 0
      %s480 = sadd.s32 %s479, 1
      %s481 = scalar_select %p478, %s479, %s480
      %p484 = pneg %p478
      %p485 = scmp.eq.s32.totalorder %s40, 3
      %p486 = por %p484, %p485
      %p487 = scmp.ne.s32.totalorder %s479, %s482
      %p488 = scmp.eq.s32.totalorder %s40, 0
      %p489 = por %p487, %p488
      %p490 = scmp.ne.s32.totalorder %s479, %s482
      %p491 = scmp.eq.s32.totalorder %s45, 3
      %p492 = por %p490, %p491
      %p493 = scmp.ne.s32.totalorder %s482, %s483
      %p494 = scmp.eq.s32.totalorder %s45, 0
      %p495 = por %p493, %p494
      %p496 = scmp.ne.s32.totalorder %s482, %s483
      %p497 = scmp.eq.s32.totalorder %s46, 3
      %p498 = por %p496, %p497
      %p500 = scmp.ne.s32.totalorder %s483, %s499
      %p501 = scmp.eq.s32.totalorder %s46, 0
      %p502 = por %p500, %p501
      %s504 = sadd.s32 %s503, 1
      %p507 = scmp.eq.s32.totalorder %s40, 3
      %p508 = scmp.ne.s32.totalorder %s503, %s505
      %p509 = scmp.eq.s32.totalorder %s40, 0
      %p510 = por %p508, %p509
      %p511 = scmp.ne.s32.totalorder %s503, %s505
      %p512 = scmp.eq.s32.totalorder %s45, 3
      %p513 = por %p511, %p512
      %p514 = scmp.ne.s32.totalorder %s505, %s506
      %p515 = scmp.eq.s32.totalorder %s45, 0
      %p516 = por %p514, %p515
      %p517 = scmp.ne.s32.totalorder %s505, %s506
      %p518 = scmp.eq.s32.totalorder %s46, 3
      %p519 = por %p517, %p518
      %p521 = scmp.ne.s32.totalorder %s506, %s520
      %p522 = scmp.eq.s32.totalorder %s46, 0
      %p523 = por %p521, %p522
      %s525 = sadd.s32 %s524, 1
      %p528 = scmp.eq.s32.totalorder %s40, 3
      %p529 = scmp.ne.s32.totalorder %s524, %s526
      %p530 = scmp.eq.s32.totalorder %s40, 0
      %p531 = por %p529, %p530
      %p532 = scmp.ne.s32.totalorder %s524, %s526
      %p533 = scmp.eq.s32.totalorder %s45, 3
      %p534 = por %p532, %p533
      %p535 = scmp.ne.s32.totalorder %s526, %s527
      %p536 = scmp.eq.s32.totalorder %s45, 0
      %p537 = por %p535, %p536
      %p538 = scmp.ne.s32.totalorder %s526, %s527
      %p539 = scmp.eq.s32.totalorder %s46, 3
      %p540 = por %p538, %p539
      %p542 = scmp.ne.s32.totalorder %s527, %s541
      %p543 = scmp.eq.s32.totalorder %s46, 0
      %p544 = por %p542, %p543
      %s545 = ssub.s32 %s47, %s59
      %p546 = scmp.eq.s32.totalorder %s545, 0
      %s548 = sadd.s32 %s547, 1
      %s549 = scalar_select %p546, %s547, %s548
      %p552 = pneg %p546
      %p553 = scmp.eq.s32.totalorder %s40, 3
      %p554 = por %p552, %p553
      %p555 = scmp.ne.s32.totalorder %s547, %s550
      %p556 = scmp.eq.s32.totalorder %s40, 0
      %p557 = por %p555, %p556
      %p558 = scmp.ne.s32.totalorder %s547, %s550
      %p559 = scmp.eq.s32.totalorder %s45, 3
      %p560 = por %p558, %p559
      %p561 = scmp.ne.s32.totalorder %s550, %s551
      %p562 = scmp.eq.s32.totalorder %s45, 0
      %p563 = por %p561, %p562
      %p564 = scmp.ne.s32.totalorder %s550, %s551
      %p565 = scmp.eq.s32.totalorder %s46, 3
      %p566 = por %p564, %p565
      %p568 = scmp.ne.s32.totalorder %s551, %s567
      %p569 = scmp.eq.s32.totalorder %s46, 0
      %p570 = por %p568, %p569
      %p571 = scmp.le.s32.totalorder 1, %s40
      %p572 = scmp.lt.s32.totalorder %s40, 5
      %p573 = pnand %p571, %p572
      %p574 = pneg %p573
      // Predicated region
      $region9: #{tpu_custom_call.1} parent=5 // pred_check
        _
      $region10: #{tpu_custom_call.1} parent=5 // pred_check_branch
        %576 = sbr.rel (%p573) target = $region12
      $region11: #{tpu_custom_call.1} parent=5 // pred_region
        %s577 = ssub.s32 %s40, 1
        // Predicated region
        $region13: #{tpu_custom_call.1} parent=11 // pred_check
          %p578 = pneg %p99
        $region14: #{tpu_custom_call.1} parent=11 // pred_check_branch
          %580 = sbr.rel (%p578) target = $region16
        $region15: #{tpu_custom_call.1} parent=11 // pred_region
          %s582 = ssub.s32 1536, 1536
          %583 = vsyncadd [#allocation6], %s582
          %s584 = sshll.u32 [#allocation5], 4
          %s585 = int_to_ptr.vmem [resolvable:$true] %s584
          %590 = dma.hbm_to_vmem [thread:$0]  %s1, 1536, %s585, [#allocation6], 64, 64, 4
        $region16: #{tpu_custom_call.1} parent=11 // pred_fallthru
          _
        // Predicated region
        $region17: #{tpu_custom_call.1} parent=11 // pred_check
          %p591 = pneg %p120
        $region18: #{tpu_custom_call.1} parent=11 // pred_check_branch
          %593 = sbr.rel (%p591) target = $region20
        $region19: #{tpu_custom_call.1} parent=11 // pred_region
          %s595 = ssub.s32 16, 16
          %596 = vsyncadd [#allocation6], %s595
          %s598 = sshll.u32 [#allocation7], 4
          %s599 = int_to_ptr.vmem [resolvable:$true] %s598
          %601 = dma.hbm_to_vmem [thread:$0]  %s2, 16, %s599, [#allocation6]
        $region20: #{tpu_custom_call.1} parent=11 // pred_fallthru
          _
        // Predicated region
        $region21: #{tpu_custom_call.1} parent=11 // pred_check
          %p602 = pneg %p141
        $region22: #{tpu_custom_call.1} parent=11 // pred_check_branch
          %604 = sbr.rel (%p602) target = $region24
        $region23: #{tpu_custom_call.1} parent=11 // pred_region
          %s606 = ssub.s32 16, 16
          %607 = vsyncadd [#allocation9], %s606
          %s609 = sshll.u32 [#allocation8], 4
          %s610 = int_to_ptr.vmem [resolvable:$true] %s609
          %612 = dma.hbm_to_vmem [thread:$0]  %s3, 16, %s610, [#allocation9]
        $region24: #{tpu_custom_call.1} parent=11 // pred_fallthru
          _
        // Predicated region
        $region25: #{tpu_custom_call.1} parent=11 // pred_check
          %p613 = pneg %p162
        $region26: #{tpu_custom_call.1} parent=11 // pred_check_branch
          %615 = sbr.rel (%p613) target = $region28
        $region27: #{tpu_custom_call.1} parent=11 // pred_region
          %s617 = ssub.s32 128, 128
          %618 = vsyncadd [#allocation9], %s617
          %s620 = sshll.u32 [#allocation10], 4
          %s621 = int_to_ptr.vmem [resolvable:$true] %s620
          %623 = dma.hbm_to_vmem [thread:$0]  %s4, 128, %s621, [#allocation9]
        $region28: #{tpu_custom_call.1} parent=11 // pred_fallthru
          _
        // Predicated region
        $region29: #{tpu_custom_call.1} parent=11 // pred_check
          %p624 = pneg %p183
        $region30: #{tpu_custom_call.1} parent=11 // pred_check_branch
          %626 = sbr.rel (%p624) target = $region32
        $region31: #{tpu_custom_call.1} parent=11 // pred_region
          _
        $region32: #{tpu_custom_call.1} parent=11 // pred_fallthru
          _
        // Predicated region
        $region33: #{tpu_custom_call.1} parent=11 // pred_check
          %p627 = pneg %p516
        $region34: #{tpu_custom_call.1} parent=11 // pred_check_branch
          %629 = sbr.rel (%p627) target = $region36
        $region35: #{tpu_custom_call.1} parent=11 // pred_region
          _
        $region36: #{tpu_custom_call.1} parent=11 // pred_fallthru
          _
        // Predicated region
        $region37: #{tpu_custom_call.1} parent=11 // pred_check
          %p630 = pneg %p537
        $region38: #{tpu_custom_call.1} parent=11 // pred_check_branch
          %632 = sbr.rel (%p630) target = $region40
        $region39: #{tpu_custom_call.1} parent=11 // pred_region
          _
        $region40: #{tpu_custom_call.1} parent=11 // pred_fallthru
          _
      $region12: #{tpu_custom_call.1} parent=5 // pred_fallthru
        _
      %p633 = scmp.lt.s32.totalorder %s40, 4
      // Predicated region
      $region41: #{tpu_custom_call.1} parent=5 // pred_check
        %p634 = pneg %p633
      $region42: #{tpu_custom_call.1} parent=5 // pred_check_branch
        %636 = sbr.rel (%p634) target = $region44
      $region43: #{tpu_custom_call.1} parent=5 // pred_region
        // Predicated region
        $region45: #{tpu_custom_call.1} parent=43 // pred_check
          %p637 = pneg %p72
        $region46: #{tpu_custom_call.1} parent=43 // pred_check_branch
          %639 = sbr.rel (%p637) target = $region48
        $region47: #{tpu_custom_call.1} parent=43 // pred_region
          %s640 = sand.u32 %s62, 1
          %s641 = scalar_lea.sflag [#allocation4], %s640
          %s642 = sand.u32 %s62, 1
          %s643 = smul.addr %s642, 8
          %s644 = scalar_lea.vmem [#allocation3], %s643
          %s646 = ssub.s32 128, 128
          %647 = vsyncadd %s641, %s646
          %s648 = smul.addr %s47, 2
          %s649 = smul.addr %s648, 64
          %s650 = scalar_lea.hbm %s0, %s649
          %s652 = sshll.u32 %s644, 4
          %s653 = int_to_ptr.vmem [resolvable:$true] %s652
          %655 = dma.hbm_to_vmem [thread:$0]  %s650, 128, %s653, %s641
        $region48: #{tpu_custom_call.1} parent=43 // pred_fallthru
          _
        // Predicated region
        $region49: #{tpu_custom_call.1} parent=43 // pred_check
          %p656 = pneg %p203
        $region50: #{tpu_custom_call.1} parent=43 // pred_check_branch
          %658 = sbr.rel (%p656) target = $region52
        $region51: #{tpu_custom_call.1} parent=43 // pred_region
          %s659 = sand.u32 %s40, 1
          %s660 = scalar_lea.sflag [#allocation12], %s659
          %s661 = sand.u32 %s193, 1
          %s662 = scalar_lea.vmem [#allocation11], %s661
          %s664 = ssub.s32 16, 16
          %665 = vsyncadd %s660, %s664
          %s666 = smul.addr %s48, 16
          %s667 = scalar_lea.hbm %s6, %s666
          %s669 = sshll.u32 %s662, 4
          %s670 = int_to_ptr.vmem [resolvable:$true] %s669
          %672 = dma.hbm_to_vmem [thread:$0]  %s667, 16, %s670, %s660
        $region52: #{tpu_custom_call.1} parent=43 // pred_fallthru
          _
        // Predicated region
        $region53: #{tpu_custom_call.1} parent=43 // pred_check
          %p673 = pneg %p229
        $region54: #{tpu_custom_call.1} parent=43 // pred_check_branch
          %675 = sbr.rel (%p673) target = $region56
        $region55: #{tpu_custom_call.1} parent=43 // pred_region
          %s676 = sand.u32 %s40, 1
          %s677 = scalar_lea.sflag [#allocation12], %s676
          %s678 = sand.u32 %s219, 1
          %s679 = scalar_lea.vmem [#allocation13], %s678
          %s681 = ssub.s32 16, 16
          %682 = vsyncadd %s677, %s681
          %s683 = smul.addr %s48, 16
          %s684 = scalar_lea.hbm %s7, %s683
          %s686 = sshll.u32 %s679, 4
          %s687 = int_to_ptr.vmem [resolvable:$true] %s686
          %689 = dma.hbm_to_vmem [thread:$0]  %s684, 16, %s687, %s677
        $region56: #{tpu_custom_call.1} parent=43 // pred_fallthru
          _
        // Predicated region
        $region57: #{tpu_custom_call.1} parent=43 // pred_check
          %p690 = pneg %p255
        $region58: #{tpu_custom_call.1} parent=43 // pred_check_branch
          %692 = sbr.rel (%p690) target = $region60
        $region59: #{tpu_custom_call.1} parent=43 // pred_region
          %s693 = sand.u32 %s40, 1
          %s694 = scalar_lea.sflag [#allocation15], %s693
          %s695 = sand.u32 %s245, 1
          %s696 = smul.addr %s695, 192
          %s697 = scalar_lea.vmem [#allocation14], %s696
          %s699 = ssub.s32 3072, 3072
          %700 = vsyncadd %s694, %s699
          %s701 = smul.addr %s48, 48
          %s702 = smul.addr %s701, 64
          %s703 = scalar_lea.hbm %s8, %s702
          %s704 = sshll.u32 %s697, 4
          %s705 = int_to_ptr.vmem [resolvable:$true] %s704
          %710 = dma.hbm_to_vmem [thread:$0]  %s703, 3072, %s705, %s694, 192, 192, 12
        $region60: #{tpu_custom_call.1} parent=43 // pred_fallthru
          _
        // Predicated region
        $region61: #{tpu_custom_call.1} parent=43 // pred_check
          %p711 = pneg %p281
        $region62: #{tpu_custom_call.1} parent=43 // pred_check_branch
          %713 = sbr.rel (%p711) target = $region64
        $region63: #{tpu_custom_call.1} parent=43 // pred_region
          %p714 = scmp.lt.s32.totalorder %s48, 1
          %s715 = scalar_select %p714, %s48, 1
          %s716 = smul.addr %s715, 3
          %s717 = scalar_lea.vmem %s9, %s716
        $region64: #{tpu_custom_call.1} parent=43 // pred_fallthru
          _
        // Predicated region
        $region65: #{tpu_custom_call.1} parent=43 // pred_check
          %p718 = pneg %p307
        $region66: #{tpu_custom_call.1} parent=43 // pred_check_branch
          %720 = sbr.rel (%p718) target = $region68
        $region67: #{tpu_custom_call.1} parent=43 // pred_region
          %s721 = sand.u32 %s40, 1
          %s722 = scalar_lea.sflag [#allocation15], %s721
          %s723 = sand.u32 %s297, 1
          %s724 = smul.addr %s723, 64
          %s725 = scalar_lea.vmem [#allocation16], %s724
          %s727 = ssub.s32 1024, 1024
          %728 = vsyncadd %s722, %s727
          %s729 = smul.addr %s48, 16
          %s730 = smul.addr %s729, 64
          %s731 = scalar_lea.hbm %s10, %s730
          %s732 = sshll.u32 %s725, 4
          %s733 = int_to_ptr.vmem [resolvable:$true] %s732
          %738 = dma.hbm_to_vmem [thread:$0]  %s731, 1024, %s733, %s722, 64, 64, 4
        $region68: #{tpu_custom_call.1} parent=43 // pred_fallthru
          _
        // Predicated region
        $region69: #{tpu_custom_call.1} parent=43 // pred_check
          %p739 = pneg %p333
        $region70: #{tpu_custom_call.1} parent=43 // pred_check_branch
          %741 = sbr.rel (%p739) target = $region72
        $region71: #{tpu_custom_call.1} parent=43 // pred_region
          %p742 = scmp.lt.s32.totalorder %s48, 1
          %s743 = scalar_select %p742, %s48, 1
          %s744 = scalar_lea.vmem %s11, %s743
        $region72: #{tpu_custom_call.1} parent=43 // pred_fallthru
          _
        // Predicated region
        $region73: #{tpu_custom_call.1} parent=43 // pred_check
          %p745 = pneg %p359
        $region74: #{tpu_custom_call.1} parent=43 // pred_check_branch
          %747 = sbr.rel (%p745) target = $region76
        $region75: #{tpu_custom_call.1} parent=43 // pred_region
          %p748 = scmp.lt.s32.totalorder %s48, 1
          %s749 = scalar_select %p748, %s48, 1
          %s750 = scalar_lea.vmem %s12, %s749
        $region76: #{tpu_custom_call.1} parent=43 // pred_fallthru
          _
        // Predicated region
        $region77: #{tpu_custom_call.1} parent=43 // pred_check
          %p751 = pneg %p385
        $region78: #{tpu_custom_call.1} parent=43 // pred_check_branch
          %753 = sbr.rel (%p751) target = $region80
        $region79: #{tpu_custom_call.1} parent=43 // pred_region
          %p754 = scmp.lt.s32.totalorder %s48, 1
          %s755 = scalar_select %p754, %s48, 1
          %s756 = scalar_lea.vmem %s13, %s755
        $region80: #{tpu_custom_call.1} parent=43 // pred_fallthru
          _
        // Predicated region
        $region81: #{tpu_custom_call.1} parent=43 // pred_check
          %p757 = pneg %p411
        $region82: #{tpu_custom_call.1} parent=43 // pred_check_branch
          %759 = sbr.rel (%p757) target = $region84
        $region83: #{tpu_custom_call.1} parent=43 // pred_region
          %s760 = sand.u32 %s40, 1
          %s761 = scalar_lea.sflag [#allocation18], %s760
          %s762 = sand.u32 %s401, 1
          %s763 = smul.addr %s762, 256
          %s764 = scalar_lea.vmem [#allocation17], %s763
          %s766 = ssub.s32 4096, 4096
          %767 = vsyncadd %s761, %s766
          %s768 = smul.addr %s48, 64
          %s769 = smul.addr %s768, 64
          %s770 = scalar_lea.hbm %s14, %s769
          %s771 = sshll.u32 %s764, 4
          %s772 = int_to_ptr.vmem [resolvable:$true] %s771
          %777 = dma.hbm_to_vmem [thread:$0]  %s770, 4096, %s772, %s761, 256, 256, 16
        $region84: #{tpu_custom_call.1} parent=43 // pred_fallthru
          _
        // Predicated region
        $region85: #{tpu_custom_call.1} parent=43 // pred_check
          %p778 = pneg %p437
        $region86: #{tpu_custom_call.1} parent=43 // pred_check_branch
          %780 = sbr.rel (%p778) target = $region88
        $region87: #{tpu_custom_call.1} parent=43 // pred_region
          %p781 = scmp.lt.s32.totalorder %s48, 1
          %s782 = scalar_select %p781, %s48, 1
          %s783 = smul.addr %s782, 4
          %s784 = scalar_lea.vmem %s15, %s783
        $region88: #{tpu_custom_call.1} parent=43 // pred_fallthru
          _
        // Predicated region
        $region89: #{tpu_custom_call.1} parent=43 // pred_check
          %p785 = pneg %p463
        $region90: #{tpu_custom_call.1} parent=43 // pred_check_branch
          %787 = sbr.rel (%p785) target = $region92
        $region91: #{tpu_custom_call.1} parent=43 // pred_region
          %s788 = sand.u32 %s40, 1
          %s789 = scalar_lea.sflag [#allocation18], %s788
          %s790 = sand.u32 %s453, 1
          %s791 = smul.addr %s790, 256
          %s792 = scalar_lea.vmem [#allocation19], %s791
          %s794 = ssub.s32 4096, 4096
          %795 = vsyncadd %s789, %s794
          %s796 = smul.addr %s48, 64
          %s797 = smul.addr %s796, 64
          %s798 = scalar_lea.hbm %s16, %s797
          %s799 = sshll.u32 %s792, 4
          %s800 = int_to_ptr.vmem [resolvable:$true] %s799
          %805 = dma.hbm_to_vmem [thread:$0]  %s798, 4096, %s800, %s789, 64, 64, 4
        $region92: #{tpu_custom_call.1} parent=43 // pred_fallthru
          _
        // Predicated region
        $region93: #{tpu_custom_call.1} parent=43 // pred_check
          %p806 = pneg %p489
        $region94: #{tpu_custom_call.1} parent=43 // pred_check_branch
          %808 = sbr.rel (%p806) target = $region96
        $region95: #{tpu_custom_call.1} parent=43 // pred_region
          %p809 = scmp.lt.s32.totalorder %s48, 1
          %s810 = scalar_select %p809, %s48, 1
          %s811 = scalar_lea.vmem %s17, %s810
        $region96: #{tpu_custom_call.1} parent=43 // pred_fallthru
          _
      $region44: #{tpu_custom_call.1} parent=5 // pred_fallthru
        _
      %p812 = scmp.le.s32.totalorder 1, %s40
      %p813 = scmp.lt.s32.totalorder %s40, 5
      %p814 = pnand %p812, %p813
      %p815 = pneg %p814
      // Predicated region
      $region97: #{tpu_custom_call.1} parent=5 // pred_check
        _
      $region98: #{tpu_custom_call.1} parent=5 // pred_check_branch
        %817 = sbr.rel (%p814) target = $region100
      $region99: #{tpu_custom_call.1} parent=5 // pred_region
        %s818 = ssub.s32 %s40, 1
        %s819 = sand.u32 %s65, 1
        %s820 = scalar_lea.sflag [#allocation4], %s819
        %s821 = sand.u32 %s65, 1
        %s822 = smul.addr %s821, 8
        %s823 = scalar_lea.vmem [#allocation3], %s822
        // Predicated region
        $region101: #{tpu_custom_call.1} parent=99 // pred_check
          %p824 = pneg %p78
        $region102: #{tpu_custom_call.1} parent=99 // pred_check_branch
          %826 = sbr.rel (%p824) target = $region104
        $region103: #{tpu_custom_call.1} parent=99 // pred_region
          %827 = dma.done %s820, 128
        $region104: #{tpu_custom_call.1} parent=99 // pred_fallthru
          _
        // Predicated region
        $region105: #{tpu_custom_call.1} parent=99 // pred_check
          %p828 = pneg %p99
        $region106: #{tpu_custom_call.1} parent=99 // pred_check_branch
          %830 = sbr.rel (%p828) target = $region108
        $region107: #{tpu_custom_call.1} parent=99 // pred_region
          %831 = dma.done [#allocation6], 1536
        $region108: #{tpu_custom_call.1} parent=99 // pred_fallthru
          _
        // Predicated region
        $region109: #{tpu_custom_call.1} parent=99 // pred_check
          %p832 = pneg %p120
        $region110: #{tpu_custom_call.1} parent=99 // pred_check_branch
          %834 = sbr.rel (%p832) target = $region112
        $region111: #{tpu_custom_call.1} parent=99 // pred_region
          %835 = dma.done [#allocation6], 16
        $region112: #{tpu_custom_call.1} parent=99 // pred_fallthru
          _
        // Predicated region
        $region113: #{tpu_custom_call.1} parent=99 // pred_check
          %p836 = pneg %p141
        $region114: #{tpu_custom_call.1} parent=99 // pred_check_branch
          %838 = sbr.rel (%p836) target = $region116
        $region115: #{tpu_custom_call.1} parent=99 // pred_region
          %839 = dma.done [#allocation9], 16
        $region116: #{tpu_custom_call.1} parent=99 // pred_fallthru
          _
        // Predicated region
        $region117: #{tpu_custom_call.1} parent=99 // pred_check
          %p840 = pneg %p162
        $region118: #{tpu_custom_call.1} parent=99 // pred_check_branch
          %842 = sbr.rel (%p840) target = $region120
        $region119: #{tpu_custom_call.1} parent=99 // pred_region
          %843 = dma.done [#allocation9], 128
        $region120: #{tpu_custom_call.1} parent=99 // pred_fallthru
          _
        %s844 = sand.u32 %s45, 1
        %s845 = scalar_lea.sflag [#allocation12], %s844
        %s846 = sand.u32 %s196, 1
        %s847 = scalar_lea.vmem [#allocation11], %s846
        // Predicated region
        $region121: #{tpu_custom_call.1} parent=99 // pred_check
          %p848 = pneg %p209
        $region122: #{tpu_custom_call.1} parent=99 // pred_check_branch
          %850 = sbr.rel (%p848) target = $region124
        $region123: #{tpu_custom_call.1} parent=99 // pred_region
          %851 = dma.done %s845, 16
        $region124: #{tpu_custom_call.1} parent=99 // pred_fallthru
          _
        %s852 = sand.u32 %s45, 1
        %s853 = scalar_lea.sflag [#allocation12], %s852
        %s854 = sand.u32 %s222, 1
        %s855 = scalar_lea.vmem [#allocation13], %s854
        // Predicated region
        $region125: #{tpu_custom_call.1} parent=99 // pred_check
          %p856 = pneg %p235
        $region126: #{tpu_custom_call.1} parent=99 // pred_check_branch
          %858 = sbr.rel (%p856) target = $region128
        $region127: #{tpu_custom_call.1} parent=99 // pred_region
          %859 = dma.done %s853, 16
        $region128: #{tpu_custom_call.1} parent=99 // pred_fallthru
          _
        %s860 = sand.u32 %s45, 1
        %s861 = scalar_lea.sflag [#allocation15], %s860
        %s862 = sand.u32 %s248, 1
        %s863 = smul.addr %s862, 192
        %s864 = scalar_lea.vmem [#allocation14], %s863
        // Predicated region
        $region129: #{tpu_custom_call.1} parent=99 // pred_check
          %p865 = pneg %p261
        $region130: #{tpu_custom_call.1} parent=99 // pred_check_branch
          %867 = sbr.rel (%p865) target = $region132
        $region131: #{tpu_custom_call.1} parent=99 // pred_region
          %868 = dma.done %s861, 3072
        $region132: #{tpu_custom_call.1} parent=99 // pred_fallthru
          _
        %s869 = sand.u32 %s45, 1
        %s870 = scalar_lea.sflag [#allocation15], %s869
        %s871 = sand.u32 %s300, 1
        %s872 = smul.addr %s871, 64
        %s873 = scalar_lea.vmem [#allocation16], %s872
        // Predicated region
        $region133: #{tpu_custom_call.1} parent=99 // pred_check
          %p874 = pneg %p313
        $region134: #{tpu_custom_call.1} parent=99 // pred_check_branch
          %876 = sbr.rel (%p874) target = $region136
        $region135: #{tpu_custom_call.1} parent=99 // pred_region
          %877 = dma.done %s870, 1024
        $region136: #{tpu_custom_call.1} parent=99 // pred_fallthru
          _
        %s878 = sand.u32 %s45, 1
        %s879 = scalar_lea.sflag [#allocation18], %s878
        %s880 = sand.u32 %s404, 1
        %s881 = smul.addr %s880, 256
        %s882 = scalar_lea.vmem [#allocation17], %s881
        // Predicated region
        $region137: #{tpu_custom_call.1} parent=99 // pred_check
          %p883 = pneg %p417
        $region138: #{tpu_custom_call.1} parent=99 // pred_check_branch
          %885 = sbr.rel (%p883) target = $region140
        $region139: #{tpu_custom_call.1} parent=99 // pred_region
          %886 = dma.done %s879, 4096
        $region140: #{tpu_custom_call.1} parent=99 // pred_fallthru
          _
        %s887 = sand.u32 %s45, 1
        %s888 = scalar_lea.sflag [#allocation18], %s887
        %s889 = sand.u32 %s456, 1
        %s890 = smul.addr %s889, 256
        %s891 = scalar_lea.vmem [#allocation19], %s890
        // Predicated region
        $region141: #{tpu_custom_call.1} parent=99 // pred_check
          %p892 = pneg %p469
        $region142: #{tpu_custom_call.1} parent=99 // pred_check_branch
          %894 = sbr.rel (%p892) target = $region144
        $region143: #{tpu_custom_call.1} parent=99 // pred_region
          %895 = dma.done %s888, 4096
        $region144: #{tpu_custom_call.1} parent=99 // pred_fallthru
          _
        %s896 = sand.u32 %s65, 1
        %s897 = scalar_lea.sflag [#allocation4], %s896
        %s898 = sand.u32 %s65, 1
        %s899 = smul.addr %s898, 8
        %s900 = scalar_lea.vmem [#allocation3], %s899
        %p901 = pneg %p78
        %p902 = pneg %p75
        %p903 = pneg %p99
        %p904 = pneg %p96
        %p905 = pneg %p120
        %p906 = pneg %p117
        %p907 = pneg %p141
        %p908 = pneg %p138
        %p909 = pneg %p162
        %p910 = pneg %p159
        %p911 = pneg %p183
        %p912 = pneg %p180
        %s913 = sand.u32 %s45, 1
        %s914 = scalar_lea.sflag [#allocation12], %s913
        %s915 = sand.u32 %s196, 1
        %s916 = scalar_lea.vmem [#allocation11], %s915
        %p917 = pneg %p209
        %p918 = pneg %p206
        %s919 = sand.u32 %s45, 1
        %s920 = scalar_lea.sflag [#allocation12], %s919
        %s921 = sand.u32 %s222, 1
        %s922 = scalar_lea.vmem [#allocation13], %s921
        %p923 = pneg %p235
        %p924 = pneg %p232
        %s925 = sand.u32 %s45, 1
        %s926 = scalar_lea.sflag [#allocation15], %s925
        %s927 = sand.u32 %s248, 1
        %s928 = smul.addr %s927, 192
        %s929 = scalar_lea.vmem [#allocation14], %s928
        %p930 = pneg %p261
        %p931 = pneg %p258
        %p932 = scmp.lt.s32.totalorder %s50, 1
        %s933 = scalar_select %p932, %s50, 1
        %s934 = smul.addr %s933, 3
        %s935 = scalar_lea.vmem %s9, %s934
        %p936 = pneg %p287
        %p937 = pneg %p284
        %s938 = sand.u32 %s45, 1
        %s939 = scalar_lea.sflag [#allocation15], %s938
        %s940 = sand.u32 %s300, 1
        %s941 = smul.addr %s940, 64
        %s942 = scalar_lea.vmem [#allocation16], %s941
        %p943 = pneg %p313
        %p944 = pneg %p310
        %p945 = scmp.lt.s32.totalorder %s50, 1
        %s946 = scalar_select %p945, %s50, 1
        %s947 = scalar_lea.vmem %s11, %s946
        %p948 = pneg %p339
        %p949 = pneg %p336
        %p950 = scmp.lt.s32.totalorder %s50, 1
        %s951 = scalar_select %p950, %s50, 1
        %s952 = scalar_lea.vmem %s12, %s951
        %p953 = pneg %p365
        %p954 = pneg %p362
        %p955 = scmp.lt.s32.totalorder %s50, 1
        %s956 = scalar_select %p955, %s50, 1
        %s957 = scalar_lea.vmem %s13, %s956
        %p958 = pneg %p391
        %p959 = pneg %p388
        %s960 = sand.u32 %s45, 1
        %s961 = scalar_lea.sflag [#allocation18], %s960
        %s962 = sand.u32 %s404, 1
        %s963 = smul.addr %s962, 256
        %s964 = scalar_lea.vmem [#allocation17], %s963
        %p965 = pneg %p417
        %p966 = pneg %p414
        %p967 = scmp.lt.s32.totalorder %s50, 1
        %s968 = scalar_select %p967, %s50, 1
        %s969 = smul.addr %s968, 4
        %s970 = scalar_lea.vmem %s15, %s969
        %p971 = pneg %p443
        %p972 = pneg %p440
        %s973 = sand.u32 %s45, 1
        %s974 = scalar_lea.sflag [#allocation18], %s973
        %s975 = sand.u32 %s456, 1
        %s976 = smul.addr %s975, 256
        %s977 = scalar_lea.vmem [#allocation19], %s976
        %p978 = pneg %p469
        %p979 = pneg %p466
        %p980 = scmp.lt.s32.totalorder %s50, 1
        %s981 = scalar_select %p980, %s50, 1
        %s982 = scalar_lea.vmem %s17, %s981
        %p983 = pneg %p495
        %p984 = pneg %p492
        %p985 = pneg %p516
        %p986 = pneg %p513
        %p987 = pneg %p537
        %p988 = pneg %p534
        %p989 = pneg %p563
        %p990 = pneg %p560
        %p991 = scmp.lt.s32.totalorder %s49, 1
        %s992 = scalar_select %p991, %s49, 1
        %s993 = smul.addr %s992, 2
        %s994 = smul.addr %s993, 8
        %s995 = scalar_lea.vmem %s20, %s994
        %p996 = scmp.lt.s32.totalorder %s50, 1
        %s997 = scalar_select %p996, %s50, 1
        %s998 = smul.addr %s997, 3
        %s999 = scalar_lea.vmem %s9, %s998
        %p1000 = scmp.lt.s32.totalorder %s50, 1
        %s1001 = scalar_select %p1000, %s50, 1
        %s1002 = scalar_lea.vmem %s11, %s1001
        %p1003 = scmp.lt.s32.totalorder %s50, 1
        %s1004 = scalar_select %p1003, %s50, 1
        %s1005 = scalar_lea.vmem %s12, %s1004
        %p1006 = scmp.lt.s32.totalorder %s50, 1
        %s1007 = scalar_select %p1006, %s50, 1
        %s1008 = scalar_lea.vmem %s13, %s1007
        %p1009 = scmp.lt.s32.totalorder %s50, 1
        %s1010 = scalar_select %p1009, %s50, 1
        %s1011 = smul.addr %s1010, 4
        %s1012 = scalar_lea.vmem %s15, %s1011
        %p1013 = scmp.lt.s32.totalorder %s50, 1
        %s1014 = scalar_select %p1013, %s50, 1
        %s1015 = scalar_lea.vmem %s17, %s1014
        %p1016 = scmp.lt.s32.totalorder %s49, 1
        %s1017 = scalar_select %p1016, %s49, 1
        %s1018 = smul.addr %s1017, 2
        %s1019 = smul.addr %s1018, 8
        %s1020 = scalar_lea.vmem %s20, %s1019
        %p1022 = scmp.eq.s32.totalorder %s50, 0
        // Predicated region
        $region145: #{tpu_custom_call.1} parent=99 // pred_check
          %p1023 = pneg %p1022
        $region146: #{tpu_custom_call.1} parent=99 // pred_check_branch
          %1025 = sbr.rel (%p1023) target = $region148
        $region147: #{tpu_custom_call.1} parent=99 // pred_region
          %v1026 = vld [vmem:[%s823] sm:$0xff]
          %v1027 = vld [vmem:[#allocation5] sm:$0xf]
          %v1028 = vld [vmem:[#allocation5 + $0x4] sm:$0xf]
          %v1029 = vld [vmem:[#allocation5 + $0x8] sm:$0xf]
          %v1030 = vld [vmem:[#allocation5 + $0xc] sm:$0xf]
          %v1031 = vld [vmem:[#allocation5 + $0x10] sm:$0xf]
          %v1032 = vld [vmem:[#allocation5 + $0x14] sm:$0xf]
          %v1033 = vld [vmem:[#allocation5 + $0x18] sm:$0xf]
          %v1034 = vld [vmem:[#allocation5 + $0x1c] sm:$0xf]
          %v1035 = vld [vmem:[#allocation5 + $0x20] sm:$0xf]
          %v1036 = vld [vmem:[#allocation5 + $0x24] sm:$0xf]
          %v1037 = vld [vmem:[#allocation5 + $0x28] sm:$0xf]
          %v1038 = vld [vmem:[#allocation5 + $0x2c] sm:$0xf]
          %v1039 = vld [vmem:[#allocation5 + $0x30] sm:$0xf]
          %v1040 = vld [vmem:[#allocation5 + $0x34] sm:$0xf]
          %v1041 = vld [vmem:[#allocation5 + $0x38] sm:$0xf]
          %v1042 = vld [vmem:[#allocation5 + $0x3c] sm:$0xf]
          %v1043 = vld [vmem:[#allocation5 + $0x40] sm:$0xf]
          %v1044 = vld [vmem:[#allocation5 + $0x44] sm:$0xf]
          %v1045 = vld [vmem:[#allocation5 + $0x48] sm:$0xf]
          %v1046 = vld [vmem:[#allocation5 + $0x4c] sm:$0xf]
          %v1047 = vld [vmem:[#allocation5 + $0x50] sm:$0xf]
          %v1048 = vld [vmem:[#allocation5 + $0x54] sm:$0xf]
          %v1049 = vld [vmem:[#allocation5 + $0x58] sm:$0xf]
          %v1050 = vld [vmem:[#allocation5 + $0x5c] sm:$0xf]
          %v1051 = vld [vmem:[#allocation7] sm:$0x1]
          %v1053 = vlaneseq
          %v1054 = vshrl.u32 %v1053, 7
          %v1055 = vsub.s32 0, %v1054
          %v1056 = vrot.slane %v1051, %v1055
          %v1059 = vunpack.c.l.b16 %v1026
          %v1060 = vunpack.c.h.b16 %v1026
          %v1061 = vpack.c.b16 %v1059, %v1059
          %v1062 = vpack.c.b16 %v1060, %v1060
          %v1088 = vunpack.c.l.b16 %v1027
          %v1089 = vunpack.c.l.b16 %v1028
          %v1090 = vunpack.c.l.b16 %v1029
          %v1091 = vunpack.c.l.b16 %v1030
          %v1092 = vunpack.c.l.b16 %v1031
          %v1093 = vunpack.c.l.b16 %v1032
          %v1094 = vunpack.c.l.b16 %v1033
          %v1095 = vunpack.c.l.b16 %v1034
          %v1096 = vunpack.c.l.b16 %v1035
          %v1097 = vunpack.c.l.b16 %v1036
          %v1098 = vunpack.c.l.b16 %v1037
          %v1099 = vunpack.c.l.b16 %v1038
          %v1100 = vunpack.c.l.b16 %v1039
          %v1101 = vunpack.c.l.b16 %v1040
          %v1102 = vunpack.c.l.b16 %v1041
          %v1103 = vunpack.c.l.b16 %v1042
          %v1104 = vunpack.c.l.b16 %v1043
          %v1105 = vunpack.c.l.b16 %v1044
          %v1106 = vunpack.c.l.b16 %v1045
          %v1107 = vunpack.c.l.b16 %v1046
          %v1108 = vunpack.c.l.b16 %v1047
          %v1109 = vunpack.c.l.b16 %v1048
          %v1110 = vunpack.c.l.b16 %v1049
          %v1111 = vunpack.c.l.b16 %v1050
          %v1112 = vpack.c.b16 %v1089, %v1088
          %v1113 = vpack.c.b16 %v1091, %v1090
          %v1114 = vpack.c.b16 %v1093, %v1092
          %v1115 = vpack.c.b16 %v1095, %v1094
          %v1116 = vpack.c.b16 %v1097, %v1096
          %v1117 = vpack.c.b16 %v1099, %v1098
          %v1118 = vpack.c.b16 %v1101, %v1100
          %v1119 = vpack.c.b16 %v1103, %v1102
          %v1120 = vpack.c.b16 %v1105, %v1104
          %v1121 = vpack.c.b16 %v1107, %v1106
          %v1122 = vpack.c.b16 %v1109, %v1108
          %v1123 = vpack.c.b16 %v1111, %v1110
          %vm1136 = vcmask 523264
          %v1138 = vsel %vm1136, %v1062, 0
          %1140 = vmatprep.subr.bf16.mxu0 0
          %1141 = vmatpush1.bf16.msra.mxu0 %v1112
          %1142 = vmatprep.subr.bf16.mxu0 0
          %1143 = vmatpush1.bf16.msra.mxu0 %v1113
          %1144 = vmatprep.subr.bf16.mxu0 0
          %1145 = vmatpush1.bf16.msra.mxu0 %v1114
          %1146 = vmatprep.subr.bf16.mxu0 0
          %1147 = vmatpush1.bf16.msra.mxu0 %v1115
          %1148 = vmatprep.subr.bf16.mxu0 0
          %1149 = vmatpush1.bf16.msra.mxu0 %v1116
          %1150 = vmatprep.subr.bf16.mxu0 0
          %1151 = vmatpush1.bf16.msra.mxu0 %v1117
          %1152 = vmatprep.subr.bf16.mxu0 0
          %1153 = vmatpush1.bf16.msra.mxu0 %v1118
          %1154 = vmatprep.subr.bf16.mxu0 0
          %1155 = vmatpush1.bf16.msra.mxu0 %v1119
          %1156 = vmatprep.subr.bf16.mxu0 0
          %1157 = vmatpush1.bf16.msra.mxu0 %v1120
          %1158 = vmatprep.subr.bf16.mxu0 0
          %1159 = vmatpush1.bf16.msra.mxu0 %v1121
          %1160 = vmatprep.subr.bf16.mxu0 0
          %1161 = vmatpush1.bf16.msra.mxu0 %v1122
          %1162 = vmatprep.subr.bf16.mxu0 0
          %1163 = vmatpush1.bf16.msra.mxu0 %v1123
          %1164 = vmatprep.subr.bf16.mxu0 0
          %1165 = vmatpush1.bf16.msra.mxu0 0
          %1166 = vmatprep.subr.bf16.mxu0 0
          %1167 = vmatpush1.bf16.msra.mxu0 0
          %1168 = vmatprep.subr.bf16.mxu0 0
          %1169 = vmatpush1.bf16.msra.mxu0 0
          %1170 = vmatprep.subr.bf16.mxu0 0
          %1171 = vmatpush1.bf16.msra.mxu0 0
          %1172 = vmatprep.mubr.bf16.mxu0 %v1138
          %1173 = vmatmul.mubr.bf16.gmra.mrb[0].mxu0 %v1061
          %v1174 = vpop.f32.mrb[0].mxu0
          %v1175 = vadd.f32 %v1056, %v1174
          %v1176 = vpop.f32.mrb[0].mxu0
          %v1177 = vpop.f32.mrb[0].mxu0
          %v1178 = vpop.f32.mrb[0].mxu0
          %1179 = vdwg.mxu0
          %v1180 = vld [vmem:[#allocation8] sm:$0x1]
          %v1181 = vld [vmem:[#allocation10] sm:$0x1]
          %v1182 = vadd.f32 %v1180, %v1181
          %v1183 = vld [vmem:[#allocation10 + $0x1] sm:$0xf]
          %v1184 = vadd.f32 %v1175, %v1183
          %v1186 = vrot.slane %v1183, 4
          %v1188 = vadd.f32 %v1175, %v1186
          %v1190 = vrot.slane %v1184, 7
          %v1193 = vlaneseq
          %v1194 = vshrl.u32 %v1193, 7
          %v1195 = vsub.s32 0, %v1194
          %v1196 = vrot.slane %v1182, %v1195
          %v1199 = vrot.slane %v1188, 6
          %vm1201 = vcmask 1040384
          %v1202 = vsel %vm1201, %v1182, %v1190
          %vm1203 = vcmask 1044480
          %v1204 = vsel %vm1203, %v1202, %v1196
          %vm1205 = vcmask 1045504
          %v1206 = vsel %vm1205, %v1204, %v1199
          %1207 = vst [vmem:[#allocation2] sm:$0xff] %v1206
          %1208 = vst [vmem:[#allocation2 + $0x8] sm:$0x3] %v1199
        $region148: #{tpu_custom_call.1} parent=99 // pred_fallthru
          _
        %v1209 = vld [vmem:[#allocation2] sm:$0xff]
        %v1210 = vld [vmem:[#allocation2 + $0x8] sm:$0x3]
        %v1211 = vld [vmem:[%s847] sm:$0x1]
        %v1212 = vld [vmem:[%s855] sm:$0x1]
        %1213 = vadd.xlane.f32.xlu0 %v1209
        %v1214 = vpop.xlane.xlu0 %1213
        %vm1215 = vcmask 1041408
        %v1216 = vsel %vm1215, %v1210, 0.0
        %1217 = vadd.xlane.f32.xlu0 %v1216
        %v1218 = vpop.xlane.xlu0 %1217
        %v1219 = vrcp.pop 128.0
        %v1220 = vmul.f32 %v1214, %v1219
        %v1221 = vmul.f32 %v1218, %v1219
        %v1222 = vsub.f32 %v1209, %v1220
        %v1223 = vsub.f32 %v1210, %v1221
        %v1224 = vmul.f32 %v1222, %v1222
        %v1225 = vmul.f32 %v1223, %v1223
        %1226 = vadd.xlane.f32.xlu0 %v1224
        %v1227 = vpop.xlane.xlu0 %1226
        %v1228 = vsel %vm1215, %v1225, 0.0
        %1229 = vadd.xlane.f32.xlu0 %v1228
        %v1230 = vpop.xlane.xlu0 %1229
        %v1231 = vmul.f32 %v1227, %v1219
        %v1232 = vmul.f32 %v1230, %v1219
        %v1233 = vadd.f32 %v1231, 1e-06
        %v1234 = vadd.f32 %v1232, 1e-06
        %v1235 = vrsqrt.pop %v1233
        %v1236 = vrsqrt.pop %v1234
        %v1237 = vmul.f32 %v1222, %v1235
        %v1238 = vmul.f32 %v1223, %v1236
        %v1240 = vlaneseq
        %v1241 = vshrl.u32 %v1240, 7
        %v1242 = vsub.s32 0, %v1241
        %v1243 = vrot.slane %v1211, %v1242
        %v1245 = vmul.f32 %v1237, %v1243
        %v1246 = vmul.f32 %v1238, %v1243
        %v1248 = vlaneseq
        %v1249 = vshrl.u32 %v1248, 7
        %v1250 = vsub.s32 0, %v1249
        %v1251 = vrot.slane %v1212, %v1250
        %v1253 = vadd.f32 %v1245, %v1251
        %v1254 = vadd.f32 %v1246, %v1251
        %v1255 = vld [vmem:[%s864] sm:$0xff]
        %v1256 = vld [vmem:[%s864 + $0x8] sm:$0xf]
        %v1257 = vld [vmem:[%s864 + $0xc] sm:$0xff]
        %v1258 = vld [vmem:[%s864 + $0x14] sm:$0xf]
        %v1259 = vld [vmem:[%s864 + $0x18] sm:$0xff]
        %v1260 = vld [vmem:[%s864 + $0x20] sm:$0xf]
        %v1261 = vld [vmem:[%s864 + $0x24] sm:$0xff]
        %v1262 = vld [vmem:[%s864 + $0x2c] sm:$0xf]
        %v1263 = vld [vmem:[%s864 + $0x30] sm:$0xff]
        %v1264 = vld [vmem:[%s864 + $0x38] sm:$0xf]
        %v1265 = vld [vmem:[%s864 + $0x3c] sm:$0xff]
        %v1266 = vld [vmem:[%s864 + $0x44] sm:$0xf]
        %v1267 = vld [vmem:[%s864 + $0x48] sm:$0xff]
        %v1268 = vld [vmem:[%s864 + $0x50] sm:$0xf]
        %v1269 = vld [vmem:[%s864 + $0x54] sm:$0xff]
        %v1270 = vld [vmem:[%s864 + $0x5c] sm:$0xf]
        %v1271 = vld [vmem:[%s864 + $0x60] sm:$0xff]
        %v1272 = vld [vmem:[%s864 + $0x68] sm:$0xf]
        %v1273 = vld [vmem:[%s864 + $0x6c] sm:$0xff]
        %v1274 = vld [vmem:[%s864 + $0x74] sm:$0xf]
        %v1275 = vld [vmem:[%s864 + $0x78] sm:$0xff]
        %v1276 = vld [vmem:[%s864 + $0x80] sm:$0xf]
        %v1277 = vld [vmem:[%s864 + $0x84] sm:$0xff]
        %v1278 = vld [vmem:[%s864 + $0x8c] sm:$0xf]
        %v1279 = vld [vmem:[%s864 + $0x90] sm:$0xff]
        %v1280 = vld [vmem:[%s864 + $0x98] sm:$0xf]
        %v1281 = vld [vmem:[%s864 + $0x9c] sm:$0xff]
        %v1282 = vld [vmem:[%s864 + $0xa4] sm:$0xf]
        %v1283 = vld [vmem:[%s864 + $0xa8] sm:$0xff]
        %v1284 = vld [vmem:[%s864 + $0xb0] sm:$0xf]
        %v1285 = vld [vmem:[%s864 + $0xb4] sm:$0xff]
        %v1286 = vld [vmem:[%s864 + $0xbc] sm:$0xf]
        %v1287 = vpack.c.bf16 %v1254, %v1253
        %v1288 = vld [vmem:[%s999] sm:$0x7]
        %v1290 = vlaneseq
        %v1291 = vshrl.u32 %v1290, 7
        %v1292 = vsub.s32 0, %v1291
        %v1293 = vrot.slane %v1288, %v1292
        %v1294 = vlaneseq
        %v1295 = vshrl.u32 %v1294, 7
        %v1296 = vsub.s32 1, %v1295
        %v1297 = vrot.slane %v1288, %v1296
        %v1298 = vlaneseq
        %v1299 = vshrl.u32 %v1298, 7
        %v1300 = vsub.s32 2, %v1299
        %v1301 = vrot.slane %v1288, %v1300
        %v1337 = vunpack.c.l.b16 %v1255
        %v1338 = vunpack.c.h.b16 %v1255
        %v1339 = vunpack.c.l.b16 %v1256
        %v1340 = vunpack.c.l.b16 %v1257
        %v1341 = vunpack.c.h.b16 %v1257
        %v1342 = vunpack.c.l.b16 %v1258
        %v1343 = vunpack.c.l.b16 %v1259
        %v1344 = vunpack.c.h.b16 %v1259
        %v1345 = vunpack.c.l.b16 %v1260
        %v1346 = vunpack.c.l.b16 %v1261
        %v1347 = vunpack.c.h.b16 %v1261
        %v1348 = vunpack.c.l.b16 %v1262
        %v1349 = vunpack.c.l.b16 %v1263
        %v1350 = vunpack.c.h.b16 %v1263
        %v1351 = vunpack.c.l.b16 %v1264
        %v1352 = vunpack.c.l.b16 %v1265
        %v1353 = vunpack.c.h.b16 %v1265
        %v1354 = vunpack.c.l.b16 %v1266
        %v1355 = vunpack.c.l.b16 %v1267
        %v1356 = vunpack.c.h.b16 %v1267
        %v1357 = vunpack.c.l.b16 %v1268
        %v1358 = vunpack.c.l.b16 %v1269
        %v1359 = vunpack.c.h.b16 %v1269
        %v1360 = vunpack.c.l.b16 %v1270
        %v1361 = vunpack.c.l.b16 %v1271
        %v1362 = vunpack.c.h.b16 %v1271
        %v1363 = vunpack.c.l.b16 %v1272
        %v1364 = vunpack.c.l.b16 %v1273
        %v1365 = vunpack.c.h.b16 %v1273
        %v1366 = vunpack.c.l.b16 %v1274
        %v1367 = vunpack.c.l.b16 %v1275
        %v1368 = vunpack.c.h.b16 %v1275
        %v1369 = vunpack.c.l.b16 %v1276
        %v1370 = vunpack.c.l.b16 %v1277
        %v1371 = vunpack.c.h.b16 %v1277
        %v1372 = vunpack.c.l.b16 %v1278
        %v1373 = vunpack.c.l.b16 %v1279
        %v1374 = vunpack.c.h.b16 %v1279
        %v1375 = vunpack.c.l.b16 %v1280
        %v1376 = vunpack.c.l.b16 %v1281
        %v1377 = vunpack.c.h.b16 %v1281
        %v1378 = vunpack.c.l.b16 %v1282
        %v1379 = vunpack.c.l.b16 %v1283
        %v1380 = vunpack.c.h.b16 %v1283
        %v1381 = vunpack.c.l.b16 %v1284
        %v1382 = vunpack.c.l.b16 %v1285
        %v1383 = vunpack.c.h.b16 %v1285
        %v1384 = vunpack.c.l.b16 %v1286
        %v1385 = vpack.c.b16 %v1340, %v1337
        %v1386 = vpack.c.b16 %v1341, %v1338
        %v1387 = vpack.c.b16 %v1342, %v1339
        %v1388 = vpack.c.b16 %v1346, %v1343
        %v1389 = vpack.c.b16 %v1347, %v1344
        %v1390 = vpack.c.b16 %v1348, %v1345
        %v1391 = vpack.c.b16 %v1352, %v1349
        %v1392 = vpack.c.b16 %v1353, %v1350
        %v1393 = vpack.c.b16 %v1354, %v1351
        %v1394 = vpack.c.b16 %v1358, %v1355
        %v1395 = vpack.c.b16 %v1359, %v1356
        %v1396 = vpack.c.b16 %v1360, %v1357
        %v1397 = vpack.c.b16 %v1364, %v1361
        %v1398 = vpack.c.b16 %v1365, %v1362
        %v1399 = vpack.c.b16 %v1366, %v1363
        %v1400 = vpack.c.b16 %v1370, %v1367
        %v1401 = vpack.c.b16 %v1371, %v1368
        %v1402 = vpack.c.b16 %v1372, %v1369
        %v1403 = vpack.c.b16 %v1376, %v1373
        %v1404 = vpack.c.b16 %v1377, %v1374
        %v1405 = vpack.c.b16 %v1378, %v1375
        %v1406 = vpack.c.b16 %v1382, %v1379
        %v1407 = vpack.c.b16 %v1383, %v1380
        %v1408 = vpack.c.b16 %v1384, %v1381
        %1433 = vmatprep.subr.bf16.mxu0 %v1386
        %1434 = vmatpush1.bf16.msra.mxu0 %v1385
        %1435 = vmatprep.subr.bf16.mxu0 %v1389
        %1436 = vmatpush1.bf16.msra.mxu0 %v1388
        %1437 = vmatprep.subr.bf16.mxu0 %v1392
        %1438 = vmatpush1.bf16.msra.mxu0 %v1391
        %1439 = vmatprep.subr.bf16.mxu0 %v1395
        %1440 = vmatpush1.bf16.msra.mxu0 %v1394
        %1441 = vmatprep.subr.bf16.mxu0 %v1398
        %1442 = vmatpush1.bf16.msra.mxu0 %v1397
        %1443 = vmatprep.subr.bf16.mxu0 %v1401
        %1444 = vmatpush1.bf16.msra.mxu0 %v1400
        %1445 = vmatprep.subr.bf16.mxu0 %v1404
        %1446 = vmatpush1.bf16.msra.mxu0 %v1403
        %1447 = vmatprep.subr.bf16.mxu0 %v1407
        %1448 = vmatpush1.bf16.msra.mxu0 %v1406
        %1449 = vmatprep.subr.bf16.mxu0 0
        %1450 = vmatpush1.bf16.msra.mxu0 0
        %1451 = vmatprep.subr.bf16.mxu0 0
        %1452 = vmatpush1.bf16.msra.mxu0 0
        %1453 = vmatprep.subr.bf16.mxu0 0
        %1454 = vmatpush1.bf16.msra.mxu0 0
        %1455 = vmatprep.subr.bf16.mxu0 0
        %1456 = vmatpush1.bf16.msra.mxu0 0
        %1457 = vmatprep.subr.bf16.mxu0 0
        %1458 = vmatpush1.bf16.msra.mxu0 0
        %1459 = vmatprep.subr.bf16.mxu0 0
        %1460 = vmatpush1.bf16.msra.mxu0 0
        %1461 = vmatprep.subr.bf16.mxu0 0
        %1462 = vmatpush1.bf16.msra.mxu0 0
        %1463 = vmatprep.subr.bf16.mxu0 0
        %1464 = vmatpush1.bf16.msra.mxu0 0
        %1465 = vmatprep.mubr.bf16.mxu0 0
        %1466 = vmatmul.mubr.bf16.gmra.mrb[0].mxu0 %v1287
        %v1467 = vpop.f32.mrb[0].mxu0
        %v1468 = vadd.f32 %v1293, %v1467
        %v1469 = vpop.f32.mrb[0].mxu0
        %v1470 = vadd.f32 %v1297, %v1469
        %v1471 = vpop.f32.mrb[0].mxu0
        %v1472 = vadd.f32 %v1293, %v1471
        %v1473 = vpop.f32.mrb[0].mxu0
        %v1474 = vadd.f32 %v1297, %v1473
        %1475 = vdwg.mxu0
        %1476 = vmatprep.subr.bf16.mxu0 0
        %1477 = vmatpush1.bf16.msra.mxu0 %v1387
        %1478 = vmatprep.subr.bf16.mxu0 0
        %1479 = vmatpush1.bf16.msra.mxu0 %v1390
        %1480 = vmatprep.subr.bf16.mxu0 0
        %1481 = vmatpush1.bf16.msra.mxu0 %v1393
        %1482 = vmatprep.subr.bf16.mxu0 0
        %1483 = vmatpush1.bf16.msra.mxu0 %v1396
        %1484 = vmatprep.subr.bf16.mxu0 0
        %1485 = vmatpush1.bf16.msra.mxu0 %v1399
        %1486 = vmatprep.subr.bf16.mxu0 0
        %1487 = vmatpush1.bf16.msra.mxu0 %v1402
        %1488 = vmatprep.subr.bf16.mxu0 0
        %1489 = vmatpush1.bf16.msra.mxu0 %v1405
        %1490 = vmatprep.subr.bf16.mxu0 0
        %1491 = vmatpush1.bf16.msra.mxu0 %v1408
        %1492 = vmatprep.subr.bf16.mxu0 0
        %1493 = vmatpush1.bf16.msra.mxu0 0
        %1494 = vmatprep.subr.bf16.mxu0 0
        %1495 = vmatpush1.bf16.msra.mxu0 0
        %1496 = vmatprep.subr.bf16.mxu0 0
        %1497 = vmatpush1.bf16.msra.mxu0 0
        %1498 = vmatprep.subr.bf16.mxu0 0
        %1499 = vmatpush1.bf16.msra.mxu0 0
        %1500 = vmatprep.subr.bf16.mxu0 0
        %1501 = vmatpush1.bf16.msra.mxu0 0
        %1502 = vmatprep.subr.bf16.mxu0 0
        %1503 = vmatpush1.bf16.msra.mxu0 0
        %1504 = vmatprep.subr.bf16.mxu0 0
        %1505 = vmatpush1.bf16.msra.mxu0 0
        %1506 = vmatprep.subr.bf16.mxu0 0
        %1507 = vmatpush1.bf16.msra.mxu0 0
        %1508 = vmatprep.mubr.bf16.mxu0 0
        %1509 = vmatmul.mubr.bf16.gmra.mrb[0].mxu0 %v1287
        %v1510 = vpop.f32.mrb[0].mxu0
        %v1511 = vadd.f32 %v1301, %v1510
        %v1512 = vpop.f32.mrb[0].mxu0
        %v1513 = vpop.f32.mrb[0].mxu0
        %v1514 = vadd.f32 %v1301, %v1513
        %v1515 = vpop.f32.mrb[0].mxu0
        %1516 = vdwg.mxu0
        %v1517 = vld [vmem:[%s5] sm:$0xff]
        %v1518 = vld [vmem:[%s5 + $0x8] sm:$0x3]
        %v1519 = vpack.c.bf16 %v1472, %v1468
        %v1520 = vpack.c.bf16 %v1474, %v1470
        %vm1521 = vcmask 261120
        %v1523 = vsel %vm1521, %v1519, 0
        %v1526 = vsel %vm1521, %v1520, 0
        %1528 = vmatprep.subr.bf16.mxu0 0
        %1529 = vmatpush1.bf16.xpose.msra.mxu0 %v1526
        %1530 = vmatprep.subr.bf16.mxu0 0
        %1531 = vmatpush1.bf16.xpose.msra.mxu0 0
        %1532 = vmatprep.subr.bf16.mxu0 0
        %1533 = vmatpush1.bf16.xpose.msra.mxu0 0
        %1534 = vmatprep.subr.bf16.mxu0 0
        %1535 = vmatpush1.bf16.xpose.msra.mxu0 0
        %1536 = vmatprep.subr.bf16.mxu0 0
        %1537 = vmatpush1.bf16.xpose.msra.mxu0 0
        %1538 = vmatprep.subr.bf16.mxu0 0
        %1539 = vmatpush1.bf16.xpose.msra.mxu0 0
        %1540 = vmatprep.subr.bf16.mxu0 0
        %1541 = vmatpush1.bf16.xpose.msra.mxu0 0
        %1542 = vmatprep.subr.bf16.mxu0 0
        %1543 = vmatpush1.bf16.xpose.msra.mxu0 0
        %1544 = vmatprep.subr.bf16.mxu0 0
        %1545 = vmatpush1.bf16.xpose.msra.mxu0 0
        %1546 = vmatprep.subr.bf16.mxu0 0
        %1547 = vmatpush1.bf16.xpose.msra.mxu0 0
        %1548 = vmatprep.subr.bf16.mxu0 0
        %1549 = vmatpush1.bf16.xpose.msra.mxu0 0
        %1550 = vmatprep.subr.bf16.mxu0 0
        %1551 = vmatpush1.bf16.xpose.msra.mxu0 0
        %1552 = vmatprep.subr.bf16.mxu0 0
        %1553 = vmatpush1.bf16.xpose.msra.mxu0 0
        %1554 = vmatprep.subr.bf16.mxu0 0
        %1555 = vmatpush1.bf16.xpose.msra.mxu0 0
        %1556 = vmatprep.subr.bf16.mxu0 0
        %1557 = vmatpush1.bf16.xpose.msra.mxu0 0
        %1558 = vmatprep.subr.bf16.mxu0 0
        %1559 = vmatpush1.bf16.xpose.msra.mxu0 0
        %1560 = vmatprep.mubr.bf16.mxu0 0
        %1561 = vmatmul.mubr.bf16.gmra.mrb[0].mxu0 %v1523
        %v1562 = vpop.f32.mrb[0].mxu0
        %v1563 = vadd.f32 0.0, %v1562
        %v1564 = vpop.f32.mrb[0].mxu0
        %v1565 = vpop.f32.mrb[0].mxu0
        %v1566 = vadd.f32 0.0, %v1565
        %v1567 = vpop.f32.mrb[0].mxu0
        %1568 = vdwg.mxu0
        %v1569 = vmul.f32 %v1563, 0.17677669
        %v1570 = vmul.f32 %v1566, 0.17677669
        %v1571 = vadd.f32 %v1569, %v1517
        %v1572 = vadd.f32 %v1570, %v1518
        %vm1573 = vcmask 80896
        %v1574 = vsel %vm1573, %v1571, -inf
        %1575 = vmax.xlane.f32.xlu0 %v1574
        %v1576 = vpop.xlane.xlu0 %1575
        %vm1577 = vcmask 74752
        %v1578 = vsel %vm1577, %v1572, -inf
        %1579 = vmax.xlane.f32.xlu0 %v1578
        %v1580 = vpop.xlane.xlu0 %1579
        %v1581 = vsub.f32 %v1571, %v1576
        %v1582 = vsub.f32 %v1572, %v1580
        %v1583 = vmul.f32 %v1581, 1.442695
        %v1584 = vpow.pop %v1583
        %v1585 = vmul.f32 %v1582, 1.442695
        %v1586 = vpow.pop %v1585
        %v1587 = vsel %vm1573, %v1584, 0.0
        %1588 = vadd.xlane.f32.xlu0 %v1587
        %v1589 = vpop.xlane.xlu0 %1588
        %v1590 = vsel %vm1577, %v1586, 0.0
        %1591 = vadd.xlane.f32.xlu0 %v1590
        %v1592 = vpop.xlane.xlu0 %1591
        %v1593 = vrcp.pop %v1589
        %v1594 = vrcp.pop %v1592
        %v1595 = vmul.f32 %v1584, %v1593
        %v1596 = vmul.f32 %v1586, %v1594
        %v1597 = vpack.c.bf16 %v1596, %v1595
        %v1598 = vpack.c.bf16 %v1514, %v1511
        %v1600 = vsel %vm1573, %v1597, 0
        %vm1602 = vcmask 1044480
        %v1604 = vsel %vm1602, %v1598, 0
        %1606 = vmatprep.subr.bf16.mxu0 0
        %1607 = vmatpush1.bf16.msra.mxu0 %v1604
        %1608 = vmatprep.subr.bf16.mxu0 0
        %1609 = vmatpush1.bf16.msra.mxu0 0
        %1610 = vmatprep.subr.bf16.mxu0 0
        %1611 = vmatpush1.bf16.msra.mxu0 0
        %1612 = vmatprep.subr.bf16.mxu0 0
        %1613 = vmatpush1.bf16.msra.mxu0 0
        %1614 = vmatprep.subr.bf16.mxu0 0
        %1615 = vmatpush1.bf16.msra.mxu0 0
        %1616 = vmatprep.subr.bf16.mxu0 0
        %1617 = vmatpush1.bf16.msra.mxu0 0
        %1618 = vmatprep.subr.bf16.mxu0 0
        %1619 = vmatpush1.bf16.msra.mxu0 0
        %1620 = vmatprep.subr.bf16.mxu0 0
        %1621 = vmatpush1.bf16.msra.mxu0 0
        %1622 = vmatprep.subr.bf16.mxu0 0
        %1623 = vmatpush1.bf16.msra.mxu0 0
        %1624 = vmatprep.subr.bf16.mxu0 0
        %1625 = vmatpush1.bf16.msra.mxu0 0
        %1626 = vmatprep.subr.bf16.mxu0 0
        %1627 = vmatpush1.bf16.msra.mxu0 0
        %1628 = vmatprep.subr.bf16.mxu0 0
        %1629 = vmatpush1.bf16.msra.mxu0 0
        %1630 = vmatprep.subr.bf16.mxu0 0
        %1631 = vmatpush1.bf16.msra.mxu0 0
        %1632 = vmatprep.subr.bf16.mxu0 0
        %1633 = vmatpush1.bf16.msra.mxu0 0
        %1634 = vmatprep.subr.bf16.mxu0 0
        %1635 = vmatpush1.bf16.msra.mxu0 0
        %1636 = vmatprep.subr.bf16.mxu0 0
        %1637 = vmatpush1.bf16.msra.mxu0 0
        %1638 = vmatprep.mubr.bf16.mxu0 0
        %1639 = vmatmul.mubr.bf16.gmra.mrb[0].mxu0 %v1600
        %v1640 = vpop.f32.mrb[0].mxu0
        %v1641 = vadd.f32 0.0, %v1640
        %v1642 = vpop.f32.mrb[0].mxu0
        %v1643 = vpop.f32.mrb[0].mxu0
        %v1644 = vadd.f32 0.0, %v1643
        %v1645 = vpop.f32.mrb[0].mxu0
        %1646 = vdwg.mxu0
        %1648 = vrot.lane.b32.xlu0 %v1519, 96
        %v1649 = vpop.permute.xlu0 %1648
        %1651 = vrot.lane.b32.xlu0 %v1520, 96
        %v1652 = vpop.permute.xlu0 %1651
        %v1654 = vsel %vm1521, %v1649, 0
        %v1657 = vsel %vm1521, %v1652, 0
        %1659 = vmatprep.subr.bf16.mxu0 0
        %1660 = vmatpush1.bf16.xpose.msra.mxu0 %v1657
        %1661 = vmatprep.subr.bf16.mxu0 0
        %1662 = vmatpush1.bf16.xpose.msra.mxu0 0
        %1663 = vmatprep.subr.bf16.mxu0 0
        %1664 = vmatpush1.bf16.xpose.msra.mxu0 0
        %1665 = vmatprep.subr.bf16.mxu0 0
        %1666 = vmatpush1.bf16.xpose.msra.mxu0 0
        %1667 = vmatprep.subr.bf16.mxu0 0
        %1668 = vmatpush1.bf16.xpose.msra.mxu0 0
        %1669 = vmatprep.subr.bf16.mxu0 0
        %1670 = vmatpush1.bf16.xpose.msra.mxu0 0
        %1671 = vmatprep.subr.bf16.mxu0 0
        %1672 = vmatpush1.bf16.xpose.msra.mxu0 0
        %1673 = vmatprep.subr.bf16.mxu0 0
        %1674 = vmatpush1.bf16.xpose.msra.mxu0 0
        %1675 = vmatprep.subr.bf16.mxu0 0
        %1676 = vmatpush1.bf16.xpose.msra.mxu0 0
        %1677 = vmatprep.subr.bf16.mxu0 0
        %1678 = vmatpush1.bf16.xpose.msra.mxu0 0
        %1679 = vmatprep.subr.bf16.mxu0 0
        %1680 = vmatpush1.bf16.xpose.msra.mxu0 0
        %1681 = vmatprep.subr.bf16.mxu0 0
        %1682 = vmatpush1.bf16.xpose.msra.mxu0 0
        %1683 = vmatprep.subr.bf16.mxu0 0
        %1684 = vmatpush1.bf16.xpose.msra.mxu0 0
        %1685 = vmatprep.subr.bf16.mxu0 0
        %1686 = vmatpush1.bf16.xpose.msra.mxu0 0
        %1687 = vmatprep.subr.bf16.mxu0 0
        %1688 = vmatpush1.bf16.xpose.msra.mxu0 0
        %1689 = vmatprep.subr.bf16.mxu0 0
        %1690 = vmatpush1.bf16.xpose.msra.mxu0 0
        %1691 = vmatprep.mubr.bf16.mxu0 0
        %1692 = vmatmul.mubr.bf16.gmra.mrb[0].mxu0 %v1654
        %v1693 = vpop.f32.mrb[0].mxu0
        %v1694 = vadd.f32 0.0, %v1693
        %v1695 = vpop.f32.mrb[0].mxu0
        %v1696 = vpop.f32.mrb[0].mxu0
        %v1697 = vadd.f32 0.0, %v1696
        %v1698 = vpop.f32.mrb[0].mxu0
        %1699 = vdwg.mxu0
        %v1700 = vmul.f32 %v1694, 0.17677669
        %v1701 = vmul.f32 %v1697, 0.17677669
        %v1702 = vadd.f32 %v1700, %v1517
        %v1703 = vadd.f32 %v1701, %v1518
        %v1704 = vsel %vm1573, %v1702, -inf
        %1705 = vmax.xlane.f32.xlu0 %v1704
        %v1706 = vpop.xlane.xlu0 %1705
        %v1707 = vsel %vm1577, %v1703, -inf
        %1708 = vmax.xlane.f32.xlu0 %v1707
        %v1709 = vpop.xlane.xlu0 %1708
        %v1710 = vsub.f32 %v1702, %v1706
        %v1711 = vsub.f32 %v1703, %v1709
        %v1712 = vmul.f32 %v1710, 1.442695
        %v1713 = vpow.pop %v1712
        %v1714 = vmul.f32 %v1711, 1.442695
        %v1715 = vpow.pop %v1714
        %v1716 = vsel %vm1573, %v1713, 0.0
        %1717 = vadd.xlane.f32.xlu0 %v1716
        %v1718 = vpop.xlane.xlu0 %1717
        %v1719 = vsel %vm1577, %v1715, 0.0
        %1720 = vadd.xlane.f32.xlu0 %v1719
        %v1721 = vpop.xlane.xlu0 %1720
        %v1722 = vrcp.pop %v1718
        %v1723 = vrcp.pop %v1721
        %v1724 = vmul.f32 %v1713, %v1722
        %v1725 = vmul.f32 %v1715, %v1723
        %v1726 = vpack.c.bf16 %v1725, %v1724
        %1728 = vrot.lane.b32.xlu0 %v1598, 96
        %v1729 = vpop.permute.xlu0 %1728
        %v1731 = vsel %vm1573, %v1726, 0
        %v1734 = vsel %vm1602, %v1729, 0
        %1736 = vmatprep.subr.bf16.mxu0 0
        %1737 = vmatpush1.bf16.msra.mxu0 %v1734
        %1738 = vmatprep.subr.bf16.mxu0 0
        %1739 = vmatpush1.bf16.msra.mxu0 0
        %1740 = vmatprep.subr.bf16.mxu0 0
        %1741 = vmatpush1.bf16.msra.mxu0 0
        %1742 = vmatprep.subr.bf16.mxu0 0
        %1743 = vmatpush1.bf16.msra.mxu0 0
        %1744 = vmatprep.subr.bf16.mxu0 0
        %1745 = vmatpush1.bf16.msra.mxu0 0
        %1746 = vmatprep.subr.bf16.mxu0 0
        %1747 = vmatpush1.bf16.msra.mxu0 0
        %1748 = vmatprep.subr.bf16.mxu0 0
        %1749 = vmatpush1.bf16.msra.mxu0 0
        %1750 = vmatprep.subr.bf16.mxu0 0
        %1751 = vmatpush1.bf16.msra.mxu0 0
        %1752 = vmatprep.subr.bf16.mxu0 0
        %1753 = vmatpush1.bf16.msra.mxu0 0
        %1754 = vmatprep.subr.bf16.mxu0 0
        %1755 = vmatpush1.bf16.msra.mxu0 0
        %1756 = vmatprep.subr.bf16.mxu0 0
        %1757 = vmatpush1.bf16.msra.mxu0 0
        %1758 = vmatprep.subr.bf16.mxu0 0
        %1759 = vmatpush1.bf16.msra.mxu0 0
        %1760 = vmatprep.subr.bf16.mxu0 0
        %1761 = vmatpush1.bf16.msra.mxu0 0
        %1762 = vmatprep.subr.bf16.mxu0 0
        %1763 = vmatpush1.bf16.msra.mxu0 0
        %1764 = vmatprep.subr.bf16.mxu0 0
        %1765 = vmatpush1.bf16.msra.mxu0 0
        %1766 = vmatprep.subr.bf16.mxu0 0
        %1767 = vmatpush1.bf16.msra.mxu0 0
        %1768 = vmatprep.mubr.bf16.mxu0 0
        %1769 = vmatmul.mubr.bf16.gmra.mrb[0].mxu0 %v1731
        %v1770 = vpop.f32.mrb[0].mxu0
        %v1771 = vadd.f32 0.0, %v1770
        %v1772 = vpop.f32.mrb[0].mxu0
        %v1773 = vpop.f32.mrb[0].mxu0
        %v1774 = vadd.f32 0.0, %v1773
        %v1775 = vpop.f32.mrb[0].mxu0
        %1776 = vdwg.mxu0
        %1777 = vrot.lane.b32.xlu0 %v1519, 64
        %v1778 = vpop.permute.xlu0 %1777
        %1779 = vrot.lane.b32.xlu0 %v1520, 64
        %v1780 = vpop.permute.xlu0 %1779
        %v1782 = vsel %vm1521, %v1778, 0
        %v1785 = vsel %vm1521, %v1780, 0
        %1787 = vmatprep.subr.bf16.mxu0 0
        %1788 = vmatpush1.bf16.xpose.msra.mxu0 %v1785
        %1789 = vmatprep.subr.bf16.mxu0 0
        %1790 = vmatpush1.bf16.xpose.msra.mxu0 0
        %1791 = vmatprep.subr.bf16.mxu0 0
        %1792 = vmatpush1.bf16.xpose.msra.mxu0 0
        %1793 = vmatprep.subr.bf16.mxu0 0
        %1794 = vmatpush1.bf16.xpose.msra.mxu0 0
        %1795 = vmatprep.subr.bf16.mxu0 0
        %1796 = vmatpush1.bf16.xpose.msra.mxu0 0
        %1797 = vmatprep.subr.bf16.mxu0 0
        %1798 = vmatpush1.bf16.xpose.msra.mxu0 0
        %1799 = vmatprep.subr.bf16.mxu0 0
        %1800 = vmatpush1.bf16.xpose.msra.mxu0 0
        %1801 = vmatprep.subr.bf16.mxu0 0
        %1802 = vmatpush1.bf16.xpose.msra.mxu0 0
        %1803 = vmatprep.subr.bf16.mxu0 0
        %1804 = vmatpush1.bf16.xpose.msra.mxu0 0
        %1805 = vmatprep.subr.bf16.mxu0 0
        %1806 = vmatpush1.bf16.xpose.msra.mxu0 0
        %1807 = vmatprep.subr.bf16.mxu0 0
        %1808 = vmatpush1.bf16.xpose.msra.mxu0 0
        %1809 = vmatprep.subr.bf16.mxu0 0
        %1810 = vmatpush1.bf16.xpose.msra.mxu0 0
        %1811 = vmatprep.subr.bf16.mxu0 0
        %1812 = vmatpush1.bf16.xpose.msra.mxu0 0
        %1813 = vmatprep.subr.bf16.mxu0 0
        %1814 = vmatpush1.bf16.xpose.msra.mxu0 0
        %1815 = vmatprep.subr.bf16.mxu0 0
        %1816 = vmatpush1.bf16.xpose.msra.mxu0 0
        %1817 = vmatprep.subr.bf16.mxu0 0
        %1818 = vmatpush1.bf16.xpose.msra.mxu0 0
        %1819 = vmatprep.mubr.bf16.mxu0 0
        %1820 = vmatmul.mubr.bf16.gmra.mrb[0].mxu0 %v1782
        %v1821 = vpop.f32.mrb[0].mxu0
        %v1822 = vadd.f32 0.0, %v1821
        %v1823 = vpop.f32.mrb[0].mxu0
        %v1824 = vpop.f32.mrb[0].mxu0
        %v1825 = vadd.f32 0.0, %v1824
        %v1826 = vpop.f32.mrb[0].mxu0
        %1827 = vdwg.mxu0
        %v1828 = vmul.f32 %v1822, 0.17677669
        %v1829 = vmul.f32 %v1825, 0.17677669
        %v1830 = vadd.f32 %v1828, %v1517
        %v1831 = vadd.f32 %v1829, %v1518
        %v1832 = vsel %vm1573, %v1830, -inf
        %1833 = vmax.xlane.f32.xlu0 %v1832
        %v1834 = vpop.xlane.xlu0 %1833
        %v1835 = vsel %vm1577, %v1831, -inf
        %1836 = vmax.xlane.f32.xlu0 %v1835
        %v1837 = vpop.xlane.xlu0 %1836
        %v1838 = vsub.f32 %v1830, %v1834
        %v1839 = vsub.f32 %v1831, %v1837
        %v1840 = vmul.f32 %v1838, 1.442695
        %v1841 = vpow.pop %v1840
        %v1842 = vmul.f32 %v1839, 1.442695
        %v1843 = vpow.pop %v1842
        %v1844 = vsel %vm1573, %v1841, 0.0
        %1845 = vadd.xlane.f32.xlu0 %v1844
        %v1846 = vpop.xlane.xlu0 %1845
        %v1847 = vsel %vm1577, %v1843, 0.0
        %1848 = vadd.xlane.f32.xlu0 %v1847
        %v1849 = vpop.xlane.xlu0 %1848
        %v1850 = vrcp.pop %v1846
        %v1851 = vrcp.pop %v1849
        %v1852 = vmul.f32 %v1841, %v1850
        %v1853 = vmul.f32 %v1843, %v1851
        %v1854 = vpack.c.bf16 %v1853, %v1852
        %1855 = vrot.lane.b32.xlu0 %v1598, 64
        %v1856 = vpop.permute.xlu0 %1855
        %v1858 = vsel %vm1573, %v1854, 0
        %v1861 = vsel %vm1602, %v1856, 0
        %1863 = vmatprep.subr.bf16.mxu0 0
        %1864 = vmatpush1.bf16.msra.mxu0 %v1861
        %1865 = vmatprep.subr.bf16.mxu0 0
        %1866 = vmatpush1.bf16.msra.mxu0 0
        %1867 = vmatprep.subr.bf16.mxu0 0
        %1868 = vmatpush1.bf16.msra.mxu0 0
        %1869 = vmatprep.subr.bf16.mxu0 0
        %1870 = vmatpush1.bf16.msra.mxu0 0
        %1871 = vmatprep.subr.bf16.mxu0 0
        %1872 = vmatpush1.bf16.msra.mxu0 0
        %1873 = vmatprep.subr.bf16.mxu0 0
        %1874 = vmatpush1.bf16.msra.mxu0 0
        %1875 = vmatprep.subr.bf16.mxu0 0
        %1876 = vmatpush1.bf16.msra.mxu0 0
        %1877 = vmatprep.subr.bf16.mxu0 0
        %1878 = vmatpush1.bf16.msra.mxu0 0
        %1879 = vmatprep.subr.bf16.mxu0 0
        %1880 = vmatpush1.bf16.msra.mxu0 0
        %1881 = vmatprep.subr.bf16.mxu0 0
        %1882 = vmatpush1.bf16.msra.mxu0 0
        %1883 = vmatprep.subr.bf16.mxu0 0
        %1884 = vmatpush1.bf16.msra.mxu0 0
        %1885 = vmatprep.subr.bf16.mxu0 0
        %1886 = vmatpush1.bf16.msra.mxu0 0
        %1887 = vmatprep.subr.bf16.mxu0 0
        %1888 = vmatpush1.bf16.msra.mxu0 0
        %1889 = vmatprep.subr.bf16.mxu0 0
        %1890 = vmatpush1.bf16.msra.mxu0 0
        %1891 = vmatprep.subr.bf16.mxu0 0
        %1892 = vmatpush1.bf16.msra.mxu0 0
        %1893 = vmatprep.subr.bf16.mxu0 0
        %1894 = vmatpush1.bf16.msra.mxu0 0
        %1895 = vmatprep.mubr.bf16.mxu0 0
        %1896 = vmatmul.mubr.bf16.gmra.mrb[0].mxu0 %v1858
        %v1897 = vpop.f32.mrb[0].mxu0
        %v1898 = vadd.f32 0.0, %v1897
        %v1899 = vpop.f32.mrb[0].mxu0
        %v1900 = vpop.f32.mrb[0].mxu0
        %v1901 = vadd.f32 0.0, %v1900
        %v1902 = vpop.f32.mrb[0].mxu0
        %1903 = vdwg.mxu0
        %1904 = vrot.lane.b32.xlu0 %v1519, 32
        %v1905 = vpop.permute.xlu0 %1904
        %1906 = vrot.lane.b32.xlu0 %v1520, 32
        %v1907 = vpop.permute.xlu0 %1906
        %v1909 = vsel %vm1521, %v1905, 0
        %v1912 = vsel %vm1521, %v1907, 0
        %1914 = vmatprep.subr.bf16.mxu0 0
        %1915 = vmatpush1.bf16.xpose.msra.mxu0 %v1912
        %1916 = vmatprep.subr.bf16.mxu0 0
        %1917 = vmatpush1.bf16.xpose.msra.mxu0 0
        %1918 = vmatprep.subr.bf16.mxu0 0
        %1919 = vmatpush1.bf16.xpose.msra.mxu0 0
        %1920 = vmatprep.subr.bf16.mxu0 0
        %1921 = vmatpush1.bf16.xpose.msra.mxu0 0
        %1922 = vmatprep.subr.bf16.mxu0 0
        %1923 = vmatpush1.bf16.xpose.msra.mxu0 0
        %1924 = vmatprep.subr.bf16.mxu0 0
        %1925 = vmatpush1.bf16.xpose.msra.mxu0 0
        %1926 = vmatprep.subr.bf16.mxu0 0
        %1927 = vmatpush1.bf16.xpose.msra.mxu0 0
        %1928 = vmatprep.subr.bf16.mxu0 0
        %1929 = vmatpush1.bf16.xpose.msra.mxu0 0
        %1930 = vmatprep.subr.bf16.mxu0 0
        %1931 = vmatpush1.bf16.xpose.msra.mxu0 0
        %1932 = vmatprep.subr.bf16.mxu0 0
        %1933 = vmatpush1.bf16.xpose.msra.mxu0 0
        %1934 = vmatprep.subr.bf16.mxu0 0
        %1935 = vmatpush1.bf16.xpose.msra.mxu0 0
        %1936 = vmatprep.subr.bf16.mxu0 0
        %1937 = vmatpush1.bf16.xpose.msra.mxu0 0
        %1938 = vmatprep.subr.bf16.mxu0 0
        %1939 = vmatpush1.bf16.xpose.msra.mxu0 0
        %1940 = vmatprep.subr.bf16.mxu0 0
        %1941 = vmatpush1.bf16.xpose.msra.mxu0 0
        %1942 = vmatprep.subr.bf16.mxu0 0
        %1943 = vmatpush1.bf16.xpose.msra.mxu0 0
        %1944 = vmatprep.subr.bf16.mxu0 0
        %1945 = vmatpush1.bf16.xpose.msra.mxu0 0
        %1946 = vmatprep.mubr.bf16.mxu0 0
        %1947 = vmatmul.mubr.bf16.gmra.mrb[0].mxu0 %v1909
        %v1948 = vpop.f32.mrb[0].mxu0
        %v1949 = vadd.f32 0.0, %v1948
        %v1950 = vpop.f32.mrb[0].mxu0
        %v1951 = vpop.f32.mrb[0].mxu0
        %v1952 = vadd.f32 0.0, %v1951
        %v1953 = vpop.f32.mrb[0].mxu0
        %1954 = vdwg.mxu0
        %v1955 = vmul.f32 %v1949, 0.17677669
        %v1956 = vmul.f32 %v1952, 0.17677669
        %v1957 = vadd.f32 %v1955, %v1517
        %v1958 = vadd.f32 %v1956, %v1518
        %v1959 = vsel %vm1573, %v1957, -inf
        %1960 = vmax.xlane.f32.xlu0 %v1959
        %v1961 = vpop.xlane.xlu0 %1960
        %v1962 = vsel %vm1577, %v1958, -inf
        %1963 = vmax.xlane.f32.xlu0 %v1962
        %v1964 = vpop.xlane.xlu0 %1963
        %v1965 = vsub.f32 %v1957, %v1961
        %v1966 = vsub.f32 %v1958, %v1964
        %v1967 = vmul.f32 %v1965, 1.442695
        %v1968 = vpow.pop %v1967
        %v1969 = vmul.f32 %v1966, 1.442695
        %v1970 = vpow.pop %v1969
        %v1971 = vsel %vm1573, %v1968, 0.0
        %1972 = vadd.xlane.f32.xlu0 %v1971
        %v1973 = vpop.xlane.xlu0 %1972
        %v1974 = vsel %vm1577, %v1970, 0.0
        %1975 = vadd.xlane.f32.xlu0 %v1974
        %v1976 = vpop.xlane.xlu0 %1975
        %v1977 = vrcp.pop %v1973
        %v1978 = vrcp.pop %v1976
        %v1979 = vmul.f32 %v1968, %v1977
        %v1980 = vmul.f32 %v1970, %v1978
        %v1981 = vpack.c.bf16 %v1980, %v1979
        %1982 = vrot.lane.b32.xlu0 %v1598, 32
        %v1983 = vpop.permute.xlu0 %1982
        %v1985 = vsel %vm1573, %v1981, 0
        %v1988 = vsel %vm1602, %v1983, 0
        %1990 = vmatprep.subr.bf16.mxu0 0
        %1991 = vmatpush1.bf16.msra.mxu0 %v1988
        %1992 = vmatprep.subr.bf16.mxu0 0
        %1993 = vmatpush1.bf16.msra.mxu0 0
        %1994 = vmatprep.subr.bf16.mxu0 0
        %1995 = vmatpush1.bf16.msra.mxu0 0
        %1996 = vmatprep.subr.bf16.mxu0 0
        %1997 = vmatpush1.bf16.msra.mxu0 0
        %1998 = vmatprep.subr.bf16.mxu0 0
        %1999 = vmatpush1.bf16.msra.mxu0 0
        %2000 = vmatprep.subr.bf16.mxu0 0
        %2001 = vmatpush1.bf16.msra.mxu0 0
        %2002 = vmatprep.subr.bf16.mxu0 0
        %2003 = vmatpush1.bf16.msra.mxu0 0
        %2004 = vmatprep.subr.bf16.mxu0 0
        %2005 = vmatpush1.bf16.msra.mxu0 0
        %2006 = vmatprep.subr.bf16.mxu0 0
        %2007 = vmatpush1.bf16.msra.mxu0 0
        %2008 = vmatprep.subr.bf16.mxu0 0
        %2009 = vmatpush1.bf16.msra.mxu0 0
        %2010 = vmatprep.subr.bf16.mxu0 0
        %2011 = vmatpush1.bf16.msra.mxu0 0
        %2012 = vmatprep.subr.bf16.mxu0 0
        %2013 = vmatpush1.bf16.msra.mxu0 0
        %2014 = vmatprep.subr.bf16.mxu0 0
        %2015 = vmatpush1.bf16.msra.mxu0 0
        %2016 = vmatprep.subr.bf16.mxu0 0
        %2017 = vmatpush1.bf16.msra.mxu0 0
        %2018 = vmatprep.subr.bf16.mxu0 0
        %2019 = vmatpush1.bf16.msra.mxu0 0
        %2020 = vmatprep.subr.bf16.mxu0 0
        %2021 = vmatpush1.bf16.msra.mxu0 0
        %2022 = vmatprep.mubr.bf16.mxu0 0
        %2023 = vmatmul.mubr.bf16.gmra.mrb[0].mxu0 %v1985
        %v2024 = vpop.f32.mrb[0].mxu0
        %v2025 = vadd.f32 0.0, %v2024
        %v2026 = vpop.f32.mrb[0].mxu0
        %v2027 = vpop.f32.mrb[0].mxu0
        %v2028 = vadd.f32 0.0, %v2027
        %v2029 = vpop.f32.mrb[0].mxu0
        %2030 = vdwg.mxu0
        %2033 = vrot.lane.b32.xlu0 %v1771, 32
        %v2034 = vpop.permute.xlu0 %2033
        %2035 = vrot.lane.b32.xlu0 %v1774, 32
        %v2036 = vpop.permute.xlu0 %2035
        %2041 = vrot.lane.b32.xlu0 %v1898, 64
        %v2042 = vpop.permute.xlu0 %2041
        %2043 = vrot.lane.b32.xlu0 %v1901, 64
        %v2044 = vpop.permute.xlu0 %2043
        %2049 = vrot.lane.b32.xlu0 %v2025, 96
        %v2050 = vpop.permute.xlu0 %2049
        %2051 = vrot.lane.b32.xlu0 %v2028, 96
        %v2052 = vpop.permute.xlu0 %2051
        %v2055 = vsel %vm1521, %v1641, %v2034
        %v2056 = vsel %vm1521, %v1644, %v2036
        %vm2057 = vcmask 523264
        %v2058 = vsel %vm2057, %v2055, %v2042
        %v2059 = vsel %vm2057, %v2056, %v2044
        %vm2060 = vcmask 785408
        %v2061 = vsel %vm2060, %v2058, %v2050
        %v2062 = vsel %vm2060, %v2059, %v2052
        %v2063 = vld [vmem:[%s873] sm:$0xf]
        %v2064 = vld [vmem:[%s873 + $0x4] sm:$0xf]
        %v2065 = vld [vmem:[%s873 + $0x8] sm:$0xf]
        %v2066 = vld [vmem:[%s873 + $0xc] sm:$0xf]
        %v2067 = vld [vmem:[%s873 + $0x10] sm:$0xf]
        %v2068 = vld [vmem:[%s873 + $0x14] sm:$0xf]
        %v2069 = vld [vmem:[%s873 + $0x18] sm:$0xf]
        %v2070 = vld [vmem:[%s873 + $0x1c] sm:$0xf]
        %v2071 = vld [vmem:[%s873 + $0x20] sm:$0xf]
        %v2072 = vld [vmem:[%s873 + $0x24] sm:$0xf]
        %v2073 = vld [vmem:[%s873 + $0x28] sm:$0xf]
        %v2074 = vld [vmem:[%s873 + $0x2c] sm:$0xf]
        %v2075 = vld [vmem:[%s873 + $0x30] sm:$0xf]
        %v2076 = vld [vmem:[%s873 + $0x34] sm:$0xf]
        %v2077 = vld [vmem:[%s873 + $0x38] sm:$0xf]
        %v2078 = vld [vmem:[%s873 + $0x3c] sm:$0xf]
        %v2079 = vpack.c.bf16 %v2062, %v2061
        %v2096 = vunpack.c.l.b16 %v2063
        %v2097 = vunpack.c.l.b16 %v2064
        %v2098 = vunpack.c.l.b16 %v2065
        %v2099 = vunpack.c.l.b16 %v2066
        %v2100 = vunpack.c.l.b16 %v2067
        %v2101 = vunpack.c.l.b16 %v2068
        %v2102 = vunpack.c.l.b16 %v2069
        %v2103 = vunpack.c.l.b16 %v2070
        %v2104 = vunpack.c.l.b16 %v2071
        %v2105 = vunpack.c.l.b16 %v2072
        %v2106 = vunpack.c.l.b16 %v2073
        %v2107 = vunpack.c.l.b16 %v2074
        %v2108 = vunpack.c.l.b16 %v2075
        %v2109 = vunpack.c.l.b16 %v2076
        %v2110 = vunpack.c.l.b16 %v2077
        %v2111 = vunpack.c.l.b16 %v2078
        %v2112 = vpack.c.b16 %v2097, %v2096
        %v2113 = vpack.c.b16 %v2099, %v2098
        %v2114 = vpack.c.b16 %v2101, %v2100
        %v2115 = vpack.c.b16 %v2103, %v2102
        %v2116 = vpack.c.b16 %v2105, %v2104
        %v2117 = vpack.c.b16 %v2107, %v2106
        %v2118 = vpack.c.b16 %v2109, %v2108
        %v2119 = vpack.c.b16 %v2111, %v2110
        %2128 = vmatprep.subr.bf16.mxu0 0
        %2129 = vmatpush1.bf16.msra.mxu0 %v2112
        %2130 = vmatprep.subr.bf16.mxu0 0
        %2131 = vmatpush1.bf16.msra.mxu0 %v2113
        %2132 = vmatprep.subr.bf16.mxu0 0
        %2133 = vmatpush1.bf16.msra.mxu0 %v2114
        %2134 = vmatprep.subr.bf16.mxu0 0
        %2135 = vmatpush1.bf16.msra.mxu0 %v2115
        %2136 = vmatprep.subr.bf16.mxu0 0
        %2137 = vmatpush1.bf16.msra.mxu0 %v2116
        %2138 = vmatprep.subr.bf16.mxu0 0
        %2139 = vmatpush1.bf16.msra.mxu0 %v2117
        %2140 = vmatprep.subr.bf16.mxu0 0
        %2141 = vmatpush1.bf16.msra.mxu0 %v2118
        %2142 = vmatprep.subr.bf16.mxu0 0
        %2143 = vmatpush1.bf16.msra.mxu0 %v2119
        %2144 = vmatprep.subr.bf16.mxu0 0
        %2145 = vmatpush1.bf16.msra.mxu0 0
        %2146 = vmatprep.subr.bf16.mxu0 0
        %2147 = vmatpush1.bf16.msra.mxu0 0
        %2148 = vmatprep.subr.bf16.mxu0 0
        %2149 = vmatpush1.bf16.msra.mxu0 0
        %2150 = vmatprep.subr.bf16.mxu0 0
        %2151 = vmatpush1.bf16.msra.mxu0 0
        %2152 = vmatprep.subr.bf16.mxu0 0
        %2153 = vmatpush1.bf16.msra.mxu0 0
        %2154 = vmatprep.subr.bf16.mxu0 0
        %2155 = vmatpush1.bf16.msra.mxu0 0
        %2156 = vmatprep.subr.bf16.mxu0 0
        %2157 = vmatpush1.bf16.msra.mxu0 0
        %2158 = vmatprep.subr.bf16.mxu0 0
        %2159 = vmatpush1.bf16.msra.mxu0 0
        %2160 = vmatprep.mubr.bf16.mxu0 0
        %2161 = vmatmul.mubr.bf16.gmra.mrb[0].mxu0 %v2079
        %v2162 = vpop.f32.mrb[0].mxu0
        %v2163 = vadd.f32 0.0, %v2162
        %v2164 = vpop.f32.mrb[0].mxu0
        %v2165 = vpop.f32.mrb[0].mxu0
        %v2166 = vadd.f32 0.0, %v2165
        %v2167 = vpop.f32.mrb[0].mxu0
        %2168 = vdwg.mxu0
        %v2169 = vadd.f32 %v1209, %v2163
        %v2170 = vadd.f32 %v1210, %v2166
        %v2171 = vld [vmem:[%s1002] sm:$0x1]
        %v2173 = vlaneseq
        %v2174 = vshrl.u32 %v2173, 7
        %v2175 = vsub.s32 0, %v2174
        %v2176 = vrot.slane %v2171, %v2175
        %v2178 = vadd.f32 %v2169, %v2176
        %v2179 = vadd.f32 %v2170, %v2176
        %v2180 = vld [vmem:[%s1005] sm:$0x1]
        %v2181 = vld [vmem:[%s1008] sm:$0x1]
        %2182 = vadd.xlane.f32.xlu0 %v2178
        %v2183 = vpop.xlane.xlu0 %2182
        %v2184 = vsel %vm1215, %v2179, 0.0
        %2185 = vadd.xlane.f32.xlu0 %v2184
        %v2186 = vpop.xlane.xlu0 %2185
        %v2187 = vmul.f32 %v2183, %v1219
        %v2188 = vmul.f32 %v2186, %v1219
        %v2189 = vsub.f32 %v2178, %v2187
        %v2190 = vsub.f32 %v2179, %v2188
        %v2191 = vmul.f32 %v2189, %v2189
        %v2192 = vmul.f32 %v2190, %v2190
        %2193 = vadd.xlane.f32.xlu0 %v2191
        %v2194 = vpop.xlane.xlu0 %2193
        %v2195 = vsel %vm1215, %v2192, 0.0
        %2196 = vadd.xlane.f32.xlu0 %v2195
        %v2197 = vpop.xlane.xlu0 %2196
        %v2198 = vmul.f32 %v2194, %v1219
        %v2199 = vmul.f32 %v2197, %v1219
        %v2200 = vadd.f32 %v2198, 1e-06
        %v2201 = vadd.f32 %v2199, 1e-06
        %v2202 = vrsqrt.pop %v2200
        %v2203 = vrsqrt.pop %v2201
        %v2204 = vmul.f32 %v2189, %v2202
        %v2205 = vmul.f32 %v2190, %v2203
        %v2207 = vlaneseq
        %v2208 = vshrl.u32 %v2207, 7
        %v2209 = vsub.s32 0, %v2208
        %v2210 = vrot.slane %v2180, %v2209
        %v2212 = vmul.f32 %v2204, %v2210
        %v2213 = vmul.f32 %v2205, %v2210
        %v2215 = vlaneseq
        %v2216 = vshrl.u32 %v2215, 7
        %v2217 = vsub.s32 0, %v2216
        %v2218 = vrot.slane %v2181, %v2217
        %v2220 = vadd.f32 %v2212, %v2218
        %v2221 = vadd.f32 %v2213, %v2218
        %v2222 = vld [vmem:[%s882] sm:$0xff]
        %v2223 = vld [vmem:[%s882 + $0x8] sm:$0xff]
        %v2224 = vld [vmem:[%s882 + $0x10] sm:$0xff]
        %v2225 = vld [vmem:[%s882 + $0x18] sm:$0xff]
        %v2226 = vld [vmem:[%s882 + $0x20] sm:$0xff]
        %v2227 = vld [vmem:[%s882 + $0x28] sm:$0xff]
        %v2228 = vld [vmem:[%s882 + $0x30] sm:$0xff]
        %v2229 = vld [vmem:[%s882 + $0x38] sm:$0xff]
        %v2230 = vld [vmem:[%s882 + $0x40] sm:$0xff]
        %v2231 = vld [vmem:[%s882 + $0x48] sm:$0xff]
        %v2232 = vld [vmem:[%s882 + $0x50] sm:$0xff]
        %v2233 = vld [vmem:[%s882 + $0x58] sm:$0xff]
        %v2234 = vld [vmem:[%s882 + $0x60] sm:$0xff]
        %v2235 = vld [vmem:[%s882 + $0x68] sm:$0xff]
        %v2236 = vld [vmem:[%s882 + $0x70] sm:$0xff]
        %v2237 = vld [vmem:[%s882 + $0x78] sm:$0xff]
        %v2238 = vld [vmem:[%s882 + $0x80] sm:$0xff]
        %v2239 = vld [vmem:[%s882 + $0x88] sm:$0xff]
        %v2240 = vld [vmem:[%s882 + $0x90] sm:$0xff]
        %v2241 = vld [vmem:[%s882 + $0x98] sm:$0xff]
        %v2242 = vld [vmem:[%s882 + $0xa0] sm:$0xff]
        %v2243 = vld [vmem:[%s882 + $0xa8] sm:$0xff]
        %v2244 = vld [vmem:[%s882 + $0xb0] sm:$0xff]
        %v2245 = vld [vmem:[%s882 + $0xb8] sm:$0xff]
        %v2246 = vld [vmem:[%s882 + $0xc0] sm:$0xff]
        %v2247 = vld [vmem:[%s882 + $0xc8] sm:$0xff]
        %v2248 = vld [vmem:[%s882 + $0xd0] sm:$0xff]
        %v2249 = vld [vmem:[%s882 + $0xd8] sm:$0xff]
        %v2250 = vld [vmem:[%s882 + $0xe0] sm:$0xff]
        %v2251 = vld [vmem:[%s882 + $0xe8] sm:$0xff]
        %v2252 = vld [vmem:[%s882 + $0xf0] sm:$0xff]
        %v2253 = vld [vmem:[%s882 + $0xf8] sm:$0xff]
        %v2254 = vpack.c.bf16 %v2221, %v2220
        %v2255 = vld [vmem:[%s1012] sm:$0xf]
        %v2257 = vlaneseq
        %v2258 = vshrl.u32 %v2257, 7
        %v2259 = vsub.s32 0, %v2258
        %v2260 = vrot.slane %v2255, %v2259
        %v2261 = vlaneseq
        %v2262 = vshrl.u32 %v2261, 7
        %v2263 = vsub.s32 1, %v2262
        %v2264 = vrot.slane %v2255, %v2263
        %v2265 = vlaneseq
        %v2266 = vshrl.u32 %v2265, 7
        %v2267 = vsub.s32 2, %v2266
        %v2268 = vrot.slane %v2255, %v2267
        %v2269 = vlaneseq
        %v2270 = vshrl.u32 %v2269, 7
        %v2271 = vsub.s32 3, %v2270
        %v2272 = vrot.slane %v2255, %v2271
        %v2309 = vunpack.c.l.b16 %v2222
        %v2310 = vunpack.c.h.b16 %v2222
        %v2311 = vunpack.c.l.b16 %v2223
        %v2312 = vunpack.c.h.b16 %v2223
        %v2313 = vunpack.c.l.b16 %v2224
        %v2314 = vunpack.c.h.b16 %v2224
        %v2315 = vunpack.c.l.b16 %v2225
        %v2316 = vunpack.c.h.b16 %v2225
        %v2317 = vunpack.c.l.b16 %v2226
        %v2318 = vunpack.c.h.b16 %v2226
        %v2319 = vunpack.c.l.b16 %v2227
        %v2320 = vunpack.c.h.b16 %v2227
        %v2321 = vunpack.c.l.b16 %v2228
        %v2322 = vunpack.c.h.b16 %v2228
        %v2323 = vunpack.c.l.b16 %v2229
        %v2324 = vunpack.c.h.b16 %v2229
        %v2325 = vunpack.c.l.b16 %v2230
        %v2326 = vunpack.c.h.b16 %v2230
        %v2327 = vunpack.c.l.b16 %v2231
        %v2328 = vunpack.c.h.b16 %v2231
        %v2329 = vunpack.c.l.b16 %v2232
        %v2330 = vunpack.c.h.b16 %v2232
        %v2331 = vunpack.c.l.b16 %v2233
        %v2332 = vunpack.c.h.b16 %v2233
        %v2333 = vunpack.c.l.b16 %v2234
        %v2334 = vunpack.c.h.b16 %v2234
        %v2335 = vunpack.c.l.b16 %v2235
        %v2336 = vunpack.c.h.b16 %v2235
        %v2337 = vunpack.c.l.b16 %v2236
        %v2338 = vunpack.c.h.b16 %v2236
        %v2339 = vunpack.c.l.b16 %v2237
        %v2340 = vunpack.c.h.b16 %v2237
        %v2341 = vunpack.c.l.b16 %v2238
        %v2342 = vunpack.c.h.b16 %v2238
        %v2343 = vunpack.c.l.b16 %v2239
        %v2344 = vunpack.c.h.b16 %v2239
        %v2345 = vunpack.c.l.b16 %v2240
        %v2346 = vunpack.c.h.b16 %v2240
        %v2347 = vunpack.c.l.b16 %v2241
        %v2348 = vunpack.c.h.b16 %v2241
        %v2349 = vunpack.c.l.b16 %v2242
        %v2350 = vunpack.c.h.b16 %v2242
        %v2351 = vunpack.c.l.b16 %v2243
        %v2352 = vunpack.c.h.b16 %v2243
        %v2353 = vunpack.c.l.b16 %v2244
        %v2354 = vunpack.c.h.b16 %v2244
        %v2355 = vunpack.c.l.b16 %v2245
        %v2356 = vunpack.c.h.b16 %v2245
        %v2357 = vunpack.c.l.b16 %v2246
        %v2358 = vunpack.c.h.b16 %v2246
        %v2359 = vunpack.c.l.b16 %v2247
        %v2360 = vunpack.c.h.b16 %v2247
        %v2361 = vunpack.c.l.b16 %v2248
        %v2362 = vunpack.c.h.b16 %v2248
        %v2363 = vunpack.c.l.b16 %v2249
        %v2364 = vunpack.c.h.b16 %v2249
        %v2365 = vunpack.c.l.b16 %v2250
        %v2366 = vunpack.c.h.b16 %v2250
        %v2367 = vunpack.c.l.b16 %v2251
        %v2368 = vunpack.c.h.b16 %v2251
        %v2369 = vunpack.c.l.b16 %v2252
        %v2370 = vunpack.c.h.b16 %v2252
        %v2371 = vunpack.c.l.b16 %v2253
        %v2372 = vunpack.c.h.b16 %v2253
        %v2373 = vpack.c.b16 %v2313, %v2309
        %v2374 = vpack.c.b16 %v2314, %v2310
        %v2375 = vpack.c.b16 %v2315, %v2311
        %v2376 = vpack.c.b16 %v2316, %v2312
        %v2377 = vpack.c.b16 %v2321, %v2317
        %v2378 = vpack.c.b16 %v2322, %v2318
        %v2379 = vpack.c.b16 %v2323, %v2319
        %v2380 = vpack.c.b16 %v2324, %v2320
        %v2381 = vpack.c.b16 %v2329, %v2325
        %v2382 = vpack.c.b16 %v2330, %v2326
        %v2383 = vpack.c.b16 %v2331, %v2327
        %v2384 = vpack.c.b16 %v2332, %v2328
        %v2385 = vpack.c.b16 %v2337, %v2333
        %v2386 = vpack.c.b16 %v2338, %v2334
        %v2387 = vpack.c.b16 %v2339, %v2335
        %v2388 = vpack.c.b16 %v2340, %v2336
        %v2389 = vpack.c.b16 %v2345, %v2341
        %v2390 = vpack.c.b16 %v2346, %v2342
        %v2391 = vpack.c.b16 %v2347, %v2343
        %v2392 = vpack.c.b16 %v2348, %v2344
        %v2393 = vpack.c.b16 %v2353, %v2349
        %v2394 = vpack.c.b16 %v2354, %v2350
        %v2395 = vpack.c.b16 %v2355, %v2351
        %v2396 = vpack.c.b16 %v2356, %v2352
        %v2397 = vpack.c.b16 %v2361, %v2357
        %v2398 = vpack.c.b16 %v2362, %v2358
        %v2399 = vpack.c.b16 %v2363, %v2359
        %v2400 = vpack.c.b16 %v2364, %v2360
        %v2401 = vpack.c.b16 %v2369, %v2365
        %v2402 = vpack.c.b16 %v2370, %v2366
        %v2403 = vpack.c.b16 %v2371, %v2367
        %v2404 = vpack.c.b16 %v2372, %v2368
        %2437 = vmatprep.subr.bf16.mxu0 %v2374
        %2438 = vmatpush1.bf16.msra.mxu0 %v2373
        %2439 = vmatprep.subr.bf16.mxu0 %v2378
        %2440 = vmatpush1.bf16.msra.mxu0 %v2377
        %2441 = vmatprep.subr.bf16.mxu0 %v2382
        %2442 = vmatpush1.bf16.msra.mxu0 %v2381
        %2443 = vmatprep.subr.bf16.mxu0 %v2386
        %2444 = vmatpush1.bf16.msra.mxu0 %v2385
        %2445 = vmatprep.subr.bf16.mxu0 %v2390
        %2446 = vmatpush1.bf16.msra.mxu0 %v2389
        %2447 = vmatprep.subr.bf16.mxu0 %v2394
        %2448 = vmatpush1.bf16.msra.mxu0 %v2393
        %2449 = vmatprep.subr.bf16.mxu0 %v2398
        %2450 = vmatpush1.bf16.msra.mxu0 %v2397
        %2451 = vmatprep.subr.bf16.mxu0 %v2402
        %2452 = vmatpush1.bf16.msra.mxu0 %v2401
        %2453 = vmatprep.subr.bf16.mxu0 0
        %2454 = vmatpush1.bf16.msra.mxu0 0
        %2455 = vmatprep.subr.bf16.mxu0 0
        %2456 = vmatpush1.bf16.msra.mxu0 0
        %2457 = vmatprep.subr.bf16.mxu0 0
        %2458 = vmatpush1.bf16.msra.mxu0 0
        %2459 = vmatprep.subr.bf16.mxu0 0
        %2460 = vmatpush1.bf16.msra.mxu0 0
        %2461 = vmatprep.subr.bf16.mxu0 0
        %2462 = vmatpush1.bf16.msra.mxu0 0
        %2463 = vmatprep.subr.bf16.mxu0 0
        %2464 = vmatpush1.bf16.msra.mxu0 0
        %2465 = vmatprep.subr.bf16.mxu0 0
        %2466 = vmatpush1.bf16.msra.mxu0 0
        %2467 = vmatprep.subr.bf16.mxu0 0
        %2468 = vmatpush1.bf16.msra.mxu0 0
        %2469 = vmatprep.mubr.bf16.mxu0 0
        %2470 = vmatmul.mubr.bf16.gmra.mrb[0].mxu0 %v2254
        %v2471 = vpop.f32.mrb[0].mxu0
        %v2472 = vadd.f32 %v2260, %v2471
        %v2473 = vpop.f32.mrb[0].mxu0
        %v2474 = vadd.f32 %v2264, %v2473
        %v2475 = vpop.f32.mrb[0].mxu0
        %v2476 = vadd.f32 %v2260, %v2475
        %v2477 = vpop.f32.mrb[0].mxu0
        %v2478 = vadd.f32 %v2264, %v2477
        %2479 = vdwg.mxu0
        %2480 = vmatprep.subr.bf16.mxu0 %v2376
        %2481 = vmatpush1.bf16.msra.mxu0 %v2375
        %2482 = vmatprep.subr.bf16.mxu0 %v2380
        %2483 = vmatpush1.bf16.msra.mxu0 %v2379
        %2484 = vmatprep.subr.bf16.mxu0 %v2384
        %2485 = vmatpush1.bf16.msra.mxu0 %v2383
        %2486 = vmatprep.subr.bf16.mxu0 %v2388
        %2487 = vmatpush1.bf16.msra.mxu0 %v2387
        %2488 = vmatprep.subr.bf16.mxu0 %v2392
        %2489 = vmatpush1.bf16.msra.mxu0 %v2391
        %2490 = vmatprep.subr.bf16.mxu0 %v2396
        %2491 = vmatpush1.bf16.msra.mxu0 %v2395
        %2492 = vmatprep.subr.bf16.mxu0 %v2400
        %2493 = vmatpush1.bf16.msra.mxu0 %v2399
        %2494 = vmatprep.subr.bf16.mxu0 %v2404
        %2495 = vmatpush1.bf16.msra.mxu0 %v2403
        %2496 = vmatprep.subr.bf16.mxu0 0
        %2497 = vmatpush1.bf16.msra.mxu0 0
        %2498 = vmatprep.subr.bf16.mxu0 0
        %2499 = vmatpush1.bf16.msra.mxu0 0
        %2500 = vmatprep.subr.bf16.mxu0 0
        %2501 = vmatpush1.bf16.msra.mxu0 0
        %2502 = vmatprep.subr.bf16.mxu0 0
        %2503 = vmatpush1.bf16.msra.mxu0 0
        %2504 = vmatprep.subr.bf16.mxu0 0
        %2505 = vmatpush1.bf16.msra.mxu0 0
        %2506 = vmatprep.subr.bf16.mxu0 0
        %2507 = vmatpush1.bf16.msra.mxu0 0
        %2508 = vmatprep.subr.bf16.mxu0 0
        %2509 = vmatpush1.bf16.msra.mxu0 0
        %2510 = vmatprep.subr.bf16.mxu0 0
        %2511 = vmatpush1.bf16.msra.mxu0 0
        %2512 = vmatprep.mubr.bf16.mxu0 0
        %2513 = vmatmul.mubr.bf16.gmra.mrb[0].mxu0 %v2254
        %v2514 = vpop.f32.mrb[0].mxu0
        %v2515 = vadd.f32 %v2268, %v2514
        %v2516 = vpop.f32.mrb[0].mxu0
        %v2517 = vadd.f32 %v2272, %v2516
        %v2518 = vpop.f32.mrb[0].mxu0
        %v2519 = vadd.f32 %v2268, %v2518
        %v2520 = vpop.f32.mrb[0].mxu0
        %v2521 = vadd.f32 %v2272, %v2520
        %2522 = vdwg.mxu0
        %v2523 = vmul.f32 %v2472, %v2472
        %v2524 = vmul.f32 %v2474, %v2474
        %v2525 = vmul.f32 %v2515, %v2515
        %v2526 = vmul.f32 %v2517, %v2517
        %v2527 = vmul.f32 %v2476, %v2476
        %v2528 = vmul.f32 %v2478, %v2478
        %v2529 = vmul.f32 %v2519, %v2519
        %v2530 = vmul.f32 %v2521, %v2521
        %v2531 = vmul.f32 %v2472, %v2523
        %v2532 = vmul.f32 %v2474, %v2524
        %v2533 = vmul.f32 %v2515, %v2525
        %v2534 = vmul.f32 %v2517, %v2526
        %v2535 = vmul.f32 %v2476, %v2527
        %v2536 = vmul.f32 %v2478, %v2528
        %v2537 = vmul.f32 %v2519, %v2529
        %v2538 = vmul.f32 %v2521, %v2530
        %v2539 = vmul.f32 %v2531, 0.044715
        %v2540 = vmul.f32 %v2532, 0.044715
        %v2541 = vmul.f32 %v2533, 0.044715
        %v2542 = vmul.f32 %v2534, 0.044715
        %v2543 = vmul.f32 %v2535, 0.044715
        %v2544 = vmul.f32 %v2536, 0.044715
        %v2545 = vmul.f32 %v2537, 0.044715
        %v2546 = vmul.f32 %v2538, 0.044715
        %v2547 = vadd.f32 %v2472, %v2539
        %v2548 = vadd.f32 %v2474, %v2540
        %v2549 = vadd.f32 %v2515, %v2541
        %v2550 = vadd.f32 %v2517, %v2542
        %v2551 = vadd.f32 %v2476, %v2543
        %v2552 = vadd.f32 %v2478, %v2544
        %v2553 = vadd.f32 %v2519, %v2545
        %v2554 = vadd.f32 %v2521, %v2546
        %v2555 = vmul.f32 %v2547, 0.7978846
        %v2556 = vmul.f32 %v2548, 0.7978846
        %v2557 = vmul.f32 %v2549, 0.7978846
        %v2558 = vmul.f32 %v2550, 0.7978846
        %v2559 = vmul.f32 %v2551, 0.7978846
        %v2560 = vmul.f32 %v2552, 0.7978846
        %v2561 = vmul.f32 %v2553, 0.7978846
        %v2562 = vmul.f32 %v2554, 0.7978846
        %v2563 = vtanh.pop %v2555
        %v2564 = vtanh.pop %v2556
        %v2565 = vtanh.pop %v2557
        %v2566 = vtanh.pop %v2558
        %v2567 = vtanh.pop %v2559
        %v2568 = vtanh.pop %v2560
        %v2569 = vtanh.pop %v2561
        %v2570 = vtanh.pop %v2562
        %v2571 = vadd.f32 %v2563, 1.0
        %v2572 = vadd.f32 %v2564, 1.0
        %v2573 = vadd.f32 %v2565, 1.0
        %v2574 = vadd.f32 %v2566, 1.0
        %v2575 = vadd.f32 %v2567, 1.0
        %v2576 = vadd.f32 %v2568, 1.0
        %v2577 = vadd.f32 %v2569, 1.0
        %v2578 = vadd.f32 %v2570, 1.0
        %v2579 = vmul.f32 %v2571, 0.5
        %v2580 = vmul.f32 %v2572, 0.5
        %v2581 = vmul.f32 %v2573, 0.5
        %v2582 = vmul.f32 %v2574, 0.5
        %v2583 = vmul.f32 %v2575, 0.5
        %v2584 = vmul.f32 %v2576, 0.5
        %v2585 = vmul.f32 %v2577, 0.5
        %v2586 = vmul.f32 %v2578, 0.5
        %v2587 = vmul.f32 %v2472, %v2579
        %v2588 = vmul.f32 %v2474, %v2580
        %v2589 = vmul.f32 %v2515, %v2581
        %v2590 = vmul.f32 %v2517, %v2582
        %v2591 = vmul.f32 %v2476, %v2583
        %v2592 = vmul.f32 %v2478, %v2584
        %v2593 = vmul.f32 %v2519, %v2585
        %v2594 = vmul.f32 %v2521, %v2586
        %v2595 = vld [vmem:[%s891] sm:$0xf]
        %v2596 = vld [vmem:[%s891 + $0x4] sm:$0xf]
        %v2597 = vld [vmem:[%s891 + $0x8] sm:$0xf]
        %v2598 = vld [vmem:[%s891 + $0xc] sm:$0xf]
        %v2599 = vld [vmem:[%s891 + $0x10] sm:$0xf]
        %v2600 = vld [vmem:[%s891 + $0x14] sm:$0xf]
        %v2601 = vld [vmem:[%s891 + $0x18] sm:$0xf]
        %v2602 = vld [vmem:[%s891 + $0x1c] sm:$0xf]
        %v2603 = vld [vmem:[%s891 + $0x20] sm:$0xf]
        %v2604 = vld [vmem:[%s891 + $0x24] sm:$0xf]
        %v2605 = vld [vmem:[%s891 + $0x28] sm:$0xf]
        %v2606 = vld [vmem:[%s891 + $0x2c] sm:$0xf]
        %v2607 = vld [vmem:[%s891 + $0x30] sm:$0xf]
        %v2608 = vld [vmem:[%s891 + $0x34] sm:$0xf]
        %v2609 = vld [vmem:[%s891 + $0x38] sm:$0xf]
        %v2610 = vld [vmem:[%s891 + $0x3c] sm:$0xf]
        %v2611 = vld [vmem:[%s891 + $0x40] sm:$0xf]
        %v2612 = vld [vmem:[%s891 + $0x44] sm:$0xf]
        %v2613 = vld [vmem:[%s891 + $0x48] sm:$0xf]
        %v2614 = vld [vmem:[%s891 + $0x4c] sm:$0xf]
        %v2615 = vld [vmem:[%s891 + $0x50] sm:$0xf]
        %v2616 = vld [vmem:[%s891 + $0x54] sm:$0xf]
        %v2617 = vld [vmem:[%s891 + $0x58] sm:$0xf]
        %v2618 = vld [vmem:[%s891 + $0x5c] sm:$0xf]
        %v2619 = vld [vmem:[%s891 + $0x60] sm:$0xf]
        %v2620 = vld [vmem:[%s891 + $0x64] sm:$0xf]
        %v2621 = vld [vmem:[%s891 + $0x68] sm:$0xf]
        %v2622 = vld [vmem:[%s891 + $0x6c] sm:$0xf]
        %v2623 = vld [vmem:[%s891 + $0x70] sm:$0xf]
        %v2624 = vld [vmem:[%s891 + $0x74] sm:$0xf]
        %v2625 = vld [vmem:[%s891 + $0x78] sm:$0xf]
        %v2626 = vld [vmem:[%s891 + $0x7c] sm:$0xf]
        %v2627 = vld [vmem:[%s891 + $0x80] sm:$0xf]
        %v2628 = vld [vmem:[%s891 + $0x84] sm:$0xf]
        %v2629 = vld [vmem:[%s891 + $0x88] sm:$0xf]
        %v2630 = vld [vmem:[%s891 + $0x8c] sm:$0xf]
        %v2631 = vld [vmem:[%s891 + $0x90] sm:$0xf]
        %v2632 = vld [vmem:[%s891 + $0x94] sm:$0xf]
        %v2633 = vld [vmem:[%s891 + $0x98] sm:$0xf]
        %v2634 = vld [vmem:[%s891 + $0x9c] sm:$0xf]
        %v2635 = vld [vmem:[%s891 + $0xa0] sm:$0xf]
        %v2636 = vld [vmem:[%s891 + $0xa4] sm:$0xf]
        %v2637 = vld [vmem:[%s891 + $0xa8] sm:$0xf]
        %v2638 = vld [vmem:[%s891 + $0xac] sm:$0xf]
        %v2639 = vld [vmem:[%s891 + $0xb0] sm:$0xf]
        %v2640 = vld [vmem:[%s891 + $0xb4] sm:$0xf]
        %v2641 = vld [vmem:[%s891 + $0xb8] sm:$0xf]
        %v2642 = vld [vmem:[%s891 + $0xbc] sm:$0xf]
        %v2643 = vld [vmem:[%s891 + $0xc0] sm:$0xf]
        %v2644 = vld [vmem:[%s891 + $0xc4] sm:$0xf]
        %v2645 = vld [vmem:[%s891 + $0xc8] sm:$0xf]
        %v2646 = vld [vmem:[%s891 + $0xcc] sm:$0xf]
        %v2647 = vld [vmem:[%s891 + $0xd0] sm:$0xf]
        %v2648 = vld [vmem:[%s891 + $0xd4] sm:$0xf]
        %v2649 = vld [vmem:[%s891 + $0xd8] sm:$0xf]
        %v2650 = vld [vmem:[%s891 + $0xdc] sm:$0xf]
        %v2651 = vld [vmem:[%s891 + $0xe0] sm:$0xf]
        %v2652 = vld [vmem:[%s891 + $0xe4] sm:$0xf]
        %v2653 = vld [vmem:[%s891 + $0xe8] sm:$0xf]
        %v2654 = vld [vmem:[%s891 + $0xec] sm:$0xf]
        %v2655 = vld [vmem:[%s891 + $0xf0] sm:$0xf]
        %v2656 = vld [vmem:[%s891 + $0xf4] sm:$0xf]
        %v2657 = vld [vmem:[%s891 + $0xf8] sm:$0xf]
        %v2658 = vld [vmem:[%s891 + $0xfc] sm:$0xf]
        %v2659 = vpack.c.bf16 %v2591, %v2587
        %v2660 = vpack.c.bf16 %v2592, %v2588
        %v2661 = vpack.c.bf16 %v2593, %v2589
        %v2662 = vpack.c.bf16 %v2594, %v2590
        %v2727 = vunpack.c.l.b16 %v2595
        %v2728 = vunpack.c.l.b16 %v2596
        %v2729 = vunpack.c.l.b16 %v2597
        %v2730 = vunpack.c.l.b16 %v2598
        %v2731 = vunpack.c.l.b16 %v2599
        %v2732 = vunpack.c.l.b16 %v2600
        %v2733 = vunpack.c.l.b16 %v2601
        %v2734 = vunpack.c.l.b16 %v2602
        %v2735 = vunpack.c.l.b16 %v2603
        %v2736 = vunpack.c.l.b16 %v2604
        %v2737 = vunpack.c.l.b16 %v2605
        %v2738 = vunpack.c.l.b16 %v2606
        %v2739 = vunpack.c.l.b16 %v2607
        %v2740 = vunpack.c.l.b16 %v2608
        %v2741 = vunpack.c.l.b16 %v2609
        %v2742 = vunpack.c.l.b16 %v2610
        %v2743 = vunpack.c.l.b16 %v2611
        %v2744 = vunpack.c.l.b16 %v2612
        %v2745 = vunpack.c.l.b16 %v2613
        %v2746 = vunpack.c.l.b16 %v2614
        %v2747 = vunpack.c.l.b16 %v2615
        %v2748 = vunpack.c.l.b16 %v2616
        %v2749 = vunpack.c.l.b16 %v2617
        %v2750 = vunpack.c.l.b16 %v2618
        %v2751 = vunpack.c.l.b16 %v2619
        %v2752 = vunpack.c.l.b16 %v2620
        %v2753 = vunpack.c.l.b16 %v2621
        %v2754 = vunpack.c.l.b16 %v2622
        %v2755 = vunpack.c.l.b16 %v2623
        %v2756 = vunpack.c.l.b16 %v2624
        %v2757 = vunpack.c.l.b16 %v2625
        %v2758 = vunpack.c.l.b16 %v2626
        %v2759 = vunpack.c.l.b16 %v2627
        %v2760 = vunpack.c.l.b16 %v2628
        %v2761 = vunpack.c.l.b16 %v2629
        %v2762 = vunpack.c.l.b16 %v2630
        %v2763 = vunpack.c.l.b16 %v2631
        %v2764 = vunpack.c.l.b16 %v2632
        %v2765 = vunpack.c.l.b16 %v2633
        %v2766 = vunpack.c.l.b16 %v2634
        %v2767 = vunpack.c.l.b16 %v2635
        %v2768 = vunpack.c.l.b16 %v2636
        %v2769 = vunpack.c.l.b16 %v2637
        %v2770 = vunpack.c.l.b16 %v2638
        %v2771 = vunpack.c.l.b16 %v2639
        %v2772 = vunpack.c.l.b16 %v2640
        %v2773 = vunpack.c.l.b16 %v2641
        %v2774 = vunpack.c.l.b16 %v2642
        %v2775 = vunpack.c.l.b16 %v2643
        %v2776 = vunpack.c.l.b16 %v2644
        %v2777 = vunpack.c.l.b16 %v2645
        %v2778 = vunpack.c.l.b16 %v2646
        %v2779 = vunpack.c.l.b16 %v2647
        %v2780 = vunpack.c.l.b16 %v2648
        %v2781 = vunpack.c.l.b16 %v2649
        %v2782 = vunpack.c.l.b16 %v2650
        %v2783 = vunpack.c.l.b16 %v2651
        %v2784 = vunpack.c.l.b16 %v2652
        %v2785 = vunpack.c.l.b16 %v2653
        %v2786 = vunpack.c.l.b16 %v2654
        %v2787 = vunpack.c.l.b16 %v2655
        %v2788 = vunpack.c.l.b16 %v2656
        %v2789 = vunpack.c.l.b16 %v2657
        %v2790 = vunpack.c.l.b16 %v2658
        %v2791 = vpack.c.b16 %v2728, %v2727
        %v2792 = vpack.c.b16 %v2730, %v2729
        %v2793 = vpack.c.b16 %v2732, %v2731
        %v2794 = vpack.c.b16 %v2734, %v2733
        %v2795 = vpack.c.b16 %v2736, %v2735
        %v2796 = vpack.c.b16 %v2738, %v2737
        %v2797 = vpack.c.b16 %v2740, %v2739
        %v2798 = vpack.c.b16 %v2742, %v2741
        %v2799 = vpack.c.b16 %v2744, %v2743
        %v2800 = vpack.c.b16 %v2746, %v2745
        %v2801 = vpack.c.b16 %v2748, %v2747
        %v2802 = vpack.c.b16 %v2750, %v2749
        %v2803 = vpack.c.b16 %v2752, %v2751
        %v2804 = vpack.c.b16 %v2754, %v2753
        %v2805 = vpack.c.b16 %v2756, %v2755
        %v2806 = vpack.c.b16 %v2758, %v2757
        %v2807 = vpack.c.b16 %v2760, %v2759
        %v2808 = vpack.c.b16 %v2762, %v2761
        %v2809 = vpack.c.b16 %v2764, %v2763
        %v2810 = vpack.c.b16 %v2766, %v2765
        %v2811 = vpack.c.b16 %v2768, %v2767
        %v2812 = vpack.c.b16 %v2770, %v2769
        %v2813 = vpack.c.b16 %v2772, %v2771
        %v2814 = vpack.c.b16 %v2774, %v2773
        %v2815 = vpack.c.b16 %v2776, %v2775
        %v2816 = vpack.c.b16 %v2778, %v2777
        %v2817 = vpack.c.b16 %v2780, %v2779
        %v2818 = vpack.c.b16 %v2782, %v2781
        %v2819 = vpack.c.b16 %v2784, %v2783
        %v2820 = vpack.c.b16 %v2786, %v2785
        %v2821 = vpack.c.b16 %v2788, %v2787
        %v2822 = vpack.c.b16 %v2790, %v2789
        %2855 = vmatprep.subr.bf16.mxu0 0
        %2856 = vmatpush1.bf16.msra.mxu0 %v2791
        %2857 = vmatprep.subr.bf16.mxu0 0
        %2858 = vmatpush1.bf16.msra.mxu0 %v2792
        %2859 = vmatprep.subr.bf16.mxu0 0
        %2860 = vmatpush1.bf16.msra.mxu0 %v2793
        %2861 = vmatprep.subr.bf16.mxu0 0
        %2862 = vmatpush1.bf16.msra.mxu0 %v2794
        %2863 = vmatprep.subr.bf16.mxu0 0
        %2864 = vmatpush1.bf16.msra.mxu0 %v2795
        %2865 = vmatprep.subr.bf16.mxu0 0
        %2866 = vmatpush1.bf16.msra.mxu0 %v2796
        %2867 = vmatprep.subr.bf16.mxu0 0
        %2868 = vmatpush1.bf16.msra.mxu0 %v2797
        %2869 = vmatprep.subr.bf16.mxu0 0
        %2870 = vmatpush1.bf16.msra.mxu0 %v2798
        %2871 = vmatprep.subr.bf16.mxu0 0
        %2872 = vmatpush1.bf16.msra.mxu0 %v2799
        %2873 = vmatprep.subr.bf16.mxu0 0
        %2874 = vmatpush1.bf16.msra.mxu0 %v2800
        %2875 = vmatprep.subr.bf16.mxu0 0
        %2876 = vmatpush1.bf16.msra.mxu0 %v2801
        %2877 = vmatprep.subr.bf16.mxu0 0
        %2878 = vmatpush1.bf16.msra.mxu0 %v2802
        %2879 = vmatprep.subr.bf16.mxu0 0
        %2880 = vmatpush1.bf16.msra.mxu0 %v2803
        %2881 = vmatprep.subr.bf16.mxu0 0
        %2882 = vmatpush1.bf16.msra.mxu0 %v2804
        %2883 = vmatprep.subr.bf16.mxu0 0
        %2884 = vmatpush1.bf16.msra.mxu0 %v2805
        %2885 = vmatprep.subr.bf16.mxu0 0
        %2886 = vmatpush1.bf16.msra.mxu0 %v2806
        %2887 = vmatprep.mubr.bf16.mxu0 %v2660
        %2888 = vmatmul.mubr.bf16.gmra.mrb[0].mxu0 %v2659
        %v2889 = vpop.f32.mrb[0].mxu0
        %v2890 = vadd.f32 0.0, %v2889
        %v2891 = vpop.f32.mrb[0].mxu0
        %v2892 = vpop.f32.mrb[0].mxu0
        %v2893 = vadd.f32 0.0, %v2892
        %v2894 = vpop.f32.mrb[0].mxu0
        %2895 = vdwg.mxu0
        %2896 = vmatprep.subr.bf16.mxu0 0
        %2897 = vmatpush1.bf16.msra.mxu0 %v2807
        %2898 = vmatprep.subr.bf16.mxu0 0
        %2899 = vmatpush1.bf16.msra.mxu0 %v2808
        %2900 = vmatprep.subr.bf16.mxu0 0
        %2901 = vmatpush1.bf16.msra.mxu0 %v2809
        %2902 = vmatprep.subr.bf16.mxu0 0
        %2903 = vmatpush1.bf16.msra.mxu0 %v2810
        %2904 = vmatprep.subr.bf16.mxu0 0
        %2905 = vmatpush1.bf16.msra.mxu0 %v2811
        %2906 = vmatprep.subr.bf16.mxu0 0
        %2907 = vmatpush1.bf16.msra.mxu0 %v2812
        %2908 = vmatprep.subr.bf16.mxu0 0
        %2909 = vmatpush1.bf16.msra.mxu0 %v2813
        %2910 = vmatprep.subr.bf16.mxu0 0
        %2911 = vmatpush1.bf16.msra.mxu0 %v2814
        %2912 = vmatprep.subr.bf16.mxu0 0
        %2913 = vmatpush1.bf16.msra.mxu0 %v2815
        %2914 = vmatprep.subr.bf16.mxu0 0
        %2915 = vmatpush1.bf16.msra.mxu0 %v2816
        %2916 = vmatprep.subr.bf16.mxu0 0
        %2917 = vmatpush1.bf16.msra.mxu0 %v2817
        %2918 = vmatprep.subr.bf16.mxu0 0
        %2919 = vmatpush1.bf16.msra.mxu0 %v2818
        %2920 = vmatprep.subr.bf16.mxu0 0
        %2921 = vmatpush1.bf16.msra.mxu0 %v2819
        %2922 = vmatprep.subr.bf16.mxu0 0
        %2923 = vmatpush1.bf16.msra.mxu0 %v2820
        %2924 = vmatprep.subr.bf16.mxu0 0
        %2925 = vmatpush1.bf16.msra.mxu0 %v2821
        %2926 = vmatprep.subr.bf16.mxu0 0
        %2927 = vmatpush1.bf16.msra.mxu0 %v2822
        %2928 = vmatprep.mubr.bf16.mxu0 %v2662
        %2929 = vmatmul.mubr.bf16.gmra.mrb[0].mxu0 %v2661
        %v2930 = vpop.f32.mrb[0].mxu0
        %v2931 = vadd.f32 %v2890, %v2930
        %v2932 = vpop.f32.mrb[0].mxu0
        %v2933 = vpop.f32.mrb[0].mxu0
        %v2934 = vadd.f32 %v2893, %v2933
        %v2935 = vpop.f32.mrb[0].mxu0
        %2936 = vdwg.mxu0
        %v2937 = vadd.f32 %v2178, %v2931
        %v2938 = vadd.f32 %v2179, %v2934
        %v2939 = vld [vmem:[%s1015] sm:$0x1]
        %v2941 = vlaneseq
        %v2942 = vshrl.u32 %v2941, 7
        %v2943 = vsub.s32 0, %v2942
        %v2944 = vrot.slane %v2939, %v2943
        %v2946 = vadd.f32 %v2937, %v2944
        %v2947 = vadd.f32 %v2938, %v2944
        %2948 = vst [vmem:[#allocation2] sm:$0xff] %v2946
        %2949 = vst [vmem:[#allocation2 + $0x8] sm:$0x3] %v2947
        %p2950 = scmp.eq.s32.totalorder %s50, 1
        // Predicated region
        $region149: #{tpu_custom_call.1} parent=99 // pred_check
          %p2951 = pneg %p2950
        $region150: #{tpu_custom_call.1} parent=99 // pred_check_branch
          %2953 = sbr.rel (%p2951) target = $region152
        $region151: #{tpu_custom_call.1} parent=99 // pred_region
          %v2954 = vld [vmem:[%s18] sm:$0x1]
          %v2955 = vld [vmem:[%s19] sm:$0x1]
          %2956 = vadd.xlane.f32.xlu0 %v2946
          %v2957 = vpop.xlane.xlu0 %2956
          %v2958 = vsel %vm1215, %v2947, 0.0
          %2959 = vadd.xlane.f32.xlu0 %v2958
          %v2960 = vpop.xlane.xlu0 %2959
          %v2961 = vmul.f32 %v2957, %v1219
          %v2962 = vmul.f32 %v2960, %v1219
          %v2963 = vsub.f32 %v2946, %v2961
          %v2964 = vsub.f32 %v2947, %v2962
          %v2965 = vmul.f32 %v2963, %v2963
          %v2966 = vmul.f32 %v2964, %v2964
          %2967 = vadd.xlane.f32.xlu0 %v2965
          %v2968 = vpop.xlane.xlu0 %2967
          %v2969 = vsel %vm1215, %v2966, 0.0
          %2970 = vadd.xlane.f32.xlu0 %v2969
          %v2971 = vpop.xlane.xlu0 %2970
          %v2972 = vmul.f32 %v2968, %v1219
          %v2973 = vmul.f32 %v2971, %v1219
          %v2974 = vadd.f32 %v2972, 1e-06
          %v2975 = vadd.f32 %v2973, 1e-06
          %v2976 = vrsqrt.pop %v2974
          %v2977 = vrsqrt.pop %v2975
          %v2978 = vmul.f32 %v2963, %v2976
          %v2979 = vmul.f32 %v2964, %v2977
          %v2981 = vlaneseq
          %v2982 = vshrl.u32 %v2981, 7
          %v2983 = vsub.s32 0, %v2982
          %v2984 = vrot.slane %v2954, %v2983
          %v2986 = vmul.f32 %v2978, %v2984
          %v2987 = vmul.f32 %v2979, %v2984
          %v2989 = vlaneseq
          %v2990 = vshrl.u32 %v2989, 7
          %v2991 = vsub.s32 0, %v2990
          %v2992 = vrot.slane %v2955, %v2991
          %v2994 = vadd.f32 %v2986, %v2992
          %v2995 = vadd.f32 %v2987, %v2992
          %2996 = vst [vmem:[%s1020] sm:$0xff] %v2994
          %2997 = vst [vmem:[%s1020 + $0x8] sm:$0x3] %v2995
        $region152: #{tpu_custom_call.1} parent=99 // pred_fallthru
          _
        %p2998 = scmp.lt.s32.totalorder %s49, 1
        %s2999 = scalar_select %p2998, %s49, 1
        %s3000 = smul.addr %s2999, 2
        %s3001 = smul.addr %s3000, 8
        %s3002 = scalar_lea.vmem %s20, %s3001
        // Predicated region
        $region153: #{tpu_custom_call.1} parent=99 // pred_check
          %p3003 = pneg %p560
        $region154: #{tpu_custom_call.1} parent=99 // pred_check_branch
          %3005 = sbr.rel (%p3003) target = $region156
        $region155: #{tpu_custom_call.1} parent=99 // pred_region
          _
        $region156: #{tpu_custom_call.1} parent=99 // pred_fallthru
          _
      $region100: #{tpu_custom_call.1} parent=5 // pred_fallthru
        _
      %p3006 = scmp.le.s32.totalorder 2, %s40
      // Predicated region
      $region157: #{tpu_custom_call.1} parent=5 // pred_check
        %p3007 = pneg %p3006
      $region158: #{tpu_custom_call.1} parent=5 // pred_check_branch
        %3009 = sbr.rel (%p3007) target = $region160
      $region159: #{tpu_custom_call.1} parent=5 // pred_region
        %s3010 = ssub.s32 %s40, 2
        // Predicated region
        $region161: #{tpu_custom_call.1} parent=159 // pred_check
          %p3011 = pneg %p566
        $region162: #{tpu_custom_call.1} parent=159 // pred_check_branch
          %3013 = sbr.rel (%p3011) target = $region164
        $region163: #{tpu_custom_call.1} parent=159 // pred_region
          %p3014 = scmp.lt.s32.totalorder %s51, 1
          %s3015 = scalar_select %p3014, %s51, 1
          %s3016 = smul.addr %s3015, 2
          %s3017 = smul.addr %s3016, 8
          %s3018 = scalar_lea.vmem %s20, %s3017
        $region164: #{tpu_custom_call.1} parent=159 // pred_fallthru
          _
      $region160: #{tpu_custom_call.1} parent=5 // pred_fallthru
        _
    $region6: #{tpu_custom_call.1} parent=1 // loop_footer
      %s44 = sadd.s32 1, %s40
    $region7: #{tpu_custom_call.1} parent=1 // loop_footer_branch
      %39 = sbr.rel target = $region3
    $region8: #{tpu_custom_call.1} parent=1 // loop_exit
      _
    %3019 = vsyncpa [#allocation4], 1
    %s3020 = scalar_lea.sflag [#allocation4], 1
    %3021 = vsyncpa %s3020, 1
    %3022 = vsyncpa [#allocation6], 1
    %3023 = vsyncpa [#allocation9], 1
    %3024 = vsyncpa [#allocation12], 1
    %s3025 = scalar_lea.sflag [#allocation12], 1
    %3026 = vsyncpa %s3025, 1
    %3027 = vsyncpa [#allocation15], 1
    %s3028 = scalar_lea.sflag [#allocation15], 1
    %3029 = vsyncpa %s3028, 1
    %3030 = vsyncpa [#allocation18], 1
    %s3031 = scalar_lea.sflag [#allocation18], 1
    %3032 = vsyncpa %s3031, 1

</llo_original>
